<compile_context>
chip_gen: v7x
topology: tpu7x:2x2x1
jax: 0.10.0
libtpu: 0.0.40
codegen_flags: <defaults>
</compile_context>

<pallas_src>
import functools

import jax
import jax.numpy as jnp
import numpy as np
from jax.experimental import pallas as pl
from jax.experimental.pallas import tpu as pltpu


# ---------------------------------------------------------------------------
# Pure-JAX reference building blocks (f32, unfused) — correctness check only
# ---------------------------------------------------------------------------
def _lstm_seq(x, w_ih, w_hh, b):
    """Single-layer LSTM over a full sequence. x: (B, T, D_in) -> (B, T, H)."""
    B, T, _ = x.shape
    H = w_hh.shape[0]
    h = jnp.zeros((B, H), jnp.float32)
    c = jnp.zeros((B, H), jnp.float32)
    hs = []
    for t in range(T):
        x_t = x[:, t, :]
        gates = (
            jnp.dot(x_t, w_ih, preferred_element_type=jnp.float32)
            + jnp.dot(h, w_hh, preferred_element_type=jnp.float32)
            + b
        )
        i_g = jax.nn.sigmoid(gates[:, 0 * H:1 * H])
        f_g = jax.nn.sigmoid(gates[:, 1 * H:2 * H])
        g_g = jnp.tanh(gates[:, 2 * H:3 * H])
        o_g = jax.nn.sigmoid(gates[:, 3 * H:4 * H])
        c = f_g * c + i_g * g_g
        h = o_g * jnp.tanh(c)
        hs.append(h)
    return jnp.stack(hs, axis=1)


def _linear(x, w, b):
    return jnp.dot(x, w, preferred_element_type=jnp.float32) + b


# ---------------------------------------------------------------------------
# In-kernel fused LSTM (two independent LSTMs run as one wider LSTM)
# Fused gate order: (i, f, o, g)  — sigmoid gates contiguous.
# ---------------------------------------------------------------------------
def _fused_lstm(x_flat, w_ih, w_hh, b, hs_ref, *, T, Bp):
    """x_flat: (T*Bp, D) f32 (t-major). w_ih: (D, 4*H2), w_hh: (H2, 4*H2),
    b: (1, 4*H2) — all f32.  Writes per-step hidden states into hs_ref
    ((T*Bp, H2) f32 VMEM scratch) and returns them as a value."""
    H2 = w_hh.shape[0]
    # Hoisted input projection: one matmul for all T steps, bias folded in.
    gx = jnp.dot(x_flat, w_ih, preferred_element_type=jnp.float32) + b  # (T*Bp, 4*H2)
    h = jnp.zeros((Bp, H2), jnp.float32)
    c = jnp.zeros((Bp, H2), jnp.float32)
    for t in range(T):  # T is small & static -> fully unrolled
        g = gx[t * Bp:(t + 1) * Bp, :] + jnp.dot(
            h, w_hh, preferred_element_type=jnp.float32)
        sig = jax.nn.sigmoid(g[:, :3 * H2])          # one EUP launch: i, f, o
        i_g = sig[:, 0 * H2:1 * H2]
        f_g = sig[:, 1 * H2:2 * H2]
        o_g = sig[:, 2 * H2:3 * H2]
        g_g = jnp.tanh(g[:, 3 * H2:4 * H2])          # one tanh launch: g
        c = f_g * c + i_g * g_g
        h = o_g * jnp.tanh(c)
        hs_ref[t * Bp:(t + 1) * Bp, :] = h           # full-sublane-tile store
    return hs_ref[...]                               # (T*Bp, H2)


# ---------------------------------------------------------------------------
# Pallas kernel: whole VAE forward (fused weights, t-major flat layout)
# ---------------------------------------------------------------------------
def vae_kernel(
    T, B, Bp,
    # data (all (T*Bp, D) f32, t-major) + batch-validity mask (T*Bp, 1)
    x_ref, real_ref, eps_enc_ref, eps_dec_ref, mask_ref,
    # fused encoder stage-0 LSTM pair (shared input x)
    e0_wih, e0_whh, e0_b,
    # fused encoder Linear pair (block-diagonal)
    el_w, el_b,
    # fused encoder stage-2 LSTM pair (split input, block-diag W_ih)
    e2_wih, e2_whh, e2_b,
    # fused decoder LSTM pair (shared input z)
    d_wih, d_whh, d_b,
    # fused decoder Linear pair (block-diagonal)
    dl_w, dl_b,
    # outputs
    rep_ref, loss_ref,
    # VMEM scratch: per-step hidden states of the three fused LSTMs
    e0_hs, e2_hs, d_hs,
):
    x = x_ref[...]                                                # (T*Bp, in)
    mask = mask_ref[...]                                          # (T*Bp, 1)

    # ---- Encoder: fused mean+logvar stage-0 LSTM -> [h_mu | h_lv] ----
    h0 = _fused_lstm(x, e0_wih[...], e0_whh[...], e0_b[...], e0_hs, T=T, Bp=Bp)
    # ---- fused mean+logvar Linear (2-D block-diagonal matmul) ----
    h1 = jnp.dot(h0, el_w[...], preferred_element_type=jnp.float32) + el_b[...]
    # ---- fused stage-2 LSTM -> [mu | logvar] ----
    h2 = _fused_lstm(h1, e2_wih[...], e2_whh[...], e2_b[...], e2_hs, T=T, Bp=Bp)
    noise = h2.shape[-1] // 2
    mu = h2[:, :noise]
    logvar = h2[:, noise:]

    # ---- reparametrize (encoder) + KL (padded rows masked, divisor = real B) ----
    e = jnp.exp(0.5 * logvar)                 # std; e*e == exp(logvar)
    z = eps_enc_ref[...] * e + mu
    kl = 0.5 * jnp.sum(mask * (-1.0 - logvar + mu * mu + e * e)) / B

    # ---- Decoder: fused mean+logvar LSTM on shared input z ----
    hd = _fused_lstm(z, d_wih[...], d_whh[...], d_b[...], d_hs, T=T, Bp=Bp)
    dec = jnp.dot(hd, dl_w[...], preferred_element_type=jnp.float32) + dl_b[...]
    out = dec.shape[-1] // 2
    mu_dec = dec[:, :out]
    lv_dec = dec[:, out:]

    # ---- reparametrize (decoder) ----
    std = jnp.exp(0.5 * lv_dec)
    inv_std = jnp.exp(-0.5 * lv_dec)
    rep_ref[...] = eps_dec_ref[...] * std + mu_dec

    # ---- reconstruction loss (multiply by inv_std; padded rows masked) ----
    diff = (mu_dec - real_ref[...]) * inv_std
    rec = 0.5 * jnp.sum(mask * (diff * diff + lv_dec)) / B

    # single small writeback: [kl, rec]
    loss_ref[...] = jnp.concatenate(
        [jnp.reshape(kl, (1, 1)), jnp.reshape(rec, (1, 1))], axis=1)


# ---------------------------------------------------------------------------
# Weight fusion / packing (done once, outside the kernel) — all f32
# ---------------------------------------------------------------------------
_GATE_ORDER = (0, 1, 3, 2)   # pack gates as (i, f, o, g): sigmoids contiguous


def _gate_blocks(w, H):
    return [w[:, k * H:(k + 1) * H] for k in range(4)]


def _fuse_lstm_pair(wih_a, whh_a, b_a, wih_b, whh_b, b_b, *, split_input):
    """Fuse two independent LSTMs (equal hidden H) into one LSTM over the
    concatenated state [h_a | h_b] (hidden 2H), gate order (i,f,o,g); each
    fused gate block is [gate_a | gate_b]. W_hh is per-gate block-diagonal.
    split_input=True: input is [x_a | x_b] and W_ih is per-gate block-diagonal."""
    D = wih_a.shape[0]
    H = whh_a.shape[0]
    wih_a_g, wih_b_g = _gate_blocks(wih_a, H), _gate_blocks(wih_b, H)
    whh_a_g, whh_b_g = _gate_blocks(whh_a, H), _gate_blocks(whh_b, H)
    b_a_g, b_b_g = _gate_blocks(b_a, H), _gate_blocks(b_b, H)
    zdh = jnp.zeros((D, H), jnp.float32)
    zhh = jnp.zeros((H, H), jnp.float32)
    wih_cols, whh_cols, b_cols = [], [], []
    for k in _GATE_ORDER:
        if split_input:
            wih_k = jnp.concatenate(
                [jnp.concatenate([wih_a_g[k], zdh], axis=1),
                 jnp.concatenate([zdh, wih_b_g[k]], axis=1)], axis=0)
        else:
            wih_k = jnp.concatenate([wih_a_g[k], wih_b_g[k]], axis=1)
        whh_k = jnp.concatenate(
            [jnp.concatenate([whh_a_g[k], zhh], axis=1),
             jnp.concatenate([zhh, whh_b_g[k]], axis=1)], axis=0)
        wih_cols.append(wih_k)
        whh_cols.append(whh_k)
        b_cols.append(jnp.concatenate([b_a_g[k], b_b_g[k]], axis=1))
    w_ih = jnp.concatenate(wih_cols, axis=1).astype(jnp.float32)
    w_hh = jnp.concatenate(whh_cols, axis=1).astype(jnp.float32)
    bias = jnp.concatenate(b_cols, axis=1).astype(jnp.float32)
    return w_ih, w_hh, bias


def _fuse_linear_pair(w_a, b_a, w_b, b_b):
    D, O = w_a.shape
    z = jnp.zeros((D, O), jnp.float32)
    w = jnp.concatenate(
        [jnp.concatenate([w_a, z], axis=1),
         jnp.concatenate([z, w_b], axis=1)], axis=0).astype(jnp.float32)
    b = jnp.concatenate([b_a, b_b], axis=1).astype(jnp.float32)
    return w, b


def pack_params(p):
    (em_wih0, em_whh0, em_b0, em_wl, em_bl, em_wih2, em_whh2, em_b2,
     el_wih0, el_whh0, el_b0, el_wl, el_bl, el_wih2, el_whh2, el_b2,
     dm_wih, dm_whh, dm_b, dm_wl, dm_bl,
     dl_wih, dl_whh, dl_b, dl_wl, dl_bl) = p
    e0 = _fuse_lstm_pair(em_wih0, em_whh0, em_b0,
                         el_wih0, el_whh0, el_b0, split_input=False)
    elin = _fuse_linear_pair(em_wl, em_bl, el_wl, el_bl)
    e2 = _fuse_lstm_pair(em_wih2, em_whh2, em_b2,
                         el_wih2, el_whh2, el_b2, split_input=True)
    dec = _fuse_lstm_pair(dm_wih, dm_whh, dm_b,
                          dl_wih, dl_whh, dl_b, split_input=False)
    dlin = _fuse_linear_pair(dm_wl, dm_bl, dl_wl, dl_bl)
    return (*e0, *elin, *e2, *dec, *dlin)


# ---------------------------------------------------------------------------
# Wrapper
# ---------------------------------------------------------------------------
def vae_forward(x, real, eps_enc, eps_dec, packed):
    B, T, _ = x.shape
    out_dim = real.shape[-1]
    Bp = max(8, B)                     # pad batch to a full 8-sublane tile
    packed = tuple(packed)
    H2_e0 = packed[1].shape[0]         # 2 * input_dim
    H2_e2 = packed[6].shape[0]         # 2 * noise_dim
    H2_d = packed[9].shape[0]          # 2 * hidden_dim

    def pad_b(a):  # (B, T, D) -> (Bp, T, D), zero rows appended
        if Bp == B:
            return a
        pad = jnp.zeros((Bp - B,) + a.shape[1:], a.dtype)
        return jnp.concatenate([a, pad], axis=0)

    def tflat(a):  # (Bp, T, D) -> (T*Bp, D), t-major (layout plumbing in XLA)
        return jnp.transpose(a, (1, 0, 2)).reshape(T * Bp, a.shape[-1])

    # 1.0 for real batch rows, 0.0 for padded rows (t-major flat layout)
    mask = jnp.tile((jnp.arange(Bp) < B).astype(jnp.float32), T).reshape(T * Bp, 1)

    inputs = (tflat(pad_b(x)), tflat(pad_b(real)),
              tflat(pad_b(eps_enc)), tflat(pad_b(eps_dec)), mask) + packed
    vmem = pl.BlockSpec(memory_space=pltpu.MemorySpace.VMEM)
    rep, losses = pl.pallas_call(
        functools.partial(vae_kernel, T, B, Bp),
        out_shape=(
            jax.ShapeDtypeStruct((T * Bp, out_dim), jnp.float32),  # reparam x
            jax.ShapeDtypeStruct((1, 2), jnp.float32),             # [kl, rec]
        ),
        in_specs=[vmem] * len(inputs),
        out_specs=(vmem, vmem),
        scratch_shapes=[
            pltpu.VMEM((T * Bp, H2_e0), jnp.float32),
            pltpu.VMEM((T * Bp, H2_e2), jnp.float32),
            pltpu.VMEM((T * Bp, H2_d), jnp.float32),
        ],
    )(*inputs)
    rep = jnp.transpose(rep.reshape(T, Bp, out_dim)[:, :B, :], (1, 0, 2))
    return losses[0, 0], rep, losses[0, 1]


# ---------------------------------------------------------------------------
# Deterministic parameter init (shapes from VAE.__init__, num_layers = 1)
# ---------------------------------------------------------------------------
def init_params(key, input_dim, hidden_dim, noise_dim, output_dim, scale=0.1):
    keys = iter(jax.random.split(key, 64))

    def w(shape):
        return (scale * jax.random.normal(next(keys), shape)).astype(jnp.float32)

    def lstm(d_in, h):
        return [w((d_in, 4 * h)), w((h, 4 * h)), w((1, 4 * h))]

    def lin(d_in, d_out):
        return [w((d_in, d_out)), w((1, d_out))]

    p = []
    # encoder mean: LSTM(in->in), Linear(in->hidden), LSTM(hidden->noise)
    p += lstm(input_dim, input_dim) + lin(input_dim, hidden_dim) + lstm(hidden_dim, noise_dim)
    # encoder logvar
    p += lstm(input_dim, input_dim) + lin(input_dim, hidden_dim) + lstm(hidden_dim, noise_dim)
    # decoder mean: LSTM(noise->hidden), Linear(hidden->out)
    p += lstm(noise_dim, hidden_dim) + lin(hidden_dim, output_dim)
    # decoder logvar
    p += lstm(noise_dim, hidden_dim) + lin(hidden_dim, output_dim)
    return p


# ---------------------------------------------------------------------------
# Pure-JAX reference (same math, unfused, f32) for a correctness check
# ---------------------------------------------------------------------------
def reference(x, real, eps_enc, eps_dec, p):
    (em_wih0, em_whh0, em_b0, em_wl, em_bl, em_wih2, em_whh2, em_b2,
     el_wih0, el_whh0, el_b0, el_wl, el_bl, el_wih2, el_whh2, el_b2,
     dm_wih, dm_whh, dm_b, dm_wl, dm_bl,
     dl_wih, dl_whh, dl_b, dl_wl, dl_bl) = p
    mu = _lstm_seq(_linear(_lstm_seq(x, em_wih0, em_whh0, em_b0), em_wl, em_bl),
                   em_wih2, em_whh2, em_b2)
    logvar = _lstm_seq(_linear(_lstm_seq(x, el_wih0, el_whh0, el_b0), el_wl, el_bl),
                       el_wih2, el_whh2, el_b2)
    z = eps_enc * jnp.exp(0.5 * logvar) + mu
    kl = jnp.mean(0.5 * jnp.sum(-1.0 - logvar + mu * mu + jnp.exp(logvar), axis=(1, 2)))
    mu_dec = _linear(_lstm_seq(z, dm_wih, dm_whh, dm_b), dm_wl, dm_bl)
    lv_dec = _linear(_lstm_seq(z, dl_wih, dl_whh, dl_b), dl_wl, dl_bl)
    std = jnp.exp(0.5 * lv_dec)
    rep = eps_dec * std + mu_dec
    diff = (mu_dec - real) / std
    rec = jnp.mean(0.5 * jnp.sum(diff * diff, axis=(1, 2))
                   + 0.5 * jnp.sum(lv_dec, axis=(1, 2)))
    return kl, rep, rec


if __name__ == "__main__":
    B, T = 2, 8
    input_dim, hidden_dim, noise_dim, output_dim = 16, 32, 8, 16

    key = jax.random.PRNGKey(0)
    kx, kr, ke1, ke2, kp = jax.random.split(key, 5)
    x = jax.random.normal(kx, (B, T, input_dim), jnp.float32)
    real = jax.random.normal(kr, (B, T, output_dim), jnp.float32)
    eps_enc = jax.random.normal(ke1, (B, T, noise_dim), jnp.float32)
    eps_dec = jax.random.normal(ke2, (B, T, output_dim), jnp.float32)
    params = init_params(kp, input_dim, hidden_dim, noise_dim, output_dim)

    packed = pack_params(params)   # fuse weights once, outside the kernel (all f32)

    kl, rep, rec = jax.jit(vae_forward)(x, real, eps_enc, eps_dec, packed)
    jax.block_until_ready((kl, rep, rec))

    kl_r, rep_r, rec_r = reference(x, real, eps_enc, eps_dec, params)
    assert np.allclose(np.asarray(kl), np.asarray(kl_r), rtol=1e-2, atol=1e-2)
    assert np.allclose(np.asarray(rep), np.asarray(rep_r), rtol=1e-2, atol=1e-2)
    assert np.allclose(np.asarray(rec), np.asarray(rec_r), rtol=1e-2, atol=1e-2)

    print("KERNEL_OK")
</pallas_src>

<mosaic_0001>
module attributes {stable_mosaic.version = 11 : i64} {
  func.func @vae_kernel(%arg0: memref<64x16xf32, #tpu.memory_space<vmem>>, %arg1: memref<64x16xf32, #tpu.memory_space<vmem>>, %arg2: memref<64x8xf32, #tpu.memory_space<vmem>>, %arg3: memref<64x16xf32, #tpu.memory_space<vmem>>, %arg4: memref<64x1xf32, #tpu.memory_space<vmem>>, %arg5: memref<16x128xf32, #tpu.memory_space<vmem>>, %arg6: memref<32x128xf32, #tpu.memory_space<vmem>>, %arg7: memref<1x128xf32, #tpu.memory_space<vmem>>, %arg8: memref<32x64xf32, #tpu.memory_space<vmem>>, %arg9: memref<1x64xf32, #tpu.memory_space<vmem>>, %arg10: memref<64x64xf32, #tpu.memory_space<vmem>>, %arg11: memref<16x64xf32, #tpu.memory_space<vmem>>, %arg12: memref<1x64xf32, #tpu.memory_space<vmem>>, %arg13: memref<8x256xf32, #tpu.memory_space<vmem>>, %arg14: memref<64x256xf32, #tpu.memory_space<vmem>>, %arg15: memref<1x256xf32, #tpu.memory_space<vmem>>, %arg16: memref<64x32xf32, #tpu.memory_space<vmem>>, %arg17: memref<1x32xf32, #tpu.memory_space<vmem>>, %arg18: memref<64x16xf32, #tpu.memory_space<vmem>>, %arg19: memref<1x2xf32, #tpu.memory_space<vmem>>, %arg20: memref<64x32xf32, #tpu.memory_space<vmem>>, %arg21: memref<64x16xf32, #tpu.memory_space<vmem>>, %arg22: memref<64x64xf32, #tpu.memory_space<vmem>>) attributes {dimension_semantics = [], scalar_prefetch = 0 : i64, scratch_operands = 3 : i64, tpu.core_type = #tpu.core_type<tc>} {
    %c0 = arith.constant 0 : index
    %c0_0 = arith.constant 0 : index
    %0 = vector.load %arg0[%c0, %c0_0] : memref<64x16xf32, #tpu.memory_space<vmem>>, vector<64x16xf32>
    %c0_1 = arith.constant 0 : index
    %c0_2 = arith.constant 0 : index
    %1 = vector.load %arg4[%c0_1, %c0_2] : memref<64x1xf32, #tpu.memory_space<vmem>>, vector<64x1xf32>
    %c0_3 = arith.constant 0 : index
    %c0_4 = arith.constant 0 : index
    %2 = vector.load %arg5[%c0_3, %c0_4] : memref<16x128xf32, #tpu.memory_space<vmem>>, vector<16x128xf32>
    %c0_5 = arith.constant 0 : index
    %c0_6 = arith.constant 0 : index
    %3 = vector.load %arg6[%c0_5, %c0_6] : memref<32x128xf32, #tpu.memory_space<vmem>>, vector<32x128xf32>
    %c0_7 = arith.constant 0 : index
    %c0_8 = arith.constant 0 : index
    %4 = vector.load %arg7[%c0_7, %c0_8] : memref<1x128xf32, #tpu.memory_space<vmem>>, vector<1x128xf32>
    %cst = arith.constant dense<0.000000e+00> : vector<64x128xf32>
    %5 = tpu.matmul %0, %2, %cst {dimension_numbers = #tpu.dot_dimension_numbers<[1], [0], [0], [1], [0, 0, 1, 1], [], []>} : vector<64x16xf32>, vector<16x128xf32>, vector<64x128xf32> -> vector<64x128xf32>
    %6 = vector.broadcast %4 : vector<1x128xf32> to vector<64x128xf32>
    %7 = arith.addf %5, %6 : vector<64x128xf32>
    %cst_9 = arith.constant 0.000000e+00 : f32
    %8 = vector.broadcast %cst_9 : f32 to vector<8x32xf32>
    %cst_10 = arith.constant 0.000000e+00 : f32
    %9 = vector.broadcast %cst_10 : f32 to vector<8x32xf32>
    %10 = vector.extract_strided_slice %7 {offsets = [0, 0], sizes = [8, 128], strides = [1, 1]} : vector<64x128xf32> to vector<8x128xf32>
    %cst_11 = arith.constant dense<0.000000e+00> : vector<8x128xf32>
    %11 = tpu.matmul %8, %3, %cst_11 {dimension_numbers = #tpu.dot_dimension_numbers<[1], [0], [0], [1], [0, 0, 1, 1], [], []>} : vector<8x32xf32>, vector<32x128xf32>, vector<8x128xf32> -> vector<8x128xf32>
    %12 = arith.addf %10, %11 : vector<8x128xf32>
    %13 = vector.extract_strided_slice %12 {offsets = [0, 0], sizes = [8, 96], strides = [1, 1]} : vector<8x128xf32> to vector<8x96xf32>
    %14 = arith.negf %13 : vector<8x96xf32>
    %15 = math.exp %14 : vector<8x96xf32>
    %cst_12 = arith.constant 1.000000e+00 : f32
    %16 = vector.broadcast %cst_12 : f32 to vector<8x96xf32>
    %17 = arith.addf %16, %15 : vector<8x96xf32>
    %18 = arith.divf %16, %17 : vector<8x96xf32>
    %19 = vector.extract_strided_slice %18 {offsets = [0, 0], sizes = [8, 32], strides = [1, 1]} : vector<8x96xf32> to vector<8x32xf32>
    %20 = vector.extract_strided_slice %18 {offsets = [0, 32], sizes = [8, 32], strides = [1, 1]} : vector<8x96xf32> to vector<8x32xf32>
    %21 = vector.extract_strided_slice %18 {offsets = [0, 64], sizes = [8, 32], strides = [1, 1]} : vector<8x96xf32> to vector<8x32xf32>
    %22 = vector.extract_strided_slice %12 {offsets = [0, 96], sizes = [8, 32], strides = [1, 1]} : vector<8x128xf32> to vector<8x32xf32>
    %23 = math.tanh %22 : vector<8x32xf32>
    %24 = arith.mulf %20, %9 : vector<8x32xf32>
    %25 = arith.mulf %19, %23 : vector<8x32xf32>
    %26 = arith.addf %24, %25 : vector<8x32xf32>
    %27 = math.tanh %26 : vector<8x32xf32>
    %28 = arith.mulf %21, %27 : vector<8x32xf32>
    %c0_13 = arith.constant 0 : index
    %c0_14 = arith.constant 0 : index
    %29 = vector.load %arg20[%c0_13, %c0_14] : memref<64x32xf32, #tpu.memory_space<vmem>>, vector<8x32xf32>
    tpu.vector_store %arg20[%c0_13, %c0_14], %28 {strides = array<i32>} : memref<64x32xf32, #tpu.memory_space<vmem>>, vector<8x32xf32>,
    %30 = vector.extract_strided_slice %7 {offsets = [8, 0], sizes = [8, 128], strides = [1, 1]} : vector<64x128xf32> to vector<8x128xf32>
    %cst_15 = arith.constant dense<0.000000e+00> : vector<8x128xf32>
    %31 = tpu.matmul %28, %3, %cst_15 {dimension_numbers = #tpu.dot_dimension_numbers<[1], [0], [0], [1], [0, 0, 1, 1], [], []>} : vector<8x32xf32>, vector<32x128xf32>, vector<8x128xf32> -> vector<8x128xf32>
    %32 = arith.addf %30, %31 : vector<8x128xf32>
    %33 = vector.extract_strided_slice %32 {offsets = [0, 0], sizes = [8, 96], strides = [1, 1]} : vector<8x128xf32> to vector<8x96xf32>
    %34 = arith.negf %33 : vector<8x96xf32>
    %35 = math.exp %34 : vector<8x96xf32>
    %cst_16 = arith.constant 1.000000e+00 : f32
    %36 = vector.broadcast %cst_16 : f32 to vector<8x96xf32>
    %37 = arith.addf %36, %35 : vector<8x96xf32>
    %38 = arith.divf %36, %37 : vector<8x96xf32>
    %39 = vector.extract_strided_slice %38 {offsets = [0, 0], sizes = [8, 32], strides = [1, 1]} : vector<8x96xf32> to vector<8x32xf32>
    %40 = vector.extract_strided_slice %38 {offsets = [0, 32], sizes = [8, 32], strides = [1, 1]} : vector<8x96xf32> to vector<8x32xf32>
    %41 = vector.extract_strided_slice %38 {offsets = [0, 64], sizes = [8, 32], strides = [1, 1]} : vector<8x96xf32> to vector<8x32xf32>
    %42 = vector.extract_strided_slice %32 {offsets = [0, 96], sizes = [8, 32], strides = [1, 1]} : vector<8x128xf32> to vector<8x32xf32>
    %43 = math.tanh %42 : vector<8x32xf32>
    %44 = arith.mulf %40, %26 : vector<8x32xf32>
    %45 = arith.mulf %39, %43 : vector<8x32xf32>
    %46 = arith.addf %44, %45 : vector<8x32xf32>
    %47 = math.tanh %46 : vector<8x32xf32>
    %48 = arith.mulf %41, %47 : vector<8x32xf32>
    %c8 = arith.constant 8 : index
    %c0_17 = arith.constant 0 : index
    %49 = vector.load %arg20[%c8, %c0_17] : memref<64x32xf32, #tpu.memory_space<vmem>>, vector<8x32xf32>
    tpu.vector_store %arg20[%c8, %c0_17], %48 {strides = array<i32>} : memref<64x32xf32, #tpu.memory_space<vmem>>, vector<8x32xf32>,
    %50 = vector.extract_strided_slice %7 {offsets = [16, 0], sizes = [8, 128], strides = [1, 1]} : vector<64x128xf32> to vector<8x128xf32>
    %cst_18 = arith.constant dense<0.000000e+00> : vector<8x128xf32>
    %51 = tpu.matmul %48, %3, %cst_18 {dimension_numbers = #tpu.dot_dimension_numbers<[1], [0], [0], [1], [0, 0, 1, 1], [], []>} : vector<8x32xf32>, vector<32x128xf32>, vector<8x128xf32> -> vector<8x128xf32>
    %52 = arith.addf %50, %51 : vector<8x128xf32>
    %53 = vector.extract_strided_slice %52 {offsets = [0, 0], sizes = [8, 96], strides = [1, 1]} : vector<8x128xf32> to vector<8x96xf32>
    %54 = arith.negf %53 : vector<8x96xf32>
    %55 = math.exp %54 : vector<8x96xf32>
    %cst_19 = arith.constant 1.000000e+00 : f32
    %56 = vector.broadcast %cst_19 : f32 to vector<8x96xf32>
    %57 = arith.addf %56, %55 : vector<8x96xf32>
    %58 = arith.divf %56, %57 : vector<8x96xf32>
    %59 = vector.extract_strided_slice %58 {offsets = [0, 0], sizes = [8, 32], strides = [1, 1]} : vector<8x96xf32> to vector<8x32xf32>
    %60 = vector.extract_strided_slice %58 {offsets = [0, 32], sizes = [8, 32], strides = [1, 1]} : vector<8x96xf32> to vector<8x32xf32>
    %61 = vector.extract_strided_slice %58 {offsets = [0, 64], sizes = [8, 32], strides = [1, 1]} : vector<8x96xf32> to vector<8x32xf32>
    %62 = vector.extract_strided_slice %52 {offsets = [0, 96], sizes = [8, 32], strides = [1, 1]} : vector<8x128xf32> to vector<8x32xf32>
    %63 = math.tanh %62 : vector<8x32xf32>
    %64 = arith.mulf %60, %46 : vector<8x32xf32>
    %65 = arith.mulf %59, %63 : vector<8x32xf32>
    %66 = arith.addf %64, %65 : vector<8x32xf32>
    %67 = math.tanh %66 : vector<8x32xf32>
    %68 = arith.mulf %61, %67 : vector<8x32xf32>
    %c16 = arith.constant 16 : index
    %c0_20 = arith.constant 0 : index
    %69 = vector.load %arg20[%c16, %c0_20] : memref<64x32xf32, #tpu.memory_space<vmem>>, vector<8x32xf32>
    tpu.vector_store %arg20[%c16, %c0_20], %68 {strides = array<i32>} : memref<64x32xf32, #tpu.memory_space<vmem>>, vector<8x32xf32>,
    %70 = vector.extract_strided_slice %7 {offsets = [24, 0], sizes = [8, 128], strides = [1, 1]} : vector<64x128xf32> to vector<8x128xf32>
    %cst_21 = arith.constant dense<0.000000e+00> : vector<8x128xf32>
    %71 = tpu.matmul %68, %3, %cst_21 {dimension_numbers = #tpu.dot_dimension_numbers<[1], [0], [0], [1], [0, 0, 1, 1], [], []>} : vector<8x32xf32>, vector<32x128xf32>, vector<8x128xf32> -> vector<8x128xf32>
    %72 = arith.addf %70, %71 : vector<8x128xf32>
    %73 = vector.extract_strided_slice %72 {offsets = [0, 0], sizes = [8, 96], strides = [1, 1]} : vector<8x128xf32> to vector<8x96xf32>
    %74 = arith.negf %73 : vector<8x96xf32>
    %75 = math.exp %74 : vector<8x96xf32>
    %cst_22 = arith.constant 1.000000e+00 : f32
    %76 = vector.broadcast %cst_22 : f32 to vector<8x96xf32>
    %77 = arith.addf %76, %75 : vector<8x96xf32>
    %78 = arith.divf %76, %77 : vector<8x96xf32>
    %79 = vector.extract_strided_slice %78 {offsets = [0, 0], sizes = [8, 32], strides = [1, 1]} : vector<8x96xf32> to vector<8x32xf32>
    %80 = vector.extract_strided_slice %78 {offsets = [0, 32], sizes = [8, 32], strides = [1, 1]} : vector<8x96xf32> to vector<8x32xf32>
    %81 = vector.extract_strided_slice %78 {offsets = [0, 64], sizes = [8, 32], strides = [1, 1]} : vector<8x96xf32> to vector<8x32xf32>
    %82 = vector.extract_strided_slice %72 {offsets = [0, 96], sizes = [8, 32], strides = [1, 1]} : vector<8x128xf32> to vector<8x32xf32>
    %83 = math.tanh %82 : vector<8x32xf32>
    %84 = arith.mulf %80, %66 : vector<8x32xf32>
    %85 = arith.mulf %79, %83 : vector<8x32xf32>
    %86 = arith.addf %84, %85 : vector<8x32xf32>
    %87 = math.tanh %86 : vector<8x32xf32>
    %88 = arith.mulf %81, %87 : vector<8x32xf32>
    %c24 = arith.constant 24 : index
    %c0_23 = arith.constant 0 : index
    %89 = vector.load %arg20[%c24, %c0_23] : memref<64x32xf32, #tpu.memory_space<vmem>>, vector<8x32xf32>
    tpu.vector_store %arg20[%c24, %c0_23], %88 {strides = array<i32>} : memref<64x32xf32, #tpu.memory_space<vmem>>, vector<8x32xf32>,
    %90 = vector.extract_strided_slice %7 {offsets = [32, 0], sizes = [8, 128], strides = [1, 1]} : vector<64x128xf32> to vector<8x128xf32>
    %cst_24 = arith.constant dense<0.000000e+00> : vector<8x128xf32>
    %91 = tpu.matmul %88, %3, %cst_24 {dimension_numbers = #tpu.dot_dimension_numbers<[1], [0], [0], [1], [0, 0, 1, 1], [], []>} : vector<8x32xf32>, vector<32x128xf32>, vector<8x128xf32> -> vector<8x128xf32>
    %92 = arith.addf %90, %91 : vector<8x128xf32>
    %93 = vector.extract_strided_slice %92 {offsets = [0, 0], sizes = [8, 96], strides = [1, 1]} : vector<8x128xf32> to vector<8x96xf32>
    %94 = arith.negf %93 : vector<8x96xf32>
    %95 = math.exp %94 : vector<8x96xf32>
    %cst_25 = arith.constant 1.000000e+00 : f32
    %96 = vector.broadcast %cst_25 : f32 to vector<8x96xf32>
    %97 = arith.addf %96, %95 : vector<8x96xf32>
    %98 = arith.divf %96, %97 : vector<8x96xf32>
    %99 = vector.extract_strided_slice %98 {offsets = [0, 0], sizes = [8, 32], strides = [1, 1]} : vector<8x96xf32> to vector<8x32xf32>
    %100 = vector.extract_strided_slice %98 {offsets = [0, 32], sizes = [8, 32], strides = [1, 1]} : vector<8x96xf32> to vector<8x32xf32>
    %101 = vector.extract_strided_slice %98 {offsets = [0, 64], sizes = [8, 32], strides = [1, 1]} : vector<8x96xf32> to vector<8x32xf32>
    %102 = vector.extract_strided_slice %92 {offsets = [0, 96], sizes = [8, 32], strides = [1, 1]} : vector<8x128xf32> to vector<8x32xf32>
    %103 = math.tanh %102 : vector<8x32xf32>
    %104 = arith.mulf %100, %86 : vector<8x32xf32>
    %105 = arith.mulf %99, %103 : vector<8x32xf32>
    %106 = arith.addf %104, %105 : vector<8x32xf32>
    %107 = math.tanh %106 : vector<8x32xf32>
    %108 = arith.mulf %101, %107 : vector<8x32xf32>
    %c32 = arith.constant 32 : index
    %c0_26 = arith.constant 0 : index
    %109 = vector.load %arg20[%c32, %c0_26] : memref<64x32xf32, #tpu.memory_space<vmem>>, vector<8x32xf32>
    tpu.vector_store %arg20[%c32, %c0_26], %108 {strides = array<i32>} : memref<64x32xf32, #tpu.memory_space<vmem>>, vector<8x32xf32>,
    %110 = vector.extract_strided_slice %7 {offsets = [40, 0], sizes = [8, 128], strides = [1, 1]} : vector<64x128xf32> to vector<8x128xf32>
    %cst_27 = arith.constant dense<0.000000e+00> : vector<8x128xf32>
    %111 = tpu.matmul %108, %3, %cst_27 {dimension_numbers = #tpu.dot_dimension_numbers<[1], [0], [0], [1], [0, 0, 1, 1], [], []>} : vector<8x32xf32>, vector<32x128xf32>, vector<8x128xf32> -> vector<8x128xf32>
    %112 = arith.addf %110, %111 : vector<8x128xf32>
    %113 = vector.extract_strided_slice %112 {offsets = [0, 0], sizes = [8, 96], strides = [1, 1]} : vector<8x128xf32> to vector<8x96xf32>
    %114 = arith.negf %113 : vector<8x96xf32>
    %115 = math.exp %114 : vector<8x96xf32>
    %cst_28 = arith.constant 1.000000e+00 : f32
    %116 = vector.broadcast %cst_28 : f32 to vector<8x96xf32>
    %117 = arith.addf %116, %115 : vector<8x96xf32>
    %118 = arith.divf %116, %117 : vector<8x96xf32>
    %119 = vector.extract_strided_slice %118 {offsets = [0, 0], sizes = [8, 32], strides = [1, 1]} : vector<8x96xf32> to vector<8x32xf32>
    %120 = vector.extract_strided_slice %118 {offsets = [0, 32], sizes = [8, 32], strides = [1, 1]} : vector<8x96xf32> to vector<8x32xf32>
    %121 = vector.extract_strided_slice %118 {offsets = [0, 64], sizes = [8, 32], strides = [1, 1]} : vector<8x96xf32> to vector<8x32xf32>
    %122 = vector.extract_strided_slice %112 {offsets = [0, 96], sizes = [8, 32], strides = [1, 1]} : vector<8x128xf32> to vector<8x32xf32>
    %123 = math.tanh %122 : vector<8x32xf32>
    %124 = arith.mulf %120, %106 : vector<8x32xf32>
    %125 = arith.mulf %119, %123 : vector<8x32xf32>
    %126 = arith.addf %124, %125 : vector<8x32xf32>
    %127 = math.tanh %126 : vector<8x32xf32>
    %128 = arith.mulf %121, %127 : vector<8x32xf32>
    %c40 = arith.constant 40 : index
    %c0_29 = arith.constant 0 : index
    %129 = vector.load %arg20[%c40, %c0_29] : memref<64x32xf32, #tpu.memory_space<vmem>>, vector<8x32xf32>
    tpu.vector_store %arg20[%c40, %c0_29], %128 {strides = array<i32>} : memref<64x32xf32, #tpu.memory_space<vmem>>, vector<8x32xf32>,
    %130 = vector.extract_strided_slice %7 {offsets = [48, 0], sizes = [8, 128], strides = [1, 1]} : vector<64x128xf32> to vector<8x128xf32>
    %cst_30 = arith.constant dense<0.000000e+00> : vector<8x128xf32>
    %131 = tpu.matmul %128, %3, %cst_30 {dimension_numbers = #tpu.dot_dimension_numbers<[1], [0], [0], [1], [0, 0, 1, 1], [], []>} : vector<8x32xf32>, vector<32x128xf32>, vector<8x128xf32> -> vector<8x128xf32>
    %132 = arith.addf %130, %131 : vector<8x128xf32>
    %133 = vector.extract_strided_slice %132 {offsets = [0, 0], sizes = [8, 96], strides = [1, 1]} : vector<8x128xf32> to vector<8x96xf32>
    %134 = arith.negf %133 : vector<8x96xf32>
    %135 = math.exp %134 : vector<8x96xf32>
    %cst_31 = arith.constant 1.000000e+00 : f32
    %136 = vector.broadcast %cst_31 : f32 to vector<8x96xf32>
    %137 = arith.addf %136, %135 : vector<8x96xf32>
    %138 = arith.divf %136, %137 : vector<8x96xf32>
    %139 = vector.extract_strided_slice %138 {offsets = [0, 0], sizes = [8, 32], strides = [1, 1]} : vector<8x96xf32> to vector<8x32xf32>
    %140 = vector.extract_strided_slice %138 {offsets = [0, 32], sizes = [8, 32], strides = [1, 1]} : vector<8x96xf32> to vector<8x32xf32>
    %141 = vector.extract_strided_slice %138 {offsets = [0, 64], sizes = [8, 32], strides = [1, 1]} : vector<8x96xf32> to vector<8x32xf32>
    %142 = vector.extract_strided_slice %132 {offsets = [0, 96], sizes = [8, 32], strides = [1, 1]} : vector<8x128xf32> to vector<8x32xf32>
    %143 = math.tanh %142 : vector<8x32xf32>
    %144 = arith.mulf %140, %126 : vector<8x32xf32>
    %145 = arith.mulf %139, %143 : vector<8x32xf32>
    %146 = arith.addf %144, %145 : vector<8x32xf32>
    %147 = math.tanh %146 : vector<8x32xf32>
    %148 = arith.mulf %141, %147 : vector<8x32xf32>
    %c48 = arith.constant 48 : index
    %c0_32 = arith.constant 0 : index
    %149 = vector.load %arg20[%c48, %c0_32] : memref<64x32xf32, #tpu.memory_space<vmem>>, vector<8x32xf32>
    tpu.vector_store %arg20[%c48, %c0_32], %148 {strides = array<i32>} : memref<64x32xf32, #tpu.memory_space<vmem>>, vector<8x32xf32>,
    %150 = vector.extract_strided_slice %7 {offsets = [56, 0], sizes = [8, 128], strides = [1, 1]} : vector<64x128xf32> to vector<8x128xf32>
    %cst_33 = arith.constant dense<0.000000e+00> : vector<8x128xf32>
    %151 = tpu.matmul %148, %3, %cst_33 {dimension_numbers = #tpu.dot_dimension_numbers<[1], [0], [0], [1], [0, 0, 1, 1], [], []>} : vector<8x32xf32>, vector<32x128xf32>, vector<8x128xf32> -> vector<8x128xf32>
    %152 = arith.addf %150, %151 : vector<8x128xf32>
    %153 = vector.extract_strided_slice %152 {offsets = [0, 0], sizes = [8, 96], strides = [1, 1]} : vector<8x128xf32> to vector<8x96xf32>
    %154 = arith.negf %153 : vector<8x96xf32>
    %155 = math.exp %154 : vector<8x96xf32>
    %cst_34 = arith.constant 1.000000e+00 : f32
    %156 = vector.broadcast %cst_34 : f32 to vector<8x96xf32>
    %157 = arith.addf %156, %155 : vector<8x96xf32>
    %158 = arith.divf %156, %157 : vector<8x96xf32>
    %159 = vector.extract_strided_slice %158 {offsets = [0, 0], sizes = [8, 32], strides = [1, 1]} : vector<8x96xf32> to vector<8x32xf32>
    %160 = vector.extract_strided_slice %158 {offsets = [0, 32], sizes = [8, 32], strides = [1, 1]} : vector<8x96xf32> to vector<8x32xf32>
    %161 = vector.extract_strided_slice %158 {offsets = [0, 64], sizes = [8, 32], strides = [1, 1]} : vector<8x96xf32> to vector<8x32xf32>
    %162 = vector.extract_strided_slice %152 {offsets = [0, 96], sizes = [8, 32], strides = [1, 1]} : vector<8x128xf32> to vector<8x32xf32>
    %163 = math.tanh %162 : vector<8x32xf32>
    %164 = arith.mulf %160, %146 : vector<8x32xf32>
    %165 = arith.mulf %159, %163 : vector<8x32xf32>
    %166 = arith.addf %164, %165 : vector<8x32xf32>
    %167 = math.tanh %166 : vector<8x32xf32>
    %168 = arith.mulf %161, %167 : vector<8x32xf32>
    %c56 = arith.constant 56 : index
    %c0_35 = arith.constant 0 : index
    %169 = vector.load %arg20[%c56, %c0_35] : memref<64x32xf32, #tpu.memory_space<vmem>>, vector<8x32xf32>
    tpu.vector_store %arg20[%c56, %c0_35], %168 {strides = array<i32>} : memref<64x32xf32, #tpu.memory_space<vmem>>, vector<8x32xf32>,
    %c0_36 = arith.constant 0 : index
    %c0_37 = arith.constant 0 : index
    %170 = vector.load %arg20[%c0_36, %c0_37] : memref<64x32xf32, #tpu.memory_space<vmem>>, vector<64x32xf32>
    %c0_38 = arith.constant 0 : index
    %c0_39 = arith.constant 0 : index
    %171 = vector.load %arg8[%c0_38, %c0_39] : memref<32x64xf32, #tpu.memory_space<vmem>>, vector<32x64xf32>
    %cst_40 = arith.constant dense<0.000000e+00> : vector<64x64xf32>
    %172 = tpu.matmul %170, %171, %cst_40 {dimension_numbers = #tpu.dot_dimension_numbers<[1], [0], [0], [1], [0, 0, 1, 1], [], []>} : vector<64x32xf32>, vector<32x64xf32>, vector<64x64xf32> -> vector<64x64xf32>
    %c0_41 = arith.constant 0 : index
    %c0_42 = arith.constant 0 : index
    %173 = vector.load %arg9[%c0_41, %c0_42] : memref<1x64xf32, #tpu.memory_space<vmem>>, vector<1x64xf32>
    %174 = vector.broadcast %173 : vector<1x64xf32> to vector<64x64xf32>
    %175 = arith.addf %172, %174 : vector<64x64xf32>
    %c0_43 = arith.constant 0 : index
    %c0_44 = arith.constant 0 : index
    %176 = vector.load %arg10[%c0_43, %c0_44] : memref<64x64xf32, #tpu.memory_space<vmem>>, vector<64x64xf32>
    %c0_45 = arith.constant 0 : index
    %c0_46 = arith.constant 0 : index
    %177 = vector.load %arg11[%c0_45, %c0_46] : memref<16x64xf32, #tpu.memory_space<vmem>>, vector<16x64xf32>
    %c0_47 = arith.constant 0 : index
    %c0_48 = arith.constant 0 : index
    %178 = vector.load %arg12[%c0_47, %c0_48] : memref<1x64xf32, #tpu.memory_space<vmem>>, vector<1x64xf32>
    %cst_49 = arith.constant dense<0.000000e+00> : vector<64x64xf32>
    %179 = tpu.matmul %175, %176, %cst_49 {dimension_numbers = #tpu.dot_dimension_numbers<[1], [0], [0], [1], [0, 0, 1, 1], [], []>} : vector<64x64xf32>, vector<64x64xf32>, vector<64x64xf32> -> vector<64x64xf32>
    %180 = vector.broadcast %178 : vector<1x64xf32> to vector<64x64xf32>
    %181 = arith.addf %179, %180 : vector<64x64xf32>
    %cst_50 = arith.constant 0.000000e+00 : f32
    %182 = vector.broadcast %cst_50 : f32 to vector<8x16xf32>
    %cst_51 = arith.constant 0.000000e+00 : f32
    %183 = vector.broadcast %cst_51 : f32 to vector<8x16xf32>
    %184 = vector.extract_strided_slice %181 {offsets = [0, 0], sizes = [8, 64], strides = [1, 1]} : vector<64x64xf32> to vector<8x64xf32>
    %cst_52 = arith.constant dense<0.000000e+00> : vector<8x64xf32>
    %185 = tpu.matmul %182, %177, %cst_52 {dimension_numbers = #tpu.dot_dimension_numbers<[1], [0], [0], [1], [0, 0, 1, 1], [], []>} : vector<8x16xf32>, vector<16x64xf32>, vector<8x64xf32> -> vector<8x64xf32>
    %186 = arith.addf %184, %185 : vector<8x64xf32>
    %187 = vector.extract_strided_slice %186 {offsets = [0, 0], sizes = [8, 48], strides = [1, 1]} : vector<8x64xf32> to vector<8x48xf32>
    %188 = arith.negf %187 : vector<8x48xf32>
    %189 = math.exp %188 : vector<8x48xf32>
    %cst_53 = arith.constant 1.000000e+00 : f32
    %190 = vector.broadcast %cst_53 : f32 to vector<8x48xf32>
    %191 = arith.addf %190, %189 : vector<8x48xf32>
    %192 = arith.divf %190, %191 : vector<8x48xf32>
    %193 = vector.extract_strided_slice %192 {offsets = [0, 0], sizes = [8, 16], strides = [1, 1]} : vector<8x48xf32> to vector<8x16xf32>
    %194 = vector.extract_strided_slice %192 {offsets = [0, 16], sizes = [8, 16], strides = [1, 1]} : vector<8x48xf32> to vector<8x16xf32>
    %195 = vector.extract_strided_slice %192 {offsets = [0, 32], sizes = [8, 16], strides = [1, 1]} : vector<8x48xf32> to vector<8x16xf32>
    %196 = vector.extract_strided_slice %186 {offsets = [0, 48], sizes = [8, 16], strides = [1, 1]} : vector<8x64xf32> to vector<8x16xf32>
    %197 = math.tanh %196 : vector<8x16xf32>
    %198 = arith.mulf %194, %183 : vector<8x16xf32>
    %199 = arith.mulf %193, %197 : vector<8x16xf32>
    %200 = arith.addf %198, %199 : vector<8x16xf32>
    %201 = math.tanh %200 : vector<8x16xf32>
    %202 = arith.mulf %195, %201 : vector<8x16xf32>
    %c0_54 = arith.constant 0 : index
    %c0_55 = arith.constant 0 : index
    %203 = vector.load %arg21[%c0_54, %c0_55] : memref<64x16xf32, #tpu.memory_space<vmem>>, vector<8x16xf32>
    tpu.vector_store %arg21[%c0_54, %c0_55], %202 {strides = array<i32>} : memref<64x16xf32, #tpu.memory_space<vmem>>, vector<8x16xf32>,
    %204 = vector.extract_strided_slice %181 {offsets = [8, 0], sizes = [8, 64], strides = [1, 1]} : vector<64x64xf32> to vector<8x64xf32>
    %cst_56 = arith.constant dense<0.000000e+00> : vector<8x64xf32>
    %205 = tpu.matmul %202, %177, %cst_56 {dimension_numbers = #tpu.dot_dimension_numbers<[1], [0], [0], [1], [0, 0, 1, 1], [], []>} : vector<8x16xf32>, vector<16x64xf32>, vector<8x64xf32> -> vector<8x64xf32>
    %206 = arith.addf %204, %205 : vector<8x64xf32>
    %207 = vector.extract_strided_slice %206 {offsets = [0, 0], sizes = [8, 48], strides = [1, 1]} : vector<8x64xf32> to vector<8x48xf32>
    %208 = arith.negf %207 : vector<8x48xf32>
    %209 = math.exp %208 : vector<8x48xf32>
    %cst_57 = arith.constant 1.000000e+00 : f32
    %210 = vector.broadcast %cst_57 : f32 to vector<8x48xf32>
    %211 = arith.addf %210, %209 : vector<8x48xf32>
    %212 = arith.divf %210, %211 : vector<8x48xf32>
    %213 = vector.extract_strided_slice %212 {offsets = [0, 0], sizes = [8, 16], strides = [1, 1]} : vector<8x48xf32> to vector<8x16xf32>
    %214 = vector.extract_strided_slice %212 {offsets = [0, 16], sizes = [8, 16], strides = [1, 1]} : vector<8x48xf32> to vector<8x16xf32>
    %215 = vector.extract_strided_slice %212 {offsets = [0, 32], sizes = [8, 16], strides = [1, 1]} : vector<8x48xf32> to vector<8x16xf32>
    %216 = vector.extract_strided_slice %206 {offsets = [0, 48], sizes = [8, 16], strides = [1, 1]} : vector<8x64xf32> to vector<8x16xf32>
    %217 = math.tanh %216 : vector<8x16xf32>
    %218 = arith.mulf %214, %200 : vector<8x16xf32>
    %219 = arith.mulf %213, %217 : vector<8x16xf32>
    %220 = arith.addf %218, %219 : vector<8x16xf32>
    %221 = math.tanh %220 : vector<8x16xf32>
    %222 = arith.mulf %215, %221 : vector<8x16xf32>
    %c8_58 = arith.constant 8 : index
    %c0_59 = arith.constant 0 : index
    %223 = vector.load %arg21[%c8_58, %c0_59] : memref<64x16xf32, #tpu.memory_space<vmem>>, vector<8x16xf32>
    tpu.vector_store %arg21[%c8_58, %c0_59], %222 {strides = array<i32>} : memref<64x16xf32, #tpu.memory_space<vmem>>, vector<8x16xf32>,
    %224 = vector.extract_strided_slice %181 {offsets = [16, 0], sizes = [8, 64], strides = [1, 1]} : vector<64x64xf32> to vector<8x64xf32>
    %cst_60 = arith.constant dense<0.000000e+00> : vector<8x64xf32>
    %225 = tpu.matmul %222, %177, %cst_60 {dimension_numbers = #tpu.dot_dimension_numbers<[1], [0], [0], [1], [0, 0, 1, 1], [], []>} : vector<8x16xf32>, vector<16x64xf32>, vector<8x64xf32> -> vector<8x64xf32>
    %226 = arith.addf %224, %225 : vector<8x64xf32>
    %227 = vector.extract_strided_slice %226 {offsets = [0, 0], sizes = [8, 48], strides = [1, 1]} : vector<8x64xf32> to vector<8x48xf32>
    %228 = arith.negf %227 : vector<8x48xf32>
    %229 = math.exp %228 : vector<8x48xf32>
    %cst_61 = arith.constant 1.000000e+00 : f32
    %230 = vector.broadcast %cst_61 : f32 to vector<8x48xf32>
    %231 = arith.addf %230, %229 : vector<8x48xf32>
    %232 = arith.divf %230, %231 : vector<8x48xf32>
    %233 = vector.extract_strided_slice %232 {offsets = [0, 0], sizes = [8, 16], strides = [1, 1]} : vector<8x48xf32> to vector<8x16xf32>
    %234 = vector.extract_strided_slice %232 {offsets = [0, 16], sizes = [8, 16], strides = [1, 1]} : vector<8x48xf32> to vector<8x16xf32>
    %235 = vector.extract_strided_slice %232 {offsets = [0, 32], sizes = [8, 16], strides = [1, 1]} : vector<8x48xf32> to vector<8x16xf32>
    %236 = vector.extract_strided_slice %226 {offsets = [0, 48], sizes = [8, 16], strides = [1, 1]} : vector<8x64xf32> to vector<8x16xf32>
    %237 = math.tanh %236 : vector<8x16xf32>
    %238 = arith.mulf %234, %220 : vector<8x16xf32>
    %239 = arith.mulf %233, %237 : vector<8x16xf32>
    %240 = arith.addf %238, %239 : vector<8x16xf32>
    %241 = math.tanh %240 : vector<8x16xf32>
    %242 = arith.mulf %235, %241 : vector<8x16xf32>
    %c16_62 = arith.constant 16 : index
    %c0_63 = arith.constant 0 : index
    %243 = vector.load %arg21[%c16_62, %c0_63] : memref<64x16xf32, #tpu.memory_space<vmem>>, vector<8x16xf32>
    tpu.vector_store %arg21[%c16_62, %c0_63], %242 {strides = array<i32>} : memref<64x16xf32, #tpu.memory_space<vmem>>, vector<8x16xf32>,
    %244 = vector.extract_strided_slice %181 {offsets = [24, 0], sizes = [8, 64], strides = [1, 1]} : vector<64x64xf32> to vector<8x64xf32>
    %cst_64 = arith.constant dense<0.000000e+00> : vector<8x64xf32>
    %245 = tpu.matmul %242, %177, %cst_64 {dimension_numbers = #tpu.dot_dimension_numbers<[1], [0], [0], [1], [0, 0, 1, 1], [], []>} : vector<8x16xf32>, vector<16x64xf32>, vector<8x64xf32> -> vector<8x64xf32>
    %246 = arith.addf %244, %245 : vector<8x64xf32>
    %247 = vector.extract_strided_slice %246 {offsets = [0, 0], sizes = [8, 48], strides = [1, 1]} : vector<8x64xf32> to vector<8x48xf32>
    %248 = arith.negf %247 : vector<8x48xf32>
    %249 = math.exp %248 : vector<8x48xf32>
    %cst_65 = arith.constant 1.000000e+00 : f32
    %250 = vector.broadcast %cst_65 : f32 to vector<8x48xf32>
    %251 = arith.addf %250, %249 : vector<8x48xf32>
    %252 = arith.divf %250, %251 : vector<8x48xf32>
    %253 = vector.extract_strided_slice %252 {offsets = [0, 0], sizes = [8, 16], strides = [1, 1]} : vector<8x48xf32> to vector<8x16xf32>
    %254 = vector.extract_strided_slice %252 {offsets = [0, 16], sizes = [8, 16], strides = [1, 1]} : vector<8x48xf32> to vector<8x16xf32>
    %255 = vector.extract_strided_slice %252 {offsets = [0, 32], sizes = [8, 16], strides = [1, 1]} : vector<8x48xf32> to vector<8x16xf32>
    %256 = vector.extract_strided_slice %246 {offsets = [0, 48], sizes = [8, 16], strides = [1, 1]} : vector<8x64xf32> to vector<8x16xf32>
    %257 = math.tanh %256 : vector<8x16xf32>
    %258 = arith.mulf %254, %240 : vector<8x16xf32>
    %259 = arith.mulf %253, %257 : vector<8x16xf32>
    %260 = arith.addf %258, %259 : vector<8x16xf32>
    %261 = math.tanh %260 : vector<8x16xf32>
    %262 = arith.mulf %255, %261 : vector<8x16xf32>
    %c24_66 = arith.constant 24 : index
    %c0_67 = arith.constant 0 : index
    %263 = vector.load %arg21[%c24_66, %c0_67] : memref<64x16xf32, #tpu.memory_space<vmem>>, vector<8x16xf32>
    tpu.vector_store %arg21[%c24_66, %c0_67], %262 {strides = array<i32>} : memref<64x16xf32, #tpu.memory_space<vmem>>, vector<8x16xf32>,
    %264 = vector.extract_strided_slice %181 {offsets = [32, 0], sizes = [8, 64], strides = [1, 1]} : vector<64x64xf32> to vector<8x64xf32>
    %cst_68 = arith.constant dense<0.000000e+00> : vector<8x64xf32>
    %265 = tpu.matmul %262, %177, %cst_68 {dimension_numbers = #tpu.dot_dimension_numbers<[1], [0], [0], [1], [0, 0, 1, 1], [], []>} : vector<8x16xf32>, vector<16x64xf32>, vector<8x64xf32> -> vector<8x64xf32>
    %266 = arith.addf %264, %265 : vector<8x64xf32>
    %267 = vector.extract_strided_slice %266 {offsets = [0, 0], sizes = [8, 48], strides = [1, 1]} : vector<8x64xf32> to vector<8x48xf32>
    %268 = arith.negf %267 : vector<8x48xf32>
    %269 = math.exp %268 : vector<8x48xf32>
    %cst_69 = arith.constant 1.000000e+00 : f32
    %270 = vector.broadcast %cst_69 : f32 to vector<8x48xf32>
    %271 = arith.addf %270, %269 : vector<8x48xf32>
    %272 = arith.divf %270, %271 : vector<8x48xf32>
    %273 = vector.extract_strided_slice %272 {offsets = [0, 0], sizes = [8, 16], strides = [1, 1]} : vector<8x48xf32> to vector<8x16xf32>
    %274 = vector.extract_strided_slice %272 {offsets = [0, 16], sizes = [8, 16], strides = [1, 1]} : vector<8x48xf32> to vector<8x16xf32>
    %275 = vector.extract_strided_slice %272 {offsets = [0, 32], sizes = [8, 16], strides = [1, 1]} : vector<8x48xf32> to vector<8x16xf32>
    %276 = vector.extract_strided_slice %266 {offsets = [0, 48], sizes = [8, 16], strides = [1, 1]} : vector<8x64xf32> to vector<8x16xf32>
    %277 = math.tanh %276 : vector<8x16xf32>
    %278 = arith.mulf %274, %260 : vector<8x16xf32>
    %279 = arith.mulf %273, %277 : vector<8x16xf32>
    %280 = arith.addf %278, %279 : vector<8x16xf32>
    %281 = math.tanh %280 : vector<8x16xf32>
    %282 = arith.mulf %275, %281 : vector<8x16xf32>
    %c32_70 = arith.constant 32 : index
    %c0_71 = arith.constant 0 : index
    %283 = vector.load %arg21[%c32_70, %c0_71] : memref<64x16xf32, #tpu.memory_space<vmem>>, vector<8x16xf32>
    tpu.vector_store %arg21[%c32_70, %c0_71], %282 {strides = array<i32>} : memref<64x16xf32, #tpu.memory_space<vmem>>, vector<8x16xf32>,
    %284 = vector.extract_strided_slice %181 {offsets = [40, 0], sizes = [8, 64], strides = [1, 1]} : vector<64x64xf32> to vector<8x64xf32>
    %cst_72 = arith.constant dense<0.000000e+00> : vector<8x64xf32>
    %285 = tpu.matmul %282, %177, %cst_72 {dimension_numbers = #tpu.dot_dimension_numbers<[1], [0], [0], [1], [0, 0, 1, 1], [], []>} : vector<8x16xf32>, vector<16x64xf32>, vector<8x64xf32> -> vector<8x64xf32>
    %286 = arith.addf %284, %285 : vector<8x64xf32>
    %287 = vector.extract_strided_slice %286 {offsets = [0, 0], sizes = [8, 48], strides = [1, 1]} : vector<8x64xf32> to vector<8x48xf32>
    %288 = arith.negf %287 : vector<8x48xf32>
    %289 = math.exp %288 : vector<8x48xf32>
    %cst_73 = arith.constant 1.000000e+00 : f32
    %290 = vector.broadcast %cst_73 : f32 to vector<8x48xf32>
    %291 = arith.addf %290, %289 : vector<8x48xf32>
    %292 = arith.divf %290, %291 : vector<8x48xf32>
    %293 = vector.extract_strided_slice %292 {offsets = [0, 0], sizes = [8, 16], strides = [1, 1]} : vector<8x48xf32> to vector<8x16xf32>
    %294 = vector.extract_strided_slice %292 {offsets = [0, 16], sizes = [8, 16], strides = [1, 1]} : vector<8x48xf32> to vector<8x16xf32>
    %295 = vector.extract_strided_slice %292 {offsets = [0, 32], sizes = [8, 16], strides = [1, 1]} : vector<8x48xf32> to vector<8x16xf32>
    %296 = vector.extract_strided_slice %286 {offsets = [0, 48], sizes = [8, 16], strides = [1, 1]} : vector<8x64xf32> to vector<8x16xf32>
    %297 = math.tanh %296 : vector<8x16xf32>
    %298 = arith.mulf %294, %280 : vector<8x16xf32>
    %299 = arith.mulf %293, %297 : vector<8x16xf32>
    %300 = arith.addf %298, %299 : vector<8x16xf32>
    %301 = math.tanh %300 : vector<8x16xf32>
    %302 = arith.mulf %295, %301 : vector<8x16xf32>
    %c40_74 = arith.constant 40 : index
    %c0_75 = arith.constant 0 : index
    %303 = vector.load %arg21[%c40_74, %c0_75] : memref<64x16xf32, #tpu.memory_space<vmem>>, vector<8x16xf32>
    tpu.vector_store %arg21[%c40_74, %c0_75], %302 {strides = array<i32>} : memref<64x16xf32, #tpu.memory_space<vmem>>, vector<8x16xf32>,
    %304 = vector.extract_strided_slice %181 {offsets = [48, 0], sizes = [8, 64], strides = [1, 1]} : vector<64x64xf32> to vector<8x64xf32>
    %cst_76 = arith.constant dense<0.000000e+00> : vector<8x64xf32>
    %305 = tpu.matmul %302, %177, %cst_76 {dimension_numbers = #tpu.dot_dimension_numbers<[1], [0], [0], [1], [0, 0, 1, 1], [], []>} : vector<8x16xf32>, vector<16x64xf32>, vector<8x64xf32> -> vector<8x64xf32>
    %306 = arith.addf %304, %305 : vector<8x64xf32>
    %307 = vector.extract_strided_slice %306 {offsets = [0, 0], sizes = [8, 48], strides = [1, 1]} : vector<8x64xf32> to vector<8x48xf32>
    %308 = arith.negf %307 : vector<8x48xf32>
    %309 = math.exp %308 : vector<8x48xf32>
    %cst_77 = arith.constant 1.000000e+00 : f32
    %310 = vector.broadcast %cst_77 : f32 to vector<8x48xf32>
    %311 = arith.addf %310, %309 : vector<8x48xf32>
    %312 = arith.divf %310, %311 : vector<8x48xf32>
    %313 = vector.extract_strided_slice %312 {offsets = [0, 0], sizes = [8, 16], strides = [1, 1]} : vector<8x48xf32> to vector<8x16xf32>
    %314 = vector.extract_strided_slice %312 {offsets = [0, 16], sizes = [8, 16], strides = [1, 1]} : vector<8x48xf32> to vector<8x16xf32>
    %315 = vector.extract_strided_slice %312 {offsets = [0, 32], sizes = [8, 16], strides = [1, 1]} : vector<8x48xf32> to vector<8x16xf32>
    %316 = vector.extract_strided_slice %306 {offsets = [0, 48], sizes = [8, 16], strides = [1, 1]} : vector<8x64xf32> to vector<8x16xf32>
    %317 = math.tanh %316 : vector<8x16xf32>
    %318 = arith.mulf %314, %300 : vector<8x16xf32>
    %319 = arith.mulf %313, %317 : vector<8x16xf32>
    %320 = arith.addf %318, %319 : vector<8x16xf32>
    %321 = math.tanh %320 : vector<8x16xf32>
    %322 = arith.mulf %315, %321 : vector<8x16xf32>
    %c48_78 = arith.constant 48 : index
    %c0_79 = arith.constant 0 : index
    %323 = vector.load %arg21[%c48_78, %c0_79] : memref<64x16xf32, #tpu.memory_space<vmem>>, vector<8x16xf32>
    tpu.vector_store %arg21[%c48_78, %c0_79], %322 {strides = array<i32>} : memref<64x16xf32, #tpu.memory_space<vmem>>, vector<8x16xf32>,
    %324 = vector.extract_strided_slice %181 {offsets = [56, 0], sizes = [8, 64], strides = [1, 1]} : vector<64x64xf32> to vector<8x64xf32>
    %cst_80 = arith.constant dense<0.000000e+00> : vector<8x64xf32>
    %325 = tpu.matmul %322, %177, %cst_80 {dimension_numbers = #tpu.dot_dimension_numbers<[1], [0], [0], [1], [0, 0, 1, 1], [], []>} : vector<8x16xf32>, vector<16x64xf32>, vector<8x64xf32> -> vector<8x64xf32>
    %326 = arith.addf %324, %325 : vector<8x64xf32>
    %327 = vector.extract_strided_slice %326 {offsets = [0, 0], sizes = [8, 48], strides = [1, 1]} : vector<8x64xf32> to vector<8x48xf32>
    %328 = arith.negf %327 : vector<8x48xf32>
    %329 = math.exp %328 : vector<8x48xf32>
    %cst_81 = arith.constant 1.000000e+00 : f32
    %330 = vector.broadcast %cst_81 : f32 to vector<8x48xf32>
    %331 = arith.addf %330, %329 : vector<8x48xf32>
    %332 = arith.divf %330, %331 : vector<8x48xf32>
    %333 = vector.extract_strided_slice %332 {offsets = [0, 0], sizes = [8, 16], strides = [1, 1]} : vector<8x48xf32> to vector<8x16xf32>
    %334 = vector.extract_strided_slice %332 {offsets = [0, 16], sizes = [8, 16], strides = [1, 1]} : vector<8x48xf32> to vector<8x16xf32>
    %335 = vector.extract_strided_slice %332 {offsets = [0, 32], sizes = [8, 16], strides = [1, 1]} : vector<8x48xf32> to vector<8x16xf32>
    %336 = vector.extract_strided_slice %326 {offsets = [0, 48], sizes = [8, 16], strides = [1, 1]} : vector<8x64xf32> to vector<8x16xf32>
    %337 = math.tanh %336 : vector<8x16xf32>
    %338 = arith.mulf %334, %320 : vector<8x16xf32>
    %339 = arith.mulf %333, %337 : vector<8x16xf32>
    %340 = arith.addf %338, %339 : vector<8x16xf32>
    %341 = math.tanh %340 : vector<8x16xf32>
    %342 = arith.mulf %335, %341 : vector<8x16xf32>
    %c56_82 = arith.constant 56 : index
    %c0_83 = arith.constant 0 : index
    %343 = vector.load %arg21[%c56_82, %c0_83] : memref<64x16xf32, #tpu.memory_space<vmem>>, vector<8x16xf32>
    tpu.vector_store %arg21[%c56_82, %c0_83], %342 {strides = array<i32>} : memref<64x16xf32, #tpu.memory_space<vmem>>, vector<8x16xf32>,
    %c0_84 = arith.constant 0 : index
    %c0_85 = arith.constant 0 : index
    %344 = vector.load %arg21[%c0_84, %c0_85] : memref<64x16xf32, #tpu.memory_space<vmem>>, vector<64x16xf32>
    %345 = vector.extract_strided_slice %344 {offsets = [0, 0], sizes = [64, 8], strides = [1, 1]} : vector<64x16xf32> to vector<64x8xf32>
    %346 = vector.extract_strided_slice %344 {offsets = [0, 8], sizes = [64, 8], strides = [1, 1]} : vector<64x16xf32> to vector<64x8xf32>
    %cst_86 = arith.constant 5.000000e-01 : f32
    %347 = vector.broadcast %cst_86 : f32 to vector<64x8xf32>
    %348 = arith.mulf %347, %346 : vector<64x8xf32>
    %349 = math.exp %348 : vector<64x8xf32>
    %c0_87 = arith.constant 0 : index
    %c0_88 = arith.constant 0 : index
    %350 = vector.load %arg2[%c0_87, %c0_88] : memref<64x8xf32, #tpu.memory_space<vmem>>, vector<64x8xf32>
    %351 = arith.mulf %350, %349 : vector<64x8xf32>
    %352 = arith.addf %351, %345 : vector<64x8xf32>
    %cst_89 = arith.constant -1.000000e+00 : f32
    %353 = vector.broadcast %cst_89 : f32 to vector<64x8xf32>
    %354 = arith.subf %353, %346 : vector<64x8xf32>
    %355 = arith.mulf %345, %345 : vector<64x8xf32>
    %356 = arith.addf %354, %355 : vector<64x8xf32>
    %357 = arith.mulf %349, %349 : vector<64x8xf32>
    %358 = arith.addf %356, %357 : vector<64x8xf32>
    %359 = vector.broadcast %1 : vector<64x1xf32> to vector<64x8xf32>
    %360 = arith.mulf %359, %358 : vector<64x8xf32>
    %361 = vector.shape_cast %360 : vector<64x8xf32> to vector<1x64x8xf32>
    %cst_90 = arith.constant dense<0.000000e+00> : vector<1xf32>
    %362 = vector.multi_reduction <add>, %361, %cst_90 [1, 2] : vector<1x64x8xf32> to vector<1xf32>
    %363 = vector.shape_cast %362 : vector<1xf32> to vector<1x1x1xf32>
    %364 = vector.extract %363[0, 0, 0] : f32 from vector<1x1x1xf32>
    %cst_91 = arith.constant 5.000000e-01 : f32
    %365 = arith.mulf %cst_91, %364 : f32
    %cst_92 = arith.constant 2.000000e+00 : f32
    %366 = arith.divf %365, %cst_92 : f32
    %c0_93 = arith.constant 0 : index
    %c0_94 = arith.constant 0 : index
    %367 = vector.load %arg13[%c0_93, %c0_94] : memref<8x256xf32, #tpu.memory_space<vmem>>, vector<8x256xf32>
    %c0_95 = arith.constant 0 : index
    %c0_96 = arith.constant 0 : index
    %368 = vector.load %arg14[%c0_95, %c0_96] : memref<64x256xf32, #tpu.memory_space<vmem>>, vector<64x256xf32>
    %c0_97 = arith.constant 0 : index
    %c0_98 = arith.constant 0 : index
    %369 = vector.load %arg15[%c0_97, %c0_98] : memref<1x256xf32, #tpu.memory_space<vmem>>, vector<1x256xf32>
    %cst_99 = arith.constant dense<0.000000e+00> : vector<64x256xf32>
    %370 = tpu.matmul %352, %367, %cst_99 {dimension_numbers = #tpu.dot_dimension_numbers<[1], [0], [0], [1], [0, 0, 1, 1], [], []>} : vector<64x8xf32>, vector<8x256xf32>, vector<64x256xf32> -> vector<64x256xf32>
    %371 = vector.broadcast %369 : vector<1x256xf32> to vector<64x256xf32>
    %372 = arith.addf %370, %371 : vector<64x256xf32>
    %cst_100 = arith.constant 0.000000e+00 : f32
    %373 = vector.broadcast %cst_100 : f32 to vector<8x64xf32>
    %cst_101 = arith.constant 0.000000e+00 : f32
    %374 = vector.broadcast %cst_101 : f32 to vector<8x64xf32>
    %375 = vector.extract_strided_slice %372 {offsets = [0, 0], sizes = [8, 256], strides = [1, 1]} : vector<64x256xf32> to vector<8x256xf32>
    %cst_102 = arith.constant dense<0.000000e+00> : vector<8x256xf32>
    %376 = tpu.matmul %373, %368, %cst_102 {dimension_numbers = #tpu.dot_dimension_numbers<[1], [0], [0], [1], [0, 0, 1, 1], [], []>} : vector<8x64xf32>, vector<64x256xf32>, vector<8x256xf32> -> vector<8x256xf32>
    %377 = arith.addf %375, %376 : vector<8x256xf32>
    %378 = vector.extract_strided_slice %377 {offsets = [0, 0], sizes = [8, 192], strides = [1, 1]} : vector<8x256xf32> to vector<8x192xf32>
    %379 = arith.negf %378 : vector<8x192xf32>
    %380 = math.exp %379 : vector<8x192xf32>
    %cst_103 = arith.constant 1.000000e+00 : f32
    %381 = vector.broadcast %cst_103 : f32 to vector<8x192xf32>
    %382 = arith.addf %381, %380 : vector<8x192xf32>
    %383 = arith.divf %381, %382 : vector<8x192xf32>
    %384 = vector.extract_strided_slice %383 {offsets = [0, 0], sizes = [8, 64], strides = [1, 1]} : vector<8x192xf32> to vector<8x64xf32>
    %385 = vector.extract_strided_slice %383 {offsets = [0, 64], sizes = [8, 64], strides = [1, 1]} : vector<8x192xf32> to vector<8x64xf32>
    %386 = vector.extract_strided_slice %383 {offsets = [0, 128], sizes = [8, 64], strides = [1, 1]} : vector<8x192xf32> to vector<8x64xf32>
    %387 = vector.extract_strided_slice %377 {offsets = [0, 192], sizes = [8, 64], strides = [1, 1]} : vector<8x256xf32> to vector<8x64xf32>
    %388 = math.tanh %387 : vector<8x64xf32>
    %389 = arith.mulf %385, %374 : vector<8x64xf32>
    %390 = arith.mulf %384, %388 : vector<8x64xf32>
    %391 = arith.addf %389, %390 : vector<8x64xf32>
    %392 = math.tanh %391 : vector<8x64xf32>
    %393 = arith.mulf %386, %392 : vector<8x64xf32>
    %c0_104 = arith.constant 0 : index
    %c0_105 = arith.constant 0 : index
    %394 = vector.load %arg22[%c0_104, %c0_105] : memref<64x64xf32, #tpu.memory_space<vmem>>, vector<8x64xf32>
    tpu.vector_store %arg22[%c0_104, %c0_105], %393 {strides = array<i32>} : memref<64x64xf32, #tpu.memory_space<vmem>>, vector<8x64xf32>,
    %395 = vector.extract_strided_slice %372 {offsets = [8, 0], sizes = [8, 256], strides = [1, 1]} : vector<64x256xf32> to vector<8x256xf32>
    %cst_106 = arith.constant dense<0.000000e+00> : vector<8x256xf32>
    %396 = tpu.matmul %393, %368, %cst_106 {dimension_numbers = #tpu.dot_dimension_numbers<[1], [0], [0], [1], [0, 0, 1, 1], [], []>} : vector<8x64xf32>, vector<64x256xf32>, vector<8x256xf32> -> vector<8x256xf32>
    %397 = arith.addf %395, %396 : vector<8x256xf32>
    %398 = vector.extract_strided_slice %397 {offsets = [0, 0], sizes = [8, 192], strides = [1, 1]} : vector<8x256xf32> to vector<8x192xf32>
    %399 = arith.negf %398 : vector<8x192xf32>
    %400 = math.exp %399 : vector<8x192xf32>
    %cst_107 = arith.constant 1.000000e+00 : f32
    %401 = vector.broadcast %cst_107 : f32 to vector<8x192xf32>
    %402 = arith.addf %401, %400 : vector<8x192xf32>
    %403 = arith.divf %401, %402 : vector<8x192xf32>
    %404 = vector.extract_strided_slice %403 {offsets = [0, 0], sizes = [8, 64], strides = [1, 1]} : vector<8x192xf32> to vector<8x64xf32>
    %405 = vector.extract_strided_slice %403 {offsets = [0, 64], sizes = [8, 64], strides = [1, 1]} : vector<8x192xf32> to vector<8x64xf32>
    %406 = vector.extract_strided_slice %403 {offsets = [0, 128], sizes = [8, 64], strides = [1, 1]} : vector<8x192xf32> to vector<8x64xf32>
    %407 = vector.extract_strided_slice %397 {offsets = [0, 192], sizes = [8, 64], strides = [1, 1]} : vector<8x256xf32> to vector<8x64xf32>
    %408 = math.tanh %407 : vector<8x64xf32>
    %409 = arith.mulf %405, %391 : vector<8x64xf32>
    %410 = arith.mulf %404, %408 : vector<8x64xf32>
    %411 = arith.addf %409, %410 : vector<8x64xf32>
    %412 = math.tanh %411 : vector<8x64xf32>
    %413 = arith.mulf %406, %412 : vector<8x64xf32>
    %c8_108 = arith.constant 8 : index
    %c0_109 = arith.constant 0 : index
    %414 = vector.load %arg22[%c8_108, %c0_109] : memref<64x64xf32, #tpu.memory_space<vmem>>, vector<8x64xf32>
    tpu.vector_store %arg22[%c8_108, %c0_109], %413 {strides = array<i32>} : memref<64x64xf32, #tpu.memory_space<vmem>>, vector<8x64xf32>,
    %415 = vector.extract_strided_slice %372 {offsets = [16, 0], sizes = [8, 256], strides = [1, 1]} : vector<64x256xf32> to vector<8x256xf32>
    %cst_110 = arith.constant dense<0.000000e+00> : vector<8x256xf32>
    %416 = tpu.matmul %413, %368, %cst_110 {dimension_numbers = #tpu.dot_dimension_numbers<[1], [0], [0], [1], [0, 0, 1, 1], [], []>} : vector<8x64xf32>, vector<64x256xf32>, vector<8x256xf32> -> vector<8x256xf32>
    %417 = arith.addf %415, %416 : vector<8x256xf32>
    %418 = vector.extract_strided_slice %417 {offsets = [0, 0], sizes = [8, 192], strides = [1, 1]} : vector<8x256xf32> to vector<8x192xf32>
    %419 = arith.negf %418 : vector<8x192xf32>
    %420 = math.exp %419 : vector<8x192xf32>
    %cst_111 = arith.constant 1.000000e+00 : f32
    %421 = vector.broadcast %cst_111 : f32 to vector<8x192xf32>
    %422 = arith.addf %421, %420 : vector<8x192xf32>
    %423 = arith.divf %421, %422 : vector<8x192xf32>
    %424 = vector.extract_strided_slice %423 {offsets = [0, 0], sizes = [8, 64], strides = [1, 1]} : vector<8x192xf32> to vector<8x64xf32>
    %425 = vector.extract_strided_slice %423 {offsets = [0, 64], sizes = [8, 64], strides = [1, 1]} : vector<8x192xf32> to vector<8x64xf32>
    %426 = vector.extract_strided_slice %423 {offsets = [0, 128], sizes = [8, 64], strides = [1, 1]} : vector<8x192xf32> to vector<8x64xf32>
    %427 = vector.extract_strided_slice %417 {offsets = [0, 192], sizes = [8, 64], strides = [1, 1]} : vector<8x256xf32> to vector<8x64xf32>
    %428 = math.tanh %427 : vector<8x64xf32>
    %429 = arith.mulf %425, %411 : vector<8x64xf32>
    %430 = arith.mulf %424, %428 : vector<8x64xf32>
    %431 = arith.addf %429, %430 : vector<8x64xf32>
    %432 = math.tanh %431 : vector<8x64xf32>
    %433 = arith.mulf %426, %432 : vector<8x64xf32>
    %c16_112 = arith.constant 16 : index
    %c0_113 = arith.constant 0 : index
    %434 = vector.load %arg22[%c16_112, %c0_113] : memref<64x64xf32, #tpu.memory_space<vmem>>, vector<8x64xf32>
    tpu.vector_store %arg22[%c16_112, %c0_113], %433 {strides = array<i32>} : memref<64x64xf32, #tpu.memory_space<vmem>>, vector<8x64xf32>,
    %435 = vector.extract_strided_slice %372 {offsets = [24, 0], sizes = [8, 256], strides = [1, 1]} : vector<64x256xf32> to vector<8x256xf32>
    %cst_114 = arith.constant dense<0.000000e+00> : vector<8x256xf32>
    %436 = tpu.matmul %433, %368, %cst_114 {dimension_numbers = #tpu.dot_dimension_numbers<[1], [0], [0], [1], [0, 0, 1, 1], [], []>} : vector<8x64xf32>, vector<64x256xf32>, vector<8x256xf32> -> vector<8x256xf32>
    %437 = arith.addf %435, %436 : vector<8x256xf32>
    %438 = vector.extract_strided_slice %437 {offsets = [0, 0], sizes = [8, 192], strides = [1, 1]} : vector<8x256xf32> to vector<8x192xf32>
    %439 = arith.negf %438 : vector<8x192xf32>
    %440 = math.exp %439 : vector<8x192xf32>
    %cst_115 = arith.constant 1.000000e+00 : f32
    %441 = vector.broadcast %cst_115 : f32 to vector<8x192xf32>
    %442 = arith.addf %441, %440 : vector<8x192xf32>
    %443 = arith.divf %441, %442 : vector<8x192xf32>
    %444 = vector.extract_strided_slice %443 {offsets = [0, 0], sizes = [8, 64], strides = [1, 1]} : vector<8x192xf32> to vector<8x64xf32>
    %445 = vector.extract_strided_slice %443 {offsets = [0, 64], sizes = [8, 64], strides = [1, 1]} : vector<8x192xf32> to vector<8x64xf32>
    %446 = vector.extract_strided_slice %443 {offsets = [0, 128], sizes = [8, 64], strides = [1, 1]} : vector<8x192xf32> to vector<8x64xf32>
    %447 = vector.extract_strided_slice %437 {offsets = [0, 192], sizes = [8, 64], strides = [1, 1]} : vector<8x256xf32> to vector<8x64xf32>
    %448 = math.tanh %447 : vector<8x64xf32>
    %449 = arith.mulf %445, %431 : vector<8x64xf32>
    %450 = arith.mulf %444, %448 : vector<8x64xf32>
    %451 = arith.addf %449, %450 : vector<8x64xf32>
    %452 = math.tanh %451 : vector<8x64xf32>
    %453 = arith.mulf %446, %452 : vector<8x64xf32>
    %c24_116 = arith.constant 24 : index
    %c0_117 = arith.constant 0 : index
    %454 = vector.load %arg22[%c24_116, %c0_117] : memref<64x64xf32, #tpu.memory_space<vmem>>, vector<8x64xf32>
    tpu.vector_store %arg22[%c24_116, %c0_117], %453 {strides = array<i32>} : memref<64x64xf32, #tpu.memory_space<vmem>>, vector<8x64xf32>,
    %455 = vector.extract_strided_slice %372 {offsets = [32, 0], sizes = [8, 256], strides = [1, 1]} : vector<64x256xf32> to vector<8x256xf32>
    %cst_118 = arith.constant dense<0.000000e+00> : vector<8x256xf32>
    %456 = tpu.matmul %453, %368, %cst_118 {dimension_numbers = #tpu.dot_dimension_numbers<[1], [0], [0], [1], [0, 0, 1, 1], [], []>} : vector<8x64xf32>, vector<64x256xf32>, vector<8x256xf32> -> vector<8x256xf32>
    %457 = arith.addf %455, %456 : vector<8x256xf32>
    %458 = vector.extract_strided_slice %457 {offsets = [0, 0], sizes = [8, 192], strides = [1, 1]} : vector<8x256xf32> to vector<8x192xf32>
    %459 = arith.negf %458 : vector<8x192xf32>
    %460 = math.exp %459 : vector<8x192xf32>
    %cst_119 = arith.constant 1.000000e+00 : f32
    %461 = vector.broadcast %cst_119 : f32 to vector<8x192xf32>
    %462 = arith.addf %461, %460 : vector<8x192xf32>
    %463 = arith.divf %461, %462 : vector<8x192xf32>
    %464 = vector.extract_strided_slice %463 {offsets = [0, 0], sizes = [8, 64], strides = [1, 1]} : vector<8x192xf32> to vector<8x64xf32>
    %465 = vector.extract_strided_slice %463 {offsets = [0, 64], sizes = [8, 64], strides = [1, 1]} : vector<8x192xf32> to vector<8x64xf32>
    %466 = vector.extract_strided_slice %463 {offsets = [0, 128], sizes = [8, 64], strides = [1, 1]} : vector<8x192xf32> to vector<8x64xf32>
    %467 = vector.extract_strided_slice %457 {offsets = [0, 192], sizes = [8, 64], strides = [1, 1]} : vector<8x256xf32> to vector<8x64xf32>
    %468 = math.tanh %467 : vector<8x64xf32>
    %469 = arith.mulf %465, %451 : vector<8x64xf32>
    %470 = arith.mulf %464, %468 : vector<8x64xf32>
    %471 = arith.addf %469, %470 : vector<8x64xf32>
    %472 = math.tanh %471 : vector<8x64xf32>
    %473 = arith.mulf %466, %472 : vector<8x64xf32>
    %c32_120 = arith.constant 32 : index
    %c0_121 = arith.constant 0 : index
    %474 = vector.load %arg22[%c32_120, %c0_121] : memref<64x64xf32, #tpu.memory_space<vmem>>, vector<8x64xf32>
    tpu.vector_store %arg22[%c32_120, %c0_121], %473 {strides = array<i32>} : memref<64x64xf32, #tpu.memory_space<vmem>>, vector<8x64xf32>,
    %475 = vector.extract_strided_slice %372 {offsets = [40, 0], sizes = [8, 256], strides = [1, 1]} : vector<64x256xf32> to vector<8x256xf32>
    %cst_122 = arith.constant dense<0.000000e+00> : vector<8x256xf32>
    %476 = tpu.matmul %473, %368, %cst_122 {dimension_numbers = #tpu.dot_dimension_numbers<[1], [0], [0], [1], [0, 0, 1, 1], [], []>} : vector<8x64xf32>, vector<64x256xf32>, vector<8x256xf32> -> vector<8x256xf32>
    %477 = arith.addf %475, %476 : vector<8x256xf32>
    %478 = vector.extract_strided_slice %477 {offsets = [0, 0], sizes = [8, 192], strides = [1, 1]} : vector<8x256xf32> to vector<8x192xf32>
    %479 = arith.negf %478 : vector<8x192xf32>
    %480 = math.exp %479 : vector<8x192xf32>
    %cst_123 = arith.constant 1.000000e+00 : f32
    %481 = vector.broadcast %cst_123 : f32 to vector<8x192xf32>
    %482 = arith.addf %481, %480 : vector<8x192xf32>
    %483 = arith.divf %481, %482 : vector<8x192xf32>
    %484 = vector.extract_strided_slice %483 {offsets = [0, 0], sizes = [8, 64], strides = [1, 1]} : vector<8x192xf32> to vector<8x64xf32>
    %485 = vector.extract_strided_slice %483 {offsets = [0, 64], sizes = [8, 64], strides = [1, 1]} : vector<8x192xf32> to vector<8x64xf32>
    %486 = vector.extract_strided_slice %483 {offsets = [0, 128], sizes = [8, 64], strides = [1, 1]} : vector<8x192xf32> to vector<8x64xf32>
    %487 = vector.extract_strided_slice %477 {offsets = [0, 192], sizes = [8, 64], strides = [1, 1]} : vector<8x256xf32> to vector<8x64xf32>
    %488 = math.tanh %487 : vector<8x64xf32>
    %489 = arith.mulf %485, %471 : vector<8x64xf32>
    %490 = arith.mulf %484, %488 : vector<8x64xf32>
    %491 = arith.addf %489, %490 : vector<8x64xf32>
    %492 = math.tanh %491 : vector<8x64xf32>
    %493 = arith.mulf %486, %492 : vector<8x64xf32>
    %c40_124 = arith.constant 40 : index
    %c0_125 = arith.constant 0 : index
    %494 = vector.load %arg22[%c40_124, %c0_125] : memref<64x64xf32, #tpu.memory_space<vmem>>, vector<8x64xf32>
    tpu.vector_store %arg22[%c40_124, %c0_125], %493 {strides = array<i32>} : memref<64x64xf32, #tpu.memory_space<vmem>>, vector<8x64xf32>,
    %495 = vector.extract_strided_slice %372 {offsets = [48, 0], sizes = [8, 256], strides = [1, 1]} : vector<64x256xf32> to vector<8x256xf32>
    %cst_126 = arith.constant dense<0.000000e+00> : vector<8x256xf32>
    %496 = tpu.matmul %493, %368, %cst_126 {dimension_numbers = #tpu.dot_dimension_numbers<[1], [0], [0], [1], [0, 0, 1, 1], [], []>} : vector<8x64xf32>, vector<64x256xf32>, vector<8x256xf32> -> vector<8x256xf32>
    %497 = arith.addf %495, %496 : vector<8x256xf32>
    %498 = vector.extract_strided_slice %497 {offsets = [0, 0], sizes = [8, 192], strides = [1, 1]} : vector<8x256xf32> to vector<8x192xf32>
    %499 = arith.negf %498 : vector<8x192xf32>
    %500 = math.exp %499 : vector<8x192xf32>
    %cst_127 = arith.constant 1.000000e+00 : f32
    %501 = vector.broadcast %cst_127 : f32 to vector<8x192xf32>
    %502 = arith.addf %501, %500 : vector<8x192xf32>
    %503 = arith.divf %501, %502 : vector<8x192xf32>
    %504 = vector.extract_strided_slice %503 {offsets = [0, 0], sizes = [8, 64], strides = [1, 1]} : vector<8x192xf32> to vector<8x64xf32>
    %505 = vector.extract_strided_slice %503 {offsets = [0, 64], sizes = [8, 64], strides = [1, 1]} : vector<8x192xf32> to vector<8x64xf32>
    %506 = vector.extract_strided_slice %503 {offsets = [0, 128], sizes = [8, 64], strides = [1, 1]} : vector<8x192xf32> to vector<8x64xf32>
    %507 = vector.extract_strided_slice %497 {offsets = [0, 192], sizes = [8, 64], strides = [1, 1]} : vector<8x256xf32> to vector<8x64xf32>
    %508 = math.tanh %507 : vector<8x64xf32>
    %509 = arith.mulf %505, %491 : vector<8x64xf32>
    %510 = arith.mulf %504, %508 : vector<8x64xf32>
    %511 = arith.addf %509, %510 : vector<8x64xf32>
    %512 = math.tanh %511 : vector<8x64xf32>
    %513 = arith.mulf %506, %512 : vector<8x64xf32>
    %c48_128 = arith.constant 48 : index
    %c0_129 = arith.constant 0 : index
    %514 = vector.load %arg22[%c48_128, %c0_129] : memref<64x64xf32, #tpu.memory_space<vmem>>, vector<8x64xf32>
    tpu.vector_store %arg22[%c48_128, %c0_129], %513 {strides = array<i32>} : memref<64x64xf32, #tpu.memory_space<vmem>>, vector<8x64xf32>,
    %515 = vector.extract_strided_slice %372 {offsets = [56, 0], sizes = [8, 256], strides = [1, 1]} : vector<64x256xf32> to vector<8x256xf32>
    %cst_130 = arith.constant dense<0.000000e+00> : vector<8x256xf32>
    %516 = tpu.matmul %513, %368, %cst_130 {dimension_numbers = #tpu.dot_dimension_numbers<[1], [0], [0], [1], [0, 0, 1, 1], [], []>} : vector<8x64xf32>, vector<64x256xf32>, vector<8x256xf32> -> vector<8x256xf32>
    %517 = arith.addf %515, %516 : vector<8x256xf32>
    %518 = vector.extract_strided_slice %517 {offsets = [0, 0], sizes = [8, 192], strides = [1, 1]} : vector<8x256xf32> to vector<8x192xf32>
    %519 = arith.negf %518 : vector<8x192xf32>
    %520 = math.exp %519 : vector<8x192xf32>
    %cst_131 = arith.constant 1.000000e+00 : f32
    %521 = vector.broadcast %cst_131 : f32 to vector<8x192xf32>
    %522 = arith.addf %521, %520 : vector<8x192xf32>
    %523 = arith.divf %521, %522 : vector<8x192xf32>
    %524 = vector.extract_strided_slice %523 {offsets = [0, 0], sizes = [8, 64], strides = [1, 1]} : vector<8x192xf32> to vector<8x64xf32>
    %525 = vector.extract_strided_slice %523 {offsets = [0, 64], sizes = [8, 64], strides = [1, 1]} : vector<8x192xf32> to vector<8x64xf32>
    %526 = vector.extract_strided_slice %523 {offsets = [0, 128], sizes = [8, 64], strides = [1, 1]} : vector<8x192xf32> to vector<8x64xf32>
    %527 = vector.extract_strided_slice %517 {offsets = [0, 192], sizes = [8, 64], strides = [1, 1]} : vector<8x256xf32> to vector<8x64xf32>
    %528 = math.tanh %527 : vector<8x64xf32>
    %529 = arith.mulf %525, %511 : vector<8x64xf32>
    %530 = arith.mulf %524, %528 : vector<8x64xf32>
    %531 = arith.addf %529, %530 : vector<8x64xf32>
    %532 = math.tanh %531 : vector<8x64xf32>
    %533 = arith.mulf %526, %532 : vector<8x64xf32>
    %c56_132 = arith.constant 56 : index
    %c0_133 = arith.constant 0 : index
    %534 = vector.load %arg22[%c56_132, %c0_133] : memref<64x64xf32, #tpu.memory_space<vmem>>, vector<8x64xf32>
    tpu.vector_store %arg22[%c56_132, %c0_133], %533 {strides = array<i32>} : memref<64x64xf32, #tpu.memory_space<vmem>>, vector<8x64xf32>,
    %c0_134 = arith.constant 0 : index
    %c0_135 = arith.constant 0 : index
    %535 = vector.load %arg22[%c0_134, %c0_135] : memref<64x64xf32, #tpu.memory_space<vmem>>, vector<64x64xf32>
    %c0_136 = arith.constant 0 : index
    %c0_137 = arith.constant 0 : index
    %536 = vector.load %arg16[%c0_136, %c0_137] : memref<64x32xf32, #tpu.memory_space<vmem>>, vector<64x32xf32>
    %cst_138 = arith.constant dense<0.000000e+00> : vector<64x32xf32>
    %537 = tpu.matmul %535, %536, %cst_138 {dimension_numbers = #tpu.dot_dimension_numbers<[1], [0], [0], [1], [0, 0, 1, 1], [], []>} : vector<64x64xf32>, vector<64x32xf32>, vector<64x32xf32> -> vector<64x32xf32>
    %c0_139 = arith.constant 0 : index
    %c0_140 = arith.constant 0 : index
    %538 = vector.load %arg17[%c0_139, %c0_140] : memref<1x32xf32, #tpu.memory_space<vmem>>, vector<1x32xf32>
    %539 = vector.broadcast %538 : vector<1x32xf32> to vector<64x32xf32>
    %540 = arith.addf %537, %539 : vector<64x32xf32>
    %541 = vector.extract_strided_slice %540 {offsets = [0, 0], sizes = [64, 16], strides = [1, 1]} : vector<64x32xf32> to vector<64x16xf32>
    %542 = vector.extract_strided_slice %540 {offsets = [0, 16], sizes = [64, 16], strides = [1, 1]} : vector<64x32xf32> to vector<64x16xf32>
    %cst_141 = arith.constant 5.000000e-01 : f32
    %543 = vector.broadcast %cst_141 : f32 to vector<64x16xf32>
    %544 = arith.mulf %543, %542 : vector<64x16xf32>
    %545 = math.exp %544 : vector<64x16xf32>
    %cst_142 = arith.constant -5.000000e-01 : f32
    %546 = vector.broadcast %cst_142 : f32 to vector<64x16xf32>
    %547 = arith.mulf %546, %542 : vector<64x16xf32>
    %548 = math.exp %547 : vector<64x16xf32>
    %c0_143 = arith.constant 0 : index
    %c0_144 = arith.constant 0 : index
    %549 = vector.load %arg3[%c0_143, %c0_144] : memref<64x16xf32, #tpu.memory_space<vmem>>, vector<64x16xf32>
    %550 = arith.mulf %549, %545 : vector<64x16xf32>
    %551 = arith.addf %550, %541 : vector<64x16xf32>
    %c0_145 = arith.constant 0 : index
    %c0_146 = arith.constant 0 : index
    %552 = vector.load %arg18[%c0_145, %c0_146] : memref<64x16xf32, #tpu.memory_space<vmem>>, vector<64x16xf32>
    tpu.vector_store %arg18[%c0_145, %c0_146], %551 {strides = array<i32>} : memref<64x16xf32, #tpu.memory_space<vmem>>, vector<64x16xf32>,
    %c0_147 = arith.constant 0 : index
    %c0_148 = arith.constant 0 : index
    %553 = vector.load %arg1[%c0_147, %c0_148] : memref<64x16xf32, #tpu.memory_space<vmem>>, vector<64x16xf32>
    %554 = arith.subf %541, %553 : vector<64x16xf32>
    %555 = arith.mulf %554, %548 : vector<64x16xf32>
    %556 = arith.mulf %555, %555 : vector<64x16xf32>
    %557 = arith.addf %556, %542 : vector<64x16xf32>
    %558 = vector.broadcast %1 : vector<64x1xf32> to vector<64x16xf32>
    %559 = arith.mulf %558, %557 : vector<64x16xf32>
    %560 = vector.shape_cast %559 : vector<64x16xf32> to vector<1x64x16xf32>
    %cst_149 = arith.constant dense<0.000000e+00> : vector<1xf32>
    %561 = vector.multi_reduction <add>, %560, %cst_149 [1, 2] : vector<1x64x16xf32> to vector<1xf32>
    %562 = vector.shape_cast %561 : vector<1xf32> to vector<1x1x1xf32>
    %563 = vector.extract %562[0, 0, 0] : f32 from vector<1x1x1xf32>
    %cst_150 = arith.constant 5.000000e-01 : f32
    %564 = arith.mulf %cst_150, %563 : f32
    %cst_151 = arith.constant 2.000000e+00 : f32
    %565 = arith.divf %564, %cst_151 : f32
    %566 = vector.broadcast %366 : f32 to vector<1x1xf32>
    %567 = vector.broadcast %565 : f32 to vector<1x1xf32>
    %568 = tpu.concatenate %566, %567 in 1 : vector<1x1xf32>, vector<1x1xf32> -> vector<1x2xf32>
    %c0_152 = arith.constant 0 : index
    %c0_153 = arith.constant 0 : index
    %569 = vector.load %arg19[%c0_152, %c0_153] : memref<1x2xf32, #tpu.memory_space<vmem>>, vector<1x2xf32>
    tpu.vector_store %arg19[%c0_152, %c0_153], %568 {strides = array<i32>} : memref<1x2xf32, #tpu.memory_space<vmem>>, vector<1x2xf32>,
    return
  }
}

</mosaic_0001>

<llo_original>
// kernel: tile.8
$region0: #{tile.8}
  #allocation0 [shape = 's32[1]{0}', space=sflag, size = 0x4, scoped, tag = 'scoped memory for tile.8']
  %s0 = inlined_call_operand.vmem [shape: f32[8], index: 0, kind: input, shape index: {}]
  %s1 = inlined_call_operand.vmem [shape: f32[8,8], index: 1, kind: output, shape index: {}]
  // Predicated region
  $region2: #{tile.8} parent=0 // pred_check
    _
  $region3: #{tile.8} parent=0 // pred_check_branch
    %3 = sbr.rel (0) target = $region5
  $region4: #{tile.8} parent=0 // pred_region
    _
  $region5: #{tile.8} parent=0 // pred_fallthru
    _
  %v4 = vld [vmem:[%s0] ss:$0 sm:$0xff]
  %5 = vst [vmem:[%s1] sm:$0xff] %v4

// kernel: tile.0
$region0: #{tile.0}
  %s0 = inlined_call_operand.vmem [shape: f32[8,8], index: 0, kind: input, shape index: {}]
  %s1 = inlined_call_operand.vmem [shape: f32[64,1], index: 1, kind: output, shape index: {}]
  %v2 = vld [vmem:[%s0] sm:$0xff]
  %vm3 = vcmask 7168
  %4 = vst.msk [vmem:[%s1] ss:$8 sm:$0xf] %vm3, %v2
  %5 = vst.msk [vmem:[%s1] ss:$8 sm:$0xf0] %vm3, %v2
  %v6 = vld [vmem:[%s0] sm:$0xff]
  %7 = vrot.lane.b32.xlu0 %v6, 127
  %v8 = vpop.permute.xlu0 %7
  %vm9 = vcmask 7168
  %s10 = scalar_lea.vmem %s1, 1
  %11 = vst.msk [vmem:[%s10] ss:$8 sm:$0xf] %vm9, %v8
  %s12 = scalar_lea.vmem %s1, 1
  %13 = vst.msk [vmem:[%s12] ss:$8 sm:$0xf0] %vm9, %v8
  %v14 = vld [vmem:[%s0] sm:$0xff]
  %15 = vrot.lane.b32.xlu0 %v14, 126
  %v16 = vpop.permute.xlu0 %15
  %vm17 = vcmask 7168
  %s18 = scalar_lea.vmem %s1, 2
  %19 = vst.msk [vmem:[%s18] ss:$8 sm:$0xf] %vm17, %v16
  %s20 = scalar_lea.vmem %s1, 2
  %21 = vst.msk [vmem:[%s20] ss:$8 sm:$0xf0] %vm17, %v16
  %v22 = vld [vmem:[%s0] sm:$0xff]
  %23 = vrot.lane.b32.xlu0 %v22, 125
  %v24 = vpop.permute.xlu0 %23
  %vm25 = vcmask 7168
  %s26 = scalar_lea.vmem %s1, 3
  %27 = vst.msk [vmem:[%s26] ss:$8 sm:$0xf] %vm25, %v24
  %s28 = scalar_lea.vmem %s1, 3
  %29 = vst.msk [vmem:[%s28] ss:$8 sm:$0xf0] %vm25, %v24
  %v30 = vld [vmem:[%s0] sm:$0xff]
  %31 = vrot.lane.b32.xlu0 %v30, 124
  %v32 = vpop.permute.xlu0 %31
  %vm33 = vcmask 7168
  %s34 = scalar_lea.vmem %s1, 4
  %35 = vst.msk [vmem:[%s34] ss:$8 sm:$0xf] %vm33, %v32
  %s36 = scalar_lea.vmem %s1, 4
  %37 = vst.msk [vmem:[%s36] ss:$8 sm:$0xf0] %vm33, %v32
  %v38 = vld [vmem:[%s0] sm:$0xff]
  %39 = vrot.lane.b32.xlu0 %v38, 123
  %v40 = vpop.permute.xlu0 %39
  %vm41 = vcmask 7168
  %s42 = scalar_lea.vmem %s1, 5
  %43 = vst.msk [vmem:[%s42] ss:$8 sm:$0xf] %vm41, %v40
  %s44 = scalar_lea.vmem %s1, 5
  %45 = vst.msk [vmem:[%s44] ss:$8 sm:$0xf0] %vm41, %v40
  %v46 = vld [vmem:[%s0] sm:$0xff]
  %47 = vrot.lane.b32.xlu0 %v46, 122
  %v48 = vpop.permute.xlu0 %47
  %vm49 = vcmask 7168
  %s50 = scalar_lea.vmem %s1, 6
  %51 = vst.msk [vmem:[%s50] ss:$8 sm:$0xf] %vm49, %v48
  %s52 = scalar_lea.vmem %s1, 6
  %53 = vst.msk [vmem:[%s52] ss:$8 sm:$0xf0] %vm49, %v48
  %v54 = vld [vmem:[%s0] sm:$0xff]
  %55 = vrot.lane.b32.xlu0 %v54, 121
  %v56 = vpop.permute.xlu0 %55
  %vm57 = vcmask 7168
  %s58 = scalar_lea.vmem %s1, 7
  %59 = vst.msk [vmem:[%s58] ss:$8 sm:$0xf] %vm57, %v56
  %s60 = scalar_lea.vmem %s1, 7
  %61 = vst.msk [vmem:[%s60] ss:$8 sm:$0xf0] %vm57, %v56

// kernel: vae_forward.1
$region0: #{vae_forward.1}
  #allocation0 [shape = 'u32[]', space=smem, size = 0x4, offset = 0x4, fixed_abs, tag = 'smem constant byte address 0x4 - core index']
  #allocation1 [shape = 'u32[144,128]{1,0:T(1,128)}', space=vmem, size = 0x12000, scoped, tag = 'internal scratch']
  #allocation2 [shape = 'f32[64,32]{1,0:T(8,128)}', space=vmem, size = 0x8000, scoped, tag = 'scratch operand']
  #allocation3 [shape = 'f32[64,16]{1,0:T(8,128)}', space=vmem, size = 0x8000, scoped, tag = 'scratch operand']
  #allocation4 [shape = 'f32[64,64]{1,0:T(8,128)}', space=vmem, size = 0x8000, scoped, tag = 'scratch operand']
  %s0 = inlined_call_operand.vmem [shape: f32[64,16], index: 0, kind: input, shape index: {}]
  %s1 = inlined_call_operand.vmem [shape: f32[64,16], index: 1, kind: input, shape index: {}]
  %s2 = inlined_call_operand.vmem [shape: f32[64,8], index: 2, kind: input, shape index: {}]
  %s3 = inlined_call_operand.vmem [shape: f32[64,16], index: 3, kind: input, shape index: {}]
  %s4 = inlined_call_operand.vmem [shape: f32[64,1], index: 4, kind: input, shape index: {}]
  %s5 = inlined_call_operand.vmem [shape: f32[16,128], index: 5, kind: input, shape index: {}]
  %s6 = inlined_call_operand.vmem [shape: f32[32,128], index: 6, kind: input, shape index: {}]
  %s7 = inlined_call_operand.vmem [shape: f32[1,128], index: 7, kind: input, shape index: {}]
  %s8 = inlined_call_operand.vmem [shape: f32[32,64], index: 8, kind: input, shape index: {}]
  %s9 = inlined_call_operand.vmem [shape: f32[1,64], index: 9, kind: input, shape index: {}]
  %s10 = inlined_call_operand.vmem [shape: f32[64,64], index: 10, kind: input, shape index: {}]
  %s11 = inlined_call_operand.vmem [shape: f32[16,64], index: 11, kind: input, shape index: {}]
  %s12 = inlined_call_operand.vmem [shape: f32[1,64], index: 12, kind: input, shape index: {}]
  %s13 = inlined_call_operand.vmem [shape: f32[8,256], index: 13, kind: input, shape index: {}]
  %s14 = inlined_call_operand.vmem [shape: f32[64,256], index: 14, kind: input, shape index: {}]
  %s15 = inlined_call_operand.vmem [shape: f32[1,256], index: 15, kind: input, shape index: {}]
  %s16 = inlined_call_operand.vmem [shape: f32[64,32], index: 16, kind: input, shape index: {}]
  %s17 = inlined_call_operand.vmem [shape: f32[1,32], index: 17, kind: input, shape index: {}]
  %s18 = inlined_call_operand.vmem [shape: f32[64,16], index: 18, kind: output, shape index: {0}]
  %s19 = inlined_call_operand.vmem [shape: f32[1,2], index: 19, kind: output, shape index: {1}]
  %20 = xla_tuple %s18, %s19
  %s21 = sld [smem:[#allocation0]]
  $region90: #{vae_forward.1} parent=0
    _
  %s23 = ssub.s32 1, %s21
  %s24 = scalar_select 0, %s23, %s21
  // Predicated region
  $region2: #{vae_forward.1} parent=0 // pred_check
    _
  $region3: #{vae_forward.1} parent=0 // pred_check_branch
    %26 = sbr.rel (0) target = $region5
  $region4: #{vae_forward.1} parent=0 // pred_region
    _
  $region5: #{vae_forward.1} parent=0 // pred_fallthru
    _
  // Predicated region
  $region6: #{vae_forward.1} parent=0 // pred_check
    _
  $region7: #{vae_forward.1} parent=0 // pred_check_branch
    %28 = sbr.rel (0) target = $region9
  $region8: #{vae_forward.1} parent=0 // pred_region
    _
  $region9: #{vae_forward.1} parent=0 // pred_fallthru
    _
  // Predicated region
  $region10: #{vae_forward.1} parent=0 // pred_check
    _
  $region11: #{vae_forward.1} parent=0 // pred_check_branch
    %30 = sbr.rel (0) target = $region13
  $region12: #{vae_forward.1} parent=0 // pred_region
    _
  $region13: #{vae_forward.1} parent=0 // pred_fallthru
    _
  // Predicated region
  $region14: #{vae_forward.1} parent=0 // pred_check
    _
  $region15: #{vae_forward.1} parent=0 // pred_check_branch
    %32 = sbr.rel (0) target = $region17
  $region16: #{vae_forward.1} parent=0 // pred_region
    _
  $region17: #{vae_forward.1} parent=0 // pred_fallthru
    _
  // Predicated region
  $region18: #{vae_forward.1} parent=0 // pred_check
    _
  $region19: #{vae_forward.1} parent=0 // pred_check_branch
    %34 = sbr.rel (0) target = $region21
  $region20: #{vae_forward.1} parent=0 // pred_region
    _
  $region21: #{vae_forward.1} parent=0 // pred_fallthru
    _
  // Predicated region
  $region22: #{vae_forward.1} parent=0 // pred_check
    _
  $region23: #{vae_forward.1} parent=0 // pred_check_branch
    %36 = sbr.rel (0) target = $region25
  $region24: #{vae_forward.1} parent=0 // pred_region
    _
  $region25: #{vae_forward.1} parent=0 // pred_fallthru
    _
  // Predicated region
  $region26: #{vae_forward.1} parent=0 // pred_check
    _
  $region27: #{vae_forward.1} parent=0 // pred_check_branch
    %38 = sbr.rel (0) target = $region29
  $region28: #{vae_forward.1} parent=0 // pred_region
    _
  $region29: #{vae_forward.1} parent=0 // pred_fallthru
    _
  // Predicated region
  $region30: #{vae_forward.1} parent=0 // pred_check
    _
  $region31: #{vae_forward.1} parent=0 // pred_check_branch
    %40 = sbr.rel (0) target = $region33
  $region32: #{vae_forward.1} parent=0 // pred_region
    _
  $region33: #{vae_forward.1} parent=0 // pred_fallthru
    _
  // Predicated region
  $region34: #{vae_forward.1} parent=0 // pred_check
    _
  $region35: #{vae_forward.1} parent=0 // pred_check_branch
    %42 = sbr.rel (0) target = $region37
  $region36: #{vae_forward.1} parent=0 // pred_region
    _
  $region37: #{vae_forward.1} parent=0 // pred_fallthru
    _
  // Predicated region
  $region38: #{vae_forward.1} parent=0 // pred_check
    _
  $region39: #{vae_forward.1} parent=0 // pred_check_branch
    %44 = sbr.rel (0) target = $region41
  $region40: #{vae_forward.1} parent=0 // pred_region
    _
  $region41: #{vae_forward.1} parent=0 // pred_fallthru
    _
  // Predicated region
  $region42: #{vae_forward.1} parent=0 // pred_check
    _
  $region43: #{vae_forward.1} parent=0 // pred_check_branch
    %46 = sbr.rel (0) target = $region45
  $region44: #{vae_forward.1} parent=0 // pred_region
    _
  $region45: #{vae_forward.1} parent=0 // pred_fallthru
    _
  // Predicated region
  $region46: #{vae_forward.1} parent=0 // pred_check
    _
  $region47: #{vae_forward.1} parent=0 // pred_check_branch
    %48 = sbr.rel (0) target = $region49
  $region48: #{vae_forward.1} parent=0 // pred_region
    _
  $region49: #{vae_forward.1} parent=0 // pred_fallthru
    _
  // Predicated region
  $region50: #{vae_forward.1} parent=0 // pred_check
    _
  $region51: #{vae_forward.1} parent=0 // pred_check_branch
    %50 = sbr.rel (0) target = $region53
  $region52: #{vae_forward.1} parent=0 // pred_region
    _
  $region53: #{vae_forward.1} parent=0 // pred_fallthru
    _
  // Predicated region
  $region54: #{vae_forward.1} parent=0 // pred_check
    _
  $region55: #{vae_forward.1} parent=0 // pred_check_branch
    %52 = sbr.rel (0) target = $region57
  $region56: #{vae_forward.1} parent=0 // pred_region
    _
  $region57: #{vae_forward.1} parent=0 // pred_fallthru
    _
  // Predicated region
  $region58: #{vae_forward.1} parent=0 // pred_check
    _
  $region59: #{vae_forward.1} parent=0 // pred_check_branch
    %54 = sbr.rel (0) target = $region61
  $region60: #{vae_forward.1} parent=0 // pred_region
    _
  $region61: #{vae_forward.1} parent=0 // pred_fallthru
    _
  // Predicated region
  $region62: #{vae_forward.1} parent=0 // pred_check
    _
  $region63: #{vae_forward.1} parent=0 // pred_check_branch
    %56 = sbr.rel (0) target = $region65
  $region64: #{vae_forward.1} parent=0 // pred_region
    _
  $region65: #{vae_forward.1} parent=0 // pred_fallthru
    _
  // Predicated region
  $region66: #{vae_forward.1} parent=0 // pred_check
    _
  $region67: #{vae_forward.1} parent=0 // pred_check_branch
    %58 = sbr.rel (0) target = $region69
  $region68: #{vae_forward.1} parent=0 // pred_region
    _
  $region69: #{vae_forward.1} parent=0 // pred_fallthru
    _
  // Predicated region
  $region70: #{vae_forward.1} parent=0 // pred_check
    _
  $region71: #{vae_forward.1} parent=0 // pred_check_branch
    %60 = sbr.rel (0) target = $region73
  $region72: #{vae_forward.1} parent=0 // pred_region
    _
  $region73: #{vae_forward.1} parent=0 // pred_fallthru
    _
  %v61 = vld [vmem:[%s0] sm:$0xff]
  %v62 = vld [vmem:[%s0 + $0x8] sm:$0xff]
  %v63 = vld [vmem:[%s0 + $0x10] sm:$0xff]
  %v64 = vld [vmem:[%s0 + $0x18] sm:$0xff]
  %v65 = vld [vmem:[%s0 + $0x20] sm:$0xff]
  %v66 = vld [vmem:[%s0 + $0x28] sm:$0xff]
  %v67 = vld [vmem:[%s0 + $0x30] sm:$0xff]
  %v68 = vld [vmem:[%s0 + $0x38] sm:$0xff]
  %v69 = vld [vmem:[%s4] sm:$0xff]
  %v70 = vld [vmem:[%s4 + $0x8] sm:$0xff]
  %v71 = vld [vmem:[%s4 + $0x10] sm:$0xff]
  %v72 = vld [vmem:[%s4 + $0x18] sm:$0xff]
  %v73 = vld [vmem:[%s4 + $0x20] sm:$0xff]
  %v74 = vld [vmem:[%s4 + $0x28] sm:$0xff]
  %v75 = vld [vmem:[%s4 + $0x30] sm:$0xff]
  %v76 = vld [vmem:[%s4 + $0x38] sm:$0xff]
  %v77 = vld [vmem:[%s5] sm:$0xff]
  %v78 = vld [vmem:[%s5 + $0x8] sm:$0xff]
  %v79 = vld [vmem:[%s6] sm:$0xff]
  %v80 = vld [vmem:[%s6 + $0x8] sm:$0xff]
  %v81 = vld [vmem:[%s6 + $0x10] sm:$0xff]
  %v82 = vld [vmem:[%s6 + $0x18] sm:$0xff]
  %v83 = vld [vmem:[%s7] sm:$0x1]
  %v85 = vlaneseq
  %v86 = vshrl.u32 %v85, 7
  %v87 = vsub.s32 0, %v86
  %v88 = vrot.slane %v83, %v87
  %vm90 = vcmask 130048
  %v92 = vsel %vm90, %v61, 0
  %v95 = vsel %vm90, %v62, 0
  %v98 = vsel %vm90, %v63, 0
  %v101 = vsel %vm90, %v64, 0
  %v104 = vsel %vm90, %v65, 0
  %v107 = vsel %vm90, %v66, 0
  %v110 = vsel %vm90, %v67, 0
  %v113 = vsel %vm90, %v68, 0
  %115 = vmatprep.subr.mxu0 0.0
  %116 = vmatpush1.msra.mxu0 %v77
  %117 = vmatprep.subr.mxu0 0.0
  %118 = vmatpush1.msra.mxu0 %v78
  %119 = vmatprep.subr.mxu0 0.0
  %120 = vmatpush1.msra.mxu0 0.0
  %121 = vmatprep.subr.mxu0 0.0
  %122 = vmatpush1.msra.mxu0 0.0
  %123 = vmatprep.subr.mxu0 0.0
  %124 = vmatpush1.msra.mxu0 0.0
  %125 = vmatprep.subr.mxu0 0.0
  %126 = vmatpush1.msra.mxu0 0.0
  %127 = vmatprep.subr.mxu0 0.0
  %128 = vmatpush1.msra.mxu0 0.0
  %129 = vmatprep.subr.mxu0 0.0
  %130 = vmatpush1.msra.mxu0 0.0
  %131 = vmatprep.subr.mxu0 0.0
  %132 = vmatpush1.msra.mxu0 0.0
  %133 = vmatprep.subr.mxu0 0.0
  %134 = vmatpush1.msra.mxu0 0.0
  %135 = vmatprep.subr.mxu0 0.0
  %136 = vmatpush1.msra.mxu0 0.0
  %137 = vmatprep.subr.mxu0 0.0
  %138 = vmatpush1.msra.mxu0 0.0
  %139 = vmatprep.subr.mxu0 0.0
  %140 = vmatpush1.msra.mxu0 0.0
  %141 = vmatprep.subr.mxu0 0.0
  %142 = vmatpush1.msra.mxu0 0.0
  %143 = vmatprep.subr.mxu0 0.0
  %144 = vmatpush1.msra.mxu0 0.0
  %145 = vmatprep.subr.mxu0 0.0
  %146 = vmatpush1.msra.mxu0 0.0
  %147 = vmatprep.subr.mxu0 0.0
  %148 = vmatpush1.msra.mxu0 0.0
  %149 = vmatprep.subr.mxu0 0.0
  %150 = vmatpush1.msra.mxu0 0.0
  %151 = vmatprep.subr.mxu0 0.0
  %152 = vmatpush1.msra.mxu0 0.0
  %153 = vmatprep.subr.mxu0 0.0
  %154 = vmatpush1.msra.mxu0 0.0
  %155 = vmatprep.subr.mxu0 0.0
  %156 = vmatpush1.msra.mxu0 0.0
  %157 = vmatprep.subr.mxu0 0.0
  %158 = vmatpush1.msra.mxu0 0.0
  %159 = vmatprep.subr.mxu0 0.0
  %160 = vmatpush1.msra.mxu0 0.0
  %161 = vmatprep.subr.mxu0 0.0
  %162 = vmatpush1.msra.mxu0 0.0
  %163 = vmatprep.subr.mxu0 0.0
  %164 = vmatpush1.msra.mxu0 0.0
  %165 = vmatprep.subr.mxu0 0.0
  %166 = vmatpush1.msra.mxu0 0.0
  %167 = vmatprep.subr.mxu0 0.0
  %168 = vmatpush1.msra.mxu0 0.0
  %169 = vmatprep.subr.mxu0 0.0
  %170 = vmatpush1.msra.mxu0 0.0
  %171 = vmatprep.subr.mxu0 0.0
  %172 = vmatpush1.msra.mxu0 0.0
  %173 = vmatprep.subr.mxu0 0.0
  %174 = vmatpush1.msra.mxu0 0.0
  %175 = vmatprep.subr.mxu0 0.0
  %176 = vmatpush1.msra.mxu0 0.0
  %177 = vmatprep.subr.mxu0 0.0
  %178 = vmatpush1.msra.mxu0 0.0
  %179 = vmatprep.mubr.f32.mxu0 0.0
  %180 = vmatmul.mubr.f32.gmra.mrb[0].mxu0 %v92
  %v181 = vpop.f32.mrb[0].mxu0
  %v182 = vadd.f32 %v88, %v181
  %v183 = vpop.f32.mrb[0].mxu0
  %184 = vmatprep.mubr.f32.mxu0 0.0
  %185 = vmatmul.mubr.f32.gmra.mrb[0].mxu0 %v95
  %v186 = vpop.f32.mrb[0].mxu0
  %v187 = vadd.f32 %v88, %v186
  %v188 = vpop.f32.mrb[0].mxu0
  %189 = vmatprep.mubr.f32.mxu0 0.0
  %190 = vmatmul.mubr.f32.gmra.mrb[0].mxu0 %v98
  %v191 = vpop.f32.mrb[0].mxu0
  %v192 = vadd.f32 %v88, %v191
  %v193 = vpop.f32.mrb[0].mxu0
  %194 = vmatprep.mubr.f32.mxu0 0.0
  %195 = vmatmul.mubr.f32.gmra.mrb[0].mxu0 %v101
  %v196 = vpop.f32.mrb[0].mxu0
  %v197 = vadd.f32 %v88, %v196
  %v198 = vpop.f32.mrb[0].mxu0
  %199 = vmatprep.mubr.f32.mxu0 0.0
  %200 = vmatmul.mubr.f32.gmra.mrb[0].mxu0 %v104
  %v201 = vpop.f32.mrb[0].mxu0
  %v202 = vadd.f32 %v88, %v201
  %v203 = vpop.f32.mrb[0].mxu0
  %204 = vmatprep.mubr.f32.mxu0 0.0
  %205 = vmatmul.mubr.f32.gmra.mrb[0].mxu0 %v107
  %v206 = vpop.f32.mrb[0].mxu0
  %v207 = vadd.f32 %v88, %v206
  %v208 = vpop.f32.mrb[0].mxu0
  %209 = vmatprep.mubr.f32.mxu0 0.0
  %210 = vmatmul.mubr.f32.gmra.mrb[0].mxu0 %v110
  %v211 = vpop.f32.mrb[0].mxu0
  %v212 = vadd.f32 %v88, %v211
  %v213 = vpop.f32.mrb[0].mxu0
  %214 = vmatprep.mubr.f32.mxu0 0.0
  %215 = vmatmul.mubr.f32.gmra.mrb[0].mxu0 %v113
  %v216 = vpop.f32.mrb[0].mxu0
  %v217 = vadd.f32 %v88, %v216
  %v218 = vpop.f32.mrb[0].mxu0
  %219 = vdwg.mxu0
  %vm220 = vcmask 261120
  %v222 = vsel %vm220, 0.0, 0
  %224 = vmatprep.subr.mxu0 0.0
  %225 = vmatpush1.msra.mxu0 %v79
  %226 = vmatprep.subr.mxu0 0.0
  %227 = vmatpush1.msra.mxu0 %v80
  %228 = vmatprep.subr.mxu0 0.0
  %229 = vmatpush1.msra.mxu0 %v81
  %230 = vmatprep.subr.mxu0 0.0
  %231 = vmatpush1.msra.mxu0 %v82
  %232 = vmatprep.subr.mxu0 0.0
  %233 = vmatpush1.msra.mxu0 0.0
  %234 = vmatprep.subr.mxu0 0.0
  %235 = vmatpush1.msra.mxu0 0.0
  %236 = vmatprep.subr.mxu0 0.0
  %237 = vmatpush1.msra.mxu0 0.0
  %238 = vmatprep.subr.mxu0 0.0
  %239 = vmatpush1.msra.mxu0 0.0
  %240 = vmatprep.subr.mxu0 0.0
  %241 = vmatpush1.msra.mxu0 0.0
  %242 = vmatprep.subr.mxu0 0.0
  %243 = vmatpush1.msra.mxu0 0.0
  %244 = vmatprep.subr.mxu0 0.0
  %245 = vmatpush1.msra.mxu0 0.0
  %246 = vmatprep.subr.mxu0 0.0
  %247 = vmatpush1.msra.mxu0 0.0
  %248 = vmatprep.subr.mxu0 0.0
  %249 = vmatpush1.msra.mxu0 0.0
  %250 = vmatprep.subr.mxu0 0.0
  %251 = vmatpush1.msra.mxu0 0.0
  %252 = vmatprep.subr.mxu0 0.0
  %253 = vmatpush1.msra.mxu0 0.0
  %254 = vmatprep.subr.mxu0 0.0
  %255 = vmatpush1.msra.mxu0 0.0
  %256 = vmatprep.subr.mxu0 0.0
  %257 = vmatpush1.msra.mxu0 0.0
  %258 = vmatprep.subr.mxu0 0.0
  %259 = vmatpush1.msra.mxu0 0.0
  %260 = vmatprep.subr.mxu0 0.0
  %261 = vmatpush1.msra.mxu0 0.0
  %262 = vmatprep.subr.mxu0 0.0
  %263 = vmatpush1.msra.mxu0 0.0
  %264 = vmatprep.subr.mxu0 0.0
  %265 = vmatpush1.msra.mxu0 0.0
  %266 = vmatprep.subr.mxu0 0.0
  %267 = vmatpush1.msra.mxu0 0.0
  %268 = vmatprep.subr.mxu0 0.0
  %269 = vmatpush1.msra.mxu0 0.0
  %270 = vmatprep.subr.mxu0 0.0
  %271 = vmatpush1.msra.mxu0 0.0
  %272 = vmatprep.subr.mxu0 0.0
  %273 = vmatpush1.msra.mxu0 0.0
  %274 = vmatprep.subr.mxu0 0.0
  %275 = vmatpush1.msra.mxu0 0.0
  %276 = vmatprep.subr.mxu0 0.0
  %277 = vmatpush1.msra.mxu0 0.0
  %278 = vmatprep.subr.mxu0 0.0
  %279 = vmatpush1.msra.mxu0 0.0
  %280 = vmatprep.subr.mxu0 0.0
  %281 = vmatpush1.msra.mxu0 0.0
  %282 = vmatprep.subr.mxu0 0.0
  %283 = vmatpush1.msra.mxu0 0.0
  %284 = vmatprep.subr.mxu0 0.0
  %285 = vmatpush1.msra.mxu0 0.0
  %286 = vmatprep.subr.mxu0 0.0
  %287 = vmatpush1.msra.mxu0 0.0
  %288 = vmatprep.mubr.f32.mxu0 0.0
  %289 = vmatmul.mubr.f32.gmra.mrb[0].mxu0 %v222
  %v290 = vpop.f32.mrb[0].mxu0
  %v291 = vadd.f32 0.0, %v290
  %v292 = vpop.f32.mrb[0].mxu0
  %293 = vdwg.mxu0
  %v294 = vadd.f32 %v182, %v291
  %v295 = vxor.u32 %v294, 2147483648
  %v296 = vmul.f32 %v295, 1.442695
  %v297 = vpow.pop %v296
  %v298 = vadd.f32 %v297, 1.0
  %v299 = vrcp.pop %v298
  %v300 = vmul.f32 1.0, %v299
  %v301 = vtanh.pop %v294
  %v302 = vmul.f32 %v300, 0.0
  %304 = vrot.lane.b32.xlu0 %v301, 32
  %v305 = vpop.permute.xlu0 %304
  %v307 = vmul.f32 %v300, %v305
  %309 = vrot.lane.b32.xlu0 %v307, 32
  %v310 = vpop.permute.xlu0 %309
  %v312 = vadd.f32 %v302, %v310
  %v313 = vtanh.pop %v312
  %315 = vrot.lane.b32.xlu0 %v313, 32
  %v316 = vpop.permute.xlu0 %315
  %v318 = vmul.f32 %v300, %v316
  %320 = vrot.lane.b32.xlu0 %v318, 64
  %v321 = vpop.permute.xlu0 %320
  %323 = vst.msk [vmem:[#allocation2] sm:$0xff] %vm220, %v321
  %v324 = vsel %vm220, %v321, 0
  %326 = vmatprep.subr.mxu0 0.0
  %327 = vmatpush1.msra.mxu0 %v79
  %328 = vmatprep.subr.mxu0 0.0
  %329 = vmatpush1.msra.mxu0 %v80
  %330 = vmatprep.subr.mxu0 0.0
  %331 = vmatpush1.msra.mxu0 %v81
  %332 = vmatprep.subr.mxu0 0.0
  %333 = vmatpush1.msra.mxu0 %v82
  %334 = vmatprep.subr.mxu0 0.0
  %335 = vmatpush1.msra.mxu0 0.0
  %336 = vmatprep.subr.mxu0 0.0
  %337 = vmatpush1.msra.mxu0 0.0
  %338 = vmatprep.subr.mxu0 0.0
  %339 = vmatpush1.msra.mxu0 0.0
  %340 = vmatprep.subr.mxu0 0.0
  %341 = vmatpush1.msra.mxu0 0.0
  %342 = vmatprep.subr.mxu0 0.0
  %343 = vmatpush1.msra.mxu0 0.0
  %344 = vmatprep.subr.mxu0 0.0
  %345 = vmatpush1.msra.mxu0 0.0
  %346 = vmatprep.subr.mxu0 0.0
  %347 = vmatpush1.msra.mxu0 0.0
  %348 = vmatprep.subr.mxu0 0.0
  %349 = vmatpush1.msra.mxu0 0.0
  %350 = vmatprep.subr.mxu0 0.0
  %351 = vmatpush1.msra.mxu0 0.0
  %352 = vmatprep.subr.mxu0 0.0
  %353 = vmatpush1.msra.mxu0 0.0
  %354 = vmatprep.subr.mxu0 0.0
  %355 = vmatpush1.msra.mxu0 0.0
  %356 = vmatprep.subr.mxu0 0.0
  %357 = vmatpush1.msra.mxu0 0.0
  %358 = vmatprep.subr.mxu0 0.0
  %359 = vmatpush1.msra.mxu0 0.0
  %360 = vmatprep.subr.mxu0 0.0
  %361 = vmatpush1.msra.mxu0 0.0
  %362 = vmatprep.subr.mxu0 0.0
  %363 = vmatpush1.msra.mxu0 0.0
  %364 = vmatprep.subr.mxu0 0.0
  %365 = vmatpush1.msra.mxu0 0.0
  %366 = vmatprep.subr.mxu0 0.0
  %367 = vmatpush1.msra.mxu0 0.0
  %368 = vmatprep.subr.mxu0 0.0
  %369 = vmatpush1.msra.mxu0 0.0
  %370 = vmatprep.subr.mxu0 0.0
  %371 = vmatpush1.msra.mxu0 0.0
  %372 = vmatprep.subr.mxu0 0.0
  %373 = vmatpush1.msra.mxu0 0.0
  %374 = vmatprep.subr.mxu0 0.0
  %375 = vmatpush1.msra.mxu0 0.0
  %376 = vmatprep.subr.mxu0 0.0
  %377 = vmatpush1.msra.mxu0 0.0
  %378 = vmatprep.subr.mxu0 0.0
  %379 = vmatpush1.msra.mxu0 0.0
  %380 = vmatprep.subr.mxu0 0.0
  %381 = vmatpush1.msra.mxu0 0.0
  %382 = vmatprep.subr.mxu0 0.0
  %383 = vmatpush1.msra.mxu0 0.0
  %384 = vmatprep.subr.mxu0 0.0
  %385 = vmatpush1.msra.mxu0 0.0
  %386 = vmatprep.subr.mxu0 0.0
  %387 = vmatpush1.msra.mxu0 0.0
  %388 = vmatprep.subr.mxu0 0.0
  %389 = vmatpush1.msra.mxu0 0.0
  %390 = vmatprep.mubr.f32.mxu0 0.0
  %391 = vmatmul.mubr.f32.gmra.mrb[0].mxu0 %v324
  %v392 = vpop.f32.mrb[0].mxu0
  %v393 = vadd.f32 0.0, %v392
  %v394 = vpop.f32.mrb[0].mxu0
  %395 = vdwg.mxu0
  %v396 = vadd.f32 %v187, %v393
  %v397 = vxor.u32 %v396, 2147483648
  %v398 = vmul.f32 %v397, 1.442695
  %v399 = vpow.pop %v398
  %v400 = vadd.f32 %v399, 1.0
  %v401 = vrcp.pop %v400
  %v402 = vmul.f32 1.0, %v401
  %v403 = vtanh.pop %v396
  %v404 = vmul.f32 %v402, %v312
  %406 = vrot.lane.b32.xlu0 %v403, 32
  %v407 = vpop.permute.xlu0 %406
  %v409 = vmul.f32 %v402, %v407
  %411 = vrot.lane.b32.xlu0 %v409, 32
  %v412 = vpop.permute.xlu0 %411
  %v414 = vadd.f32 %v404, %v412
  %v415 = vtanh.pop %v414
  %417 = vrot.lane.b32.xlu0 %v415, 32
  %v418 = vpop.permute.xlu0 %417
  %v420 = vmul.f32 %v402, %v418
  %422 = vrot.lane.b32.xlu0 %v420, 64
  %v423 = vpop.permute.xlu0 %422
  %425 = vst.msk [vmem:[#allocation2 + $0x8] sm:$0xff] %vm220, %v423
  %v426 = vsel %vm220, %v423, 0
  %428 = vmatprep.subr.mxu0 0.0
  %429 = vmatpush1.msra.mxu0 %v79
  %430 = vmatprep.subr.mxu0 0.0
  %431 = vmatpush1.msra.mxu0 %v80
  %432 = vmatprep.subr.mxu0 0.0
  %433 = vmatpush1.msra.mxu0 %v81
  %434 = vmatprep.subr.mxu0 0.0
  %435 = vmatpush1.msra.mxu0 %v82
  %436 = vmatprep.subr.mxu0 0.0
  %437 = vmatpush1.msra.mxu0 0.0
  %438 = vmatprep.subr.mxu0 0.0
  %439 = vmatpush1.msra.mxu0 0.0
  %440 = vmatprep.subr.mxu0 0.0
  %441 = vmatpush1.msra.mxu0 0.0
  %442 = vmatprep.subr.mxu0 0.0
  %443 = vmatpush1.msra.mxu0 0.0
  %444 = vmatprep.subr.mxu0 0.0
  %445 = vmatpush1.msra.mxu0 0.0
  %446 = vmatprep.subr.mxu0 0.0
  %447 = vmatpush1.msra.mxu0 0.0
  %448 = vmatprep.subr.mxu0 0.0
  %449 = vmatpush1.msra.mxu0 0.0
  %450 = vmatprep.subr.mxu0 0.0
  %451 = vmatpush1.msra.mxu0 0.0
  %452 = vmatprep.subr.mxu0 0.0
  %453 = vmatpush1.msra.mxu0 0.0
  %454 = vmatprep.subr.mxu0 0.0
  %455 = vmatpush1.msra.mxu0 0.0
  %456 = vmatprep.subr.mxu0 0.0
  %457 = vmatpush1.msra.mxu0 0.0
  %458 = vmatprep.subr.mxu0 0.0
  %459 = vmatpush1.msra.mxu0 0.0
  %460 = vmatprep.subr.mxu0 0.0
  %461 = vmatpush1.msra.mxu0 0.0
  %462 = vmatprep.subr.mxu0 0.0
  %463 = vmatpush1.msra.mxu0 0.0
  %464 = vmatprep.subr.mxu0 0.0
  %465 = vmatpush1.msra.mxu0 0.0
  %466 = vmatprep.subr.mxu0 0.0
  %467 = vmatpush1.msra.mxu0 0.0
  %468 = vmatprep.subr.mxu0 0.0
  %469 = vmatpush1.msra.mxu0 0.0
  %470 = vmatprep.subr.mxu0 0.0
  %471 = vmatpush1.msra.mxu0 0.0
  %472 = vmatprep.subr.mxu0 0.0
  %473 = vmatpush1.msra.mxu0 0.0
  %474 = vmatprep.subr.mxu0 0.0
  %475 = vmatpush1.msra.mxu0 0.0
  %476 = vmatprep.subr.mxu0 0.0
  %477 = vmatpush1.msra.mxu0 0.0
  %478 = vmatprep.subr.mxu0 0.0
  %479 = vmatpush1.msra.mxu0 0.0
  %480 = vmatprep.subr.mxu0 0.0
  %481 = vmatpush1.msra.mxu0 0.0
  %482 = vmatprep.subr.mxu0 0.0
  %483 = vmatpush1.msra.mxu0 0.0
  %484 = vmatprep.subr.mxu0 0.0
  %485 = vmatpush1.msra.mxu0 0.0
  %486 = vmatprep.subr.mxu0 0.0
  %487 = vmatpush1.msra.mxu0 0.0
  %488 = vmatprep.subr.mxu0 0.0
  %489 = vmatpush1.msra.mxu0 0.0
  %490 = vmatprep.subr.mxu0 0.0
  %491 = vmatpush1.msra.mxu0 0.0
  %492 = vmatprep.mubr.f32.mxu0 0.0
  %493 = vmatmul.mubr.f32.gmra.mrb[0].mxu0 %v426
  %v494 = vpop.f32.mrb[0].mxu0
  %v495 = vadd.f32 0.0, %v494
  %v496 = vpop.f32.mrb[0].mxu0
  %497 = vdwg.mxu0
  %v498 = vadd.f32 %v192, %v495
  %v499 = vxor.u32 %v498, 2147483648
  %v500 = vmul.f32 %v499, 1.442695
  %v501 = vpow.pop %v500
  %v502 = vadd.f32 %v501, 1.0
  %v503 = vrcp.pop %v502
  %v504 = vmul.f32 1.0, %v503
  %v505 = vtanh.pop %v498
  %v506 = vmul.f32 %v504, %v414
  %508 = vrot.lane.b32.xlu0 %v505, 32
  %v509 = vpop.permute.xlu0 %508
  %v511 = vmul.f32 %v504, %v509
  %513 = vrot.lane.b32.xlu0 %v511, 32
  %v514 = vpop.permute.xlu0 %513
  %v516 = vadd.f32 %v506, %v514
  %v517 = vtanh.pop %v516
  %519 = vrot.lane.b32.xlu0 %v517, 32
  %v520 = vpop.permute.xlu0 %519
  %v522 = vmul.f32 %v504, %v520
  %524 = vrot.lane.b32.xlu0 %v522, 64
  %v525 = vpop.permute.xlu0 %524
  %527 = vst.msk [vmem:[#allocation2 + $0x10] sm:$0xff] %vm220, %v525
  %v528 = vsel %vm220, %v525, 0
  %530 = vmatprep.subr.mxu0 0.0
  %531 = vmatpush1.msra.mxu0 %v79
  %532 = vmatprep.subr.mxu0 0.0
  %533 = vmatpush1.msra.mxu0 %v80
  %534 = vmatprep.subr.mxu0 0.0
  %535 = vmatpush1.msra.mxu0 %v81
  %536 = vmatprep.subr.mxu0 0.0
  %537 = vmatpush1.msra.mxu0 %v82
  %538 = vmatprep.subr.mxu0 0.0
  %539 = vmatpush1.msra.mxu0 0.0
  %540 = vmatprep.subr.mxu0 0.0
  %541 = vmatpush1.msra.mxu0 0.0
  %542 = vmatprep.subr.mxu0 0.0
  %543 = vmatpush1.msra.mxu0 0.0
  %544 = vmatprep.subr.mxu0 0.0
  %545 = vmatpush1.msra.mxu0 0.0
  %546 = vmatprep.subr.mxu0 0.0
  %547 = vmatpush1.msra.mxu0 0.0
  %548 = vmatprep.subr.mxu0 0.0
  %549 = vmatpush1.msra.mxu0 0.0
  %550 = vmatprep.subr.mxu0 0.0
  %551 = vmatpush1.msra.mxu0 0.0
  %552 = vmatprep.subr.mxu0 0.0
  %553 = vmatpush1.msra.mxu0 0.0
  %554 = vmatprep.subr.mxu0 0.0
  %555 = vmatpush1.msra.mxu0 0.0
  %556 = vmatprep.subr.mxu0 0.0
  %557 = vmatpush1.msra.mxu0 0.0
  %558 = vmatprep.subr.mxu0 0.0
  %559 = vmatpush1.msra.mxu0 0.0
  %560 = vmatprep.subr.mxu0 0.0
  %561 = vmatpush1.msra.mxu0 0.0
  %562 = vmatprep.subr.mxu0 0.0
  %563 = vmatpush1.msra.mxu0 0.0
  %564 = vmatprep.subr.mxu0 0.0
  %565 = vmatpush1.msra.mxu0 0.0
  %566 = vmatprep.subr.mxu0 0.0
  %567 = vmatpush1.msra.mxu0 0.0
  %568 = vmatprep.subr.mxu0 0.0
  %569 = vmatpush1.msra.mxu0 0.0
  %570 = vmatprep.subr.mxu0 0.0
  %571 = vmatpush1.msra.mxu0 0.0
  %572 = vmatprep.subr.mxu0 0.0
  %573 = vmatpush1.msra.mxu0 0.0
  %574 = vmatprep.subr.mxu0 0.0
  %575 = vmatpush1.msra.mxu0 0.0
  %576 = vmatprep.subr.mxu0 0.0
  %577 = vmatpush1.msra.mxu0 0.0
  %578 = vmatprep.subr.mxu0 0.0
  %579 = vmatpush1.msra.mxu0 0.0
  %580 = vmatprep.subr.mxu0 0.0
  %581 = vmatpush1.msra.mxu0 0.0
  %582 = vmatprep.subr.mxu0 0.0
  %583 = vmatpush1.msra.mxu0 0.0
  %584 = vmatprep.subr.mxu0 0.0
  %585 = vmatpush1.msra.mxu0 0.0
  %586 = vmatprep.subr.mxu0 0.0
  %587 = vmatpush1.msra.mxu0 0.0
  %588 = vmatprep.subr.mxu0 0.0
  %589 = vmatpush1.msra.mxu0 0.0
  %590 = vmatprep.subr.mxu0 0.0
  %591 = vmatpush1.msra.mxu0 0.0
  %592 = vmatprep.subr.mxu0 0.0
  %593 = vmatpush1.msra.mxu0 0.0
  %594 = vmatprep.mubr.f32.mxu0 0.0
  %595 = vmatmul.mubr.f32.gmra.mrb[0].mxu0 %v528
  %v596 = vpop.f32.mrb[0].mxu0
  %v597 = vadd.f32 0.0, %v596
  %v598 = vpop.f32.mrb[0].mxu0
  %599 = vdwg.mxu0
  %v600 = vadd.f32 %v197, %v597
  %v601 = vxor.u32 %v600, 2147483648
  %v602 = vmul.f32 %v601, 1.442695
  %v603 = vpow.pop %v602
  %v604 = vadd.f32 %v603, 1.0
  %v605 = vrcp.pop %v604
  %v606 = vmul.f32 1.0, %v605
  %v607 = vtanh.pop %v600
  %v608 = vmul.f32 %v606, %v516
  %610 = vrot.lane.b32.xlu0 %v607, 32
  %v611 = vpop.permute.xlu0 %610
  %v613 = vmul.f32 %v606, %v611
  %615 = vrot.lane.b32.xlu0 %v613, 32
  %v616 = vpop.permute.xlu0 %615
  %v618 = vadd.f32 %v608, %v616
  %v619 = vtanh.pop %v618
  %621 = vrot.lane.b32.xlu0 %v619, 32
  %v622 = vpop.permute.xlu0 %621
  %v624 = vmul.f32 %v606, %v622
  %626 = vrot.lane.b32.xlu0 %v624, 64
  %v627 = vpop.permute.xlu0 %626
  %629 = vst.msk [vmem:[#allocation2 + $0x18] sm:$0xff] %vm220, %v627
  %v630 = vsel %vm220, %v627, 0
  %632 = vmatprep.subr.mxu0 0.0
  %633 = vmatpush1.msra.mxu0 %v79
  %634 = vmatprep.subr.mxu0 0.0
  %635 = vmatpush1.msra.mxu0 %v80
  %636 = vmatprep.subr.mxu0 0.0
  %637 = vmatpush1.msra.mxu0 %v81
  %638 = vmatprep.subr.mxu0 0.0
  %639 = vmatpush1.msra.mxu0 %v82
  %640 = vmatprep.subr.mxu0 0.0
  %641 = vmatpush1.msra.mxu0 0.0
  %642 = vmatprep.subr.mxu0 0.0
  %643 = vmatpush1.msra.mxu0 0.0
  %644 = vmatprep.subr.mxu0 0.0
  %645 = vmatpush1.msra.mxu0 0.0
  %646 = vmatprep.subr.mxu0 0.0
  %647 = vmatpush1.msra.mxu0 0.0
  %648 = vmatprep.subr.mxu0 0.0
  %649 = vmatpush1.msra.mxu0 0.0
  %650 = vmatprep.subr.mxu0 0.0
  %651 = vmatpush1.msra.mxu0 0.0
  %652 = vmatprep.subr.mxu0 0.0
  %653 = vmatpush1.msra.mxu0 0.0
  %654 = vmatprep.subr.mxu0 0.0
  %655 = vmatpush1.msra.mxu0 0.0
  %656 = vmatprep.subr.mxu0 0.0
  %657 = vmatpush1.msra.mxu0 0.0
  %658 = vmatprep.subr.mxu0 0.0
  %659 = vmatpush1.msra.mxu0 0.0
  %660 = vmatprep.subr.mxu0 0.0
  %661 = vmatpush1.msra.mxu0 0.0
  %662 = vmatprep.subr.mxu0 0.0
  %663 = vmatpush1.msra.mxu0 0.0
  %664 = vmatprep.subr.mxu0 0.0
  %665 = vmatpush1.msra.mxu0 0.0
  %666 = vmatprep.subr.mxu0 0.0
  %667 = vmatpush1.msra.mxu0 0.0
  %668 = vmatprep.subr.mxu0 0.0
  %669 = vmatpush1.msra.mxu0 0.0
  %670 = vmatprep.subr.mxu0 0.0
  %671 = vmatpush1.msra.mxu0 0.0
  %672 = vmatprep.subr.mxu0 0.0
  %673 = vmatpush1.msra.mxu0 0.0
  %674 = vmatprep.subr.mxu0 0.0
  %675 = vmatpush1.msra.mxu0 0.0
  %676 = vmatprep.subr.mxu0 0.0
  %677 = vmatpush1.msra.mxu0 0.0
  %678 = vmatprep.subr.mxu0 0.0
  %679 = vmatpush1.msra.mxu0 0.0
  %680 = vmatprep.subr.mxu0 0.0
  %681 = vmatpush1.msra.mxu0 0.0
  %682 = vmatprep.subr.mxu0 0.0
  %683 = vmatpush1.msra.mxu0 0.0
  %684 = vmatprep.subr.mxu0 0.0
  %685 = vmatpush1.msra.mxu0 0.0
  %686 = vmatprep.subr.mxu0 0.0
  %687 = vmatpush1.msra.mxu0 0.0
  %688 = vmatprep.subr.mxu0 0.0
  %689 = vmatpush1.msra.mxu0 0.0
  %690 = vmatprep.subr.mxu0 0.0
  %691 = vmatpush1.msra.mxu0 0.0
  %692 = vmatprep.subr.mxu0 0.0
  %693 = vmatpush1.msra.mxu0 0.0
  %694 = vmatprep.subr.mxu0 0.0
  %695 = vmatpush1.msra.mxu0 0.0
  %696 = vmatprep.mubr.f32.mxu0 0.0
  %697 = vmatmul.mubr.f32.gmra.mrb[0].mxu0 %v630
  %v698 = vpop.f32.mrb[0].mxu0
  %v699 = vadd.f32 0.0, %v698
  %v700 = vpop.f32.mrb[0].mxu0
  %701 = vdwg.mxu0
  %v702 = vadd.f32 %v202, %v699
  %v703 = vxor.u32 %v702, 2147483648
  %v704 = vmul.f32 %v703, 1.442695
  %v705 = vpow.pop %v704
  %v706 = vadd.f32 %v705, 1.0
  %v707 = vrcp.pop %v706
  %v708 = vmul.f32 1.0, %v707
  %v709 = vtanh.pop %v702
  %v710 = vmul.f32 %v708, %v618
  %712 = vrot.lane.b32.xlu0 %v709, 32
  %v713 = vpop.permute.xlu0 %712
  %v715 = vmul.f32 %v708, %v713
  %717 = vrot.lane.b32.xlu0 %v715, 32
  %v718 = vpop.permute.xlu0 %717
  %v720 = vadd.f32 %v710, %v718
  %v721 = vtanh.pop %v720
  %723 = vrot.lane.b32.xlu0 %v721, 32
  %v724 = vpop.permute.xlu0 %723
  %v726 = vmul.f32 %v708, %v724
  %728 = vrot.lane.b32.xlu0 %v726, 64
  %v729 = vpop.permute.xlu0 %728
  %731 = vst.msk [vmem:[#allocation2 + $0x20] sm:$0xff] %vm220, %v729
  %v732 = vsel %vm220, %v729, 0
  %734 = vmatprep.subr.mxu0 0.0
  %735 = vmatpush1.msra.mxu0 %v79
  %736 = vmatprep.subr.mxu0 0.0
  %737 = vmatpush1.msra.mxu0 %v80
  %738 = vmatprep.subr.mxu0 0.0
  %739 = vmatpush1.msra.mxu0 %v81
  %740 = vmatprep.subr.mxu0 0.0
  %741 = vmatpush1.msra.mxu0 %v82
  %742 = vmatprep.subr.mxu0 0.0
  %743 = vmatpush1.msra.mxu0 0.0
  %744 = vmatprep.subr.mxu0 0.0
  %745 = vmatpush1.msra.mxu0 0.0
  %746 = vmatprep.subr.mxu0 0.0
  %747 = vmatpush1.msra.mxu0 0.0
  %748 = vmatprep.subr.mxu0 0.0
  %749 = vmatpush1.msra.mxu0 0.0
  %750 = vmatprep.subr.mxu0 0.0
  %751 = vmatpush1.msra.mxu0 0.0
  %752 = vmatprep.subr.mxu0 0.0
  %753 = vmatpush1.msra.mxu0 0.0
  %754 = vmatprep.subr.mxu0 0.0
  %755 = vmatpush1.msra.mxu0 0.0
  %756 = vmatprep.subr.mxu0 0.0
  %757 = vmatpush1.msra.mxu0 0.0
  %758 = vmatprep.subr.mxu0 0.0
  %759 = vmatpush1.msra.mxu0 0.0
  %760 = vmatprep.subr.mxu0 0.0
  %761 = vmatpush1.msra.mxu0 0.0
  %762 = vmatprep.subr.mxu0 0.0
  %763 = vmatpush1.msra.mxu0 0.0
  %764 = vmatprep.subr.mxu0 0.0
  %765 = vmatpush1.msra.mxu0 0.0
  %766 = vmatprep.subr.mxu0 0.0
  %767 = vmatpush1.msra.mxu0 0.0
  %768 = vmatprep.subr.mxu0 0.0
  %769 = vmatpush1.msra.mxu0 0.0
  %770 = vmatprep.subr.mxu0 0.0
  %771 = vmatpush1.msra.mxu0 0.0
  %772 = vmatprep.subr.mxu0 0.0
  %773 = vmatpush1.msra.mxu0 0.0
  %774 = vmatprep.subr.mxu0 0.0
  %775 = vmatpush1.msra.mxu0 0.0
  %776 = vmatprep.subr.mxu0 0.0
  %777 = vmatpush1.msra.mxu0 0.0
  %778 = vmatprep.subr.mxu0 0.0
  %779 = vmatpush1.msra.mxu0 0.0
  %780 = vmatprep.subr.mxu0 0.0
  %781 = vmatpush1.msra.mxu0 0.0
  %782 = vmatprep.subr.mxu0 0.0
  %783 = vmatpush1.msra.mxu0 0.0
  %784 = vmatprep.subr.mxu0 0.0
  %785 = vmatpush1.msra.mxu0 0.0
  %786 = vmatprep.subr.mxu0 0.0
  %787 = vmatpush1.msra.mxu0 0.0
  %788 = vmatprep.subr.mxu0 0.0
  %789 = vmatpush1.msra.mxu0 0.0
  %790 = vmatprep.subr.mxu0 0.0
  %791 = vmatpush1.msra.mxu0 0.0
  %792 = vmatprep.subr.mxu0 0.0
  %793 = vmatpush1.msra.mxu0 0.0
  %794 = vmatprep.subr.mxu0 0.0
  %795 = vmatpush1.msra.mxu0 0.0
  %796 = vmatprep.subr.mxu0 0.0
  %797 = vmatpush1.msra.mxu0 0.0
  %798 = vmatprep.mubr.f32.mxu0 0.0
  %799 = vmatmul.mubr.f32.gmra.mrb[0].mxu0 %v732
  %v800 = vpop.f32.mrb[0].mxu0
  %v801 = vadd.f32 0.0, %v800
  %v802 = vpop.f32.mrb[0].mxu0
  %803 = vdwg.mxu0
  %v804 = vadd.f32 %v207, %v801
  %v805 = vxor.u32 %v804, 2147483648
  %v806 = vmul.f32 %v805, 1.442695
  %v807 = vpow.pop %v806
  %v808 = vadd.f32 %v807, 1.0
  %v809 = vrcp.pop %v808
  %v810 = vmul.f32 1.0, %v809
  %v811 = vtanh.pop %v804
  %v812 = vmul.f32 %v810, %v720
  %814 = vrot.lane.b32.xlu0 %v811, 32
  %v815 = vpop.permute.xlu0 %814
  %v817 = vmul.f32 %v810, %v815
  %819 = vrot.lane.b32.xlu0 %v817, 32
  %v820 = vpop.permute.xlu0 %819
  %v822 = vadd.f32 %v812, %v820
  %v823 = vtanh.pop %v822
  %825 = vrot.lane.b32.xlu0 %v823, 32
  %v826 = vpop.permute.xlu0 %825
  %v828 = vmul.f32 %v810, %v826
  %830 = vrot.lane.b32.xlu0 %v828, 64
  %v831 = vpop.permute.xlu0 %830
  %833 = vst.msk [vmem:[#allocation2 + $0x28] sm:$0xff] %vm220, %v831
  %v834 = vsel %vm220, %v831, 0
  %836 = vmatprep.subr.mxu0 0.0
  %837 = vmatpush1.msra.mxu0 %v79
  %838 = vmatprep.subr.mxu0 0.0
  %839 = vmatpush1.msra.mxu0 %v80
  %840 = vmatprep.subr.mxu0 0.0
  %841 = vmatpush1.msra.mxu0 %v81
  %842 = vmatprep.subr.mxu0 0.0
  %843 = vmatpush1.msra.mxu0 %v82
  %844 = vmatprep.subr.mxu0 0.0
  %845 = vmatpush1.msra.mxu0 0.0
  %846 = vmatprep.subr.mxu0 0.0
  %847 = vmatpush1.msra.mxu0 0.0
  %848 = vmatprep.subr.mxu0 0.0
  %849 = vmatpush1.msra.mxu0 0.0
  %850 = vmatprep.subr.mxu0 0.0
  %851 = vmatpush1.msra.mxu0 0.0
  %852 = vmatprep.subr.mxu0 0.0
  %853 = vmatpush1.msra.mxu0 0.0
  %854 = vmatprep.subr.mxu0 0.0
  %855 = vmatpush1.msra.mxu0 0.0
  %856 = vmatprep.subr.mxu0 0.0
  %857 = vmatpush1.msra.mxu0 0.0
  %858 = vmatprep.subr.mxu0 0.0
  %859 = vmatpush1.msra.mxu0 0.0
  %860 = vmatprep.subr.mxu0 0.0
  %861 = vmatpush1.msra.mxu0 0.0
  %862 = vmatprep.subr.mxu0 0.0
  %863 = vmatpush1.msra.mxu0 0.0
  %864 = vmatprep.subr.mxu0 0.0
  %865 = vmatpush1.msra.mxu0 0.0
  %866 = vmatprep.subr.mxu0 0.0
  %867 = vmatpush1.msra.mxu0 0.0
  %868 = vmatprep.subr.mxu0 0.0
  %869 = vmatpush1.msra.mxu0 0.0
  %870 = vmatprep.subr.mxu0 0.0
  %871 = vmatpush1.msra.mxu0 0.0
  %872 = vmatprep.subr.mxu0 0.0
  %873 = vmatpush1.msra.mxu0 0.0
  %874 = vmatprep.subr.mxu0 0.0
  %875 = vmatpush1.msra.mxu0 0.0
  %876 = vmatprep.subr.mxu0 0.0
  %877 = vmatpush1.msra.mxu0 0.0
  %878 = vmatprep.subr.mxu0 0.0
  %879 = vmatpush1.msra.mxu0 0.0
  %880 = vmatprep.subr.mxu0 0.0
  %881 = vmatpush1.msra.mxu0 0.0
  %882 = vmatprep.subr.mxu0 0.0
  %883 = vmatpush1.msra.mxu0 0.0
  %884 = vmatprep.subr.mxu0 0.0
  %885 = vmatpush1.msra.mxu0 0.0
  %886 = vmatprep.subr.mxu0 0.0
  %887 = vmatpush1.msra.mxu0 0.0
  %888 = vmatprep.subr.mxu0 0.0
  %889 = vmatpush1.msra.mxu0 0.0
  %890 = vmatprep.subr.mxu0 0.0
  %891 = vmatpush1.msra.mxu0 0.0
  %892 = vmatprep.subr.mxu0 0.0
  %893 = vmatpush1.msra.mxu0 0.0
  %894 = vmatprep.subr.mxu0 0.0
  %895 = vmatpush1.msra.mxu0 0.0
  %896 = vmatprep.subr.mxu0 0.0
  %897 = vmatpush1.msra.mxu0 0.0
  %898 = vmatprep.subr.mxu0 0.0
  %899 = vmatpush1.msra.mxu0 0.0
  %900 = vmatprep.mubr.f32.mxu0 0.0
  %901 = vmatmul.mubr.f32.gmra.mrb[0].mxu0 %v834
  %v902 = vpop.f32.mrb[0].mxu0
  %v903 = vadd.f32 0.0, %v902
  %v904 = vpop.f32.mrb[0].mxu0
  %905 = vdwg.mxu0
  %v906 = vadd.f32 %v212, %v903
  %v907 = vxor.u32 %v906, 2147483648
  %v908 = vmul.f32 %v907, 1.442695
  %v909 = vpow.pop %v908
  %v910 = vadd.f32 %v909, 1.0
  %v911 = vrcp.pop %v910
  %v912 = vmul.f32 1.0, %v911
  %v913 = vtanh.pop %v906
  %v914 = vmul.f32 %v912, %v822
  %916 = vrot.lane.b32.xlu0 %v913, 32
  %v917 = vpop.permute.xlu0 %916
  %v919 = vmul.f32 %v912, %v917
  %921 = vrot.lane.b32.xlu0 %v919, 32
  %v922 = vpop.permute.xlu0 %921
  %v924 = vadd.f32 %v914, %v922
  %v925 = vtanh.pop %v924
  %927 = vrot.lane.b32.xlu0 %v925, 32
  %v928 = vpop.permute.xlu0 %927
  %v930 = vmul.f32 %v912, %v928
  %932 = vrot.lane.b32.xlu0 %v930, 64
  %v933 = vpop.permute.xlu0 %932
  %935 = vst.msk [vmem:[#allocation2 + $0x30] sm:$0xff] %vm220, %v933
  %v936 = vsel %vm220, %v933, 0
  %938 = vmatprep.subr.mxu0 0.0
  %939 = vmatpush1.msra.mxu0 %v79
  %940 = vmatprep.subr.mxu0 0.0
  %941 = vmatpush1.msra.mxu0 %v80
  %942 = vmatprep.subr.mxu0 0.0
  %943 = vmatpush1.msra.mxu0 %v81
  %944 = vmatprep.subr.mxu0 0.0
  %945 = vmatpush1.msra.mxu0 %v82
  %946 = vmatprep.subr.mxu0 0.0
  %947 = vmatpush1.msra.mxu0 0.0
  %948 = vmatprep.subr.mxu0 0.0
  %949 = vmatpush1.msra.mxu0 0.0
  %950 = vmatprep.subr.mxu0 0.0
  %951 = vmatpush1.msra.mxu0 0.0
  %952 = vmatprep.subr.mxu0 0.0
  %953 = vmatpush1.msra.mxu0 0.0
  %954 = vmatprep.subr.mxu0 0.0
  %955 = vmatpush1.msra.mxu0 0.0
  %956 = vmatprep.subr.mxu0 0.0
  %957 = vmatpush1.msra.mxu0 0.0
  %958 = vmatprep.subr.mxu0 0.0
  %959 = vmatpush1.msra.mxu0 0.0
  %960 = vmatprep.subr.mxu0 0.0
  %961 = vmatpush1.msra.mxu0 0.0
  %962 = vmatprep.subr.mxu0 0.0
  %963 = vmatpush1.msra.mxu0 0.0
  %964 = vmatprep.subr.mxu0 0.0
  %965 = vmatpush1.msra.mxu0 0.0
  %966 = vmatprep.subr.mxu0 0.0
  %967 = vmatpush1.msra.mxu0 0.0
  %968 = vmatprep.subr.mxu0 0.0
  %969 = vmatpush1.msra.mxu0 0.0
  %970 = vmatprep.subr.mxu0 0.0
  %971 = vmatpush1.msra.mxu0 0.0
  %972 = vmatprep.subr.mxu0 0.0
  %973 = vmatpush1.msra.mxu0 0.0
  %974 = vmatprep.subr.mxu0 0.0
  %975 = vmatpush1.msra.mxu0 0.0
  %976 = vmatprep.subr.mxu0 0.0
  %977 = vmatpush1.msra.mxu0 0.0
  %978 = vmatprep.subr.mxu0 0.0
  %979 = vmatpush1.msra.mxu0 0.0
  %980 = vmatprep.subr.mxu0 0.0
  %981 = vmatpush1.msra.mxu0 0.0
  %982 = vmatprep.subr.mxu0 0.0
  %983 = vmatpush1.msra.mxu0 0.0
  %984 = vmatprep.subr.mxu0 0.0
  %985 = vmatpush1.msra.mxu0 0.0
  %986 = vmatprep.subr.mxu0 0.0
  %987 = vmatpush1.msra.mxu0 0.0
  %988 = vmatprep.subr.mxu0 0.0
  %989 = vmatpush1.msra.mxu0 0.0
  %990 = vmatprep.subr.mxu0 0.0
  %991 = vmatpush1.msra.mxu0 0.0
  %992 = vmatprep.subr.mxu0 0.0
  %993 = vmatpush1.msra.mxu0 0.0
  %994 = vmatprep.subr.mxu0 0.0
  %995 = vmatpush1.msra.mxu0 0.0
  %996 = vmatprep.subr.mxu0 0.0
  %997 = vmatpush1.msra.mxu0 0.0
  %998 = vmatprep.subr.mxu0 0.0
  %999 = vmatpush1.msra.mxu0 0.0
  %1000 = vmatprep.subr.mxu0 0.0
  %1001 = vmatpush1.msra.mxu0 0.0
  %1002 = vmatprep.mubr.f32.mxu0 0.0
  %1003 = vmatmul.mubr.f32.gmra.mrb[0].mxu0 %v936
  %v1004 = vpop.f32.mrb[0].mxu0
  %v1005 = vadd.f32 0.0, %v1004
  %v1006 = vpop.f32.mrb[0].mxu0
  %1007 = vdwg.mxu0
  %v1008 = vadd.f32 %v217, %v1005
  %v1009 = vxor.u32 %v1008, 2147483648
  %v1010 = vmul.f32 %v1009, 1.442695
  %v1011 = vpow.pop %v1010
  %v1012 = vadd.f32 %v1011, 1.0
  %v1013 = vrcp.pop %v1012
  %v1014 = vmul.f32 1.0, %v1013
  %v1015 = vtanh.pop %v1008
  %v1016 = vmul.f32 %v1014, %v924
  %1018 = vrot.lane.b32.xlu0 %v1015, 32
  %v1019 = vpop.permute.xlu0 %1018
  %v1021 = vmul.f32 %v1014, %v1019
  %1023 = vrot.lane.b32.xlu0 %v1021, 32
  %v1024 = vpop.permute.xlu0 %1023
  %v1026 = vadd.f32 %v1016, %v1024
  %v1027 = vtanh.pop %v1026
  %1029 = vrot.lane.b32.xlu0 %v1027, 32
  %v1030 = vpop.permute.xlu0 %1029
  %v1032 = vmul.f32 %v1014, %v1030
  %1034 = vrot.lane.b32.xlu0 %v1032, 64
  %v1035 = vpop.permute.xlu0 %1034
  %1037 = vst.msk [vmem:[#allocation2 + $0x38] sm:$0xff] %vm220, %v1035
  %v1038 = vld [vmem:[#allocation2] sm:$0xff]
  %v1039 = vld [vmem:[#allocation2 + $0x8] sm:$0xff]
  %v1040 = vld [vmem:[#allocation2 + $0x10] sm:$0xff]
  %v1041 = vld [vmem:[#allocation2 + $0x18] sm:$0xff]
  %v1042 = vld [vmem:[#allocation2 + $0x20] sm:$0xff]
  %v1043 = vld [vmem:[#allocation2 + $0x28] sm:$0xff]
  %v1044 = vld [vmem:[#allocation2 + $0x30] sm:$0xff]
  %v1045 = vld [vmem:[#allocation2 + $0x38] sm:$0xff]
  %v1046 = vld [vmem:[%s8] sm:$0xff]
  %v1047 = vld [vmem:[%s8 + $0x8] sm:$0xff]
  %v1048 = vld [vmem:[%s8 + $0x10] sm:$0xff]
  %v1049 = vld [vmem:[%s8 + $0x18] sm:$0xff]
  %v1050 = vld [vmem:[%s9] sm:$0x1]
  %v1052 = vlaneseq
  %v1053 = vshrl.u32 %v1052, 7
  %v1054 = vsub.s32 0, %v1053
  %v1055 = vrot.slane %v1050, %v1054
  %v1058 = vsel %vm220, %v1038, 0
  %v1061 = vsel %vm220, %v1039, 0
  %v1064 = vsel %vm220, %v1040, 0
  %v1067 = vsel %vm220, %v1041, 0
  %v1070 = vsel %vm220, %v1042, 0
  %v1073 = vsel %vm220, %v1043, 0
  %v1076 = vsel %vm220, %v1044, 0
  %v1079 = vsel %vm220, %v1045, 0
  %1081 = vmatprep.subr.mxu0 0.0
  %1082 = vmatpush1.msra.mxu0 %v1046
  %1083 = vmatprep.subr.mxu0 0.0
  %1084 = vmatpush1.msra.mxu0 %v1047
  %1085 = vmatprep.subr.mxu0 0.0
  %1086 = vmatpush1.msra.mxu0 %v1048
  %1087 = vmatprep.subr.mxu0 0.0
  %1088 = vmatpush1.msra.mxu0 %v1049
  %1089 = vmatprep.subr.mxu0 0.0
  %1090 = vmatpush1.msra.mxu0 0.0
  %1091 = vmatprep.subr.mxu0 0.0
  %1092 = vmatpush1.msra.mxu0 0.0
  %1093 = vmatprep.subr.mxu0 0.0
  %1094 = vmatpush1.msra.mxu0 0.0
  %1095 = vmatprep.subr.mxu0 0.0
  %1096 = vmatpush1.msra.mxu0 0.0
  %1097 = vmatprep.subr.mxu0 0.0
  %1098 = vmatpush1.msra.mxu0 0.0
  %1099 = vmatprep.subr.mxu0 0.0
  %1100 = vmatpush1.msra.mxu0 0.0
  %1101 = vmatprep.subr.mxu0 0.0
  %1102 = vmatpush1.msra.mxu0 0.0
  %1103 = vmatprep.subr.mxu0 0.0
  %1104 = vmatpush1.msra.mxu0 0.0
  %1105 = vmatprep.subr.mxu0 0.0
  %1106 = vmatpush1.msra.mxu0 0.0
  %1107 = vmatprep.subr.mxu0 0.0
  %1108 = vmatpush1.msra.mxu0 0.0
  %1109 = vmatprep.subr.mxu0 0.0
  %1110 = vmatpush1.msra.mxu0 0.0
  %1111 = vmatprep.subr.mxu0 0.0
  %1112 = vmatpush1.msra.mxu0 0.0
  %1113 = vmatprep.subr.mxu0 0.0
  %1114 = vmatpush1.msra.mxu0 0.0
  %1115 = vmatprep.subr.mxu0 0.0
  %1116 = vmatpush1.msra.mxu0 0.0
  %1117 = vmatprep.subr.mxu0 0.0
  %1118 = vmatpush1.msra.mxu0 0.0
  %1119 = vmatprep.subr.mxu0 0.0
  %1120 = vmatpush1.msra.mxu0 0.0
  %1121 = vmatprep.subr.mxu0 0.0
  %1122 = vmatpush1.msra.mxu0 0.0
  %1123 = vmatprep.subr.mxu0 0.0
  %1124 = vmatpush1.msra.mxu0 0.0
  %1125 = vmatprep.subr.mxu0 0.0
  %1126 = vmatpush1.msra.mxu0 0.0
  %1127 = vmatprep.subr.mxu0 0.0
  %1128 = vmatpush1.msra.mxu0 0.0
  %1129 = vmatprep.subr.mxu0 0.0
  %1130 = vmatpush1.msra.mxu0 0.0
  %1131 = vmatprep.subr.mxu0 0.0
  %1132 = vmatpush1.msra.mxu0 0.0
  %1133 = vmatprep.subr.mxu0 0.0
  %1134 = vmatpush1.msra.mxu0 0.0
  %1135 = vmatprep.subr.mxu0 0.0
  %1136 = vmatpush1.msra.mxu0 0.0
  %1137 = vmatprep.subr.mxu0 0.0
  %1138 = vmatpush1.msra.mxu0 0.0
  %1139 = vmatprep.subr.mxu0 0.0
  %1140 = vmatpush1.msra.mxu0 0.0
  %1141 = vmatprep.subr.mxu0 0.0
  %1142 = vmatpush1.msra.mxu0 0.0
  %1143 = vmatprep.subr.mxu0 0.0
  %1144 = vmatpush1.msra.mxu0 0.0
  %1145 = vmatprep.mubr.f32.mxu0 0.0
  %1146 = vmatmul.mubr.f32.gmra.mrb[0].mxu0 %v1058
  %v1147 = vpop.f32.mrb[0].mxu0
  %v1148 = vadd.f32 %v1055, %v1147
  %v1149 = vpop.f32.mrb[0].mxu0
  %1150 = vmatprep.mubr.f32.mxu0 0.0
  %1151 = vmatmul.mubr.f32.gmra.mrb[0].mxu0 %v1061
  %v1152 = vpop.f32.mrb[0].mxu0
  %v1153 = vadd.f32 %v1055, %v1152
  %v1154 = vpop.f32.mrb[0].mxu0
  %1155 = vmatprep.mubr.f32.mxu0 0.0
  %1156 = vmatmul.mubr.f32.gmra.mrb[0].mxu0 %v1064
  %v1157 = vpop.f32.mrb[0].mxu0
  %v1158 = vadd.f32 %v1055, %v1157
  %v1159 = vpop.f32.mrb[0].mxu0
  %1160 = vmatprep.mubr.f32.mxu0 0.0
  %1161 = vmatmul.mubr.f32.gmra.mrb[0].mxu0 %v1067
  %v1162 = vpop.f32.mrb[0].mxu0
  %v1163 = vadd.f32 %v1055, %v1162
  %v1164 = vpop.f32.mrb[0].mxu0
  %1165 = vmatprep.mubr.f32.mxu0 0.0
  %1166 = vmatmul.mubr.f32.gmra.mrb[0].mxu0 %v1070
  %v1167 = vpop.f32.mrb[0].mxu0
  %v1168 = vadd.f32 %v1055, %v1167
  %v1169 = vpop.f32.mrb[0].mxu0
  %1170 = vmatprep.mubr.f32.mxu0 0.0
  %1171 = vmatmul.mubr.f32.gmra.mrb[0].mxu0 %v1073
  %v1172 = vpop.f32.mrb[0].mxu0
  %v1173 = vadd.f32 %v1055, %v1172
  %v1174 = vpop.f32.mrb[0].mxu0
  %1175 = vmatprep.mubr.f32.mxu0 0.0
  %1176 = vmatmul.mubr.f32.gmra.mrb[0].mxu0 %v1076
  %v1177 = vpop.f32.mrb[0].mxu0
  %v1178 = vadd.f32 %v1055, %v1177
  %v1179 = vpop.f32.mrb[0].mxu0
  %1180 = vmatprep.mubr.f32.mxu0 0.0
  %1181 = vmatmul.mubr.f32.gmra.mrb[0].mxu0 %v1079
  %v1182 = vpop.f32.mrb[0].mxu0
  %v1183 = vadd.f32 %v1055, %v1182
  %v1184 = vpop.f32.mrb[0].mxu0
  %1185 = vdwg.mxu0
  %v1186 = vld [vmem:[%s10] sm:$0xff]
  %v1187 = vld [vmem:[%s10 + $0x8] sm:$0xff]
  %v1188 = vld [vmem:[%s10 + $0x10] sm:$0xff]
  %v1189 = vld [vmem:[%s10 + $0x18] sm:$0xff]
  %v1190 = vld [vmem:[%s10 + $0x20] sm:$0xff]
  %v1191 = vld [vmem:[%s10 + $0x28] sm:$0xff]
  %v1192 = vld [vmem:[%s10 + $0x30] sm:$0xff]
  %v1193 = vld [vmem:[%s10 + $0x38] sm:$0xff]
  %v1194 = vld [vmem:[%s11] sm:$0xff]
  %v1195 = vld [vmem:[%s11 + $0x8] sm:$0xff]
  %v1196 = vld [vmem:[%s12] sm:$0x1]
  %v1198 = vlaneseq
  %v1199 = vshrl.u32 %v1198, 7
  %v1200 = vsub.s32 0, %v1199
  %v1201 = vrot.slane %v1196, %v1200
  %vm1203 = vcmask 523264
  %v1205 = vsel %vm1203, %v1148, 0
  %v1208 = vsel %vm1203, %v1153, 0
  %v1211 = vsel %vm1203, %v1158, 0
  %v1214 = vsel %vm1203, %v1163, 0
  %v1217 = vsel %vm1203, %v1168, 0
  %v1220 = vsel %vm1203, %v1173, 0
  %v1223 = vsel %vm1203, %v1178, 0
  %v1226 = vsel %vm1203, %v1183, 0
  %1228 = vmatprep.subr.mxu0 0.0
  %1229 = vmatpush1.msra.mxu0 %v1186
  %1230 = vmatprep.subr.mxu0 0.0
  %1231 = vmatpush1.msra.mxu0 %v1187
  %1232 = vmatprep.subr.mxu0 0.0
  %1233 = vmatpush1.msra.mxu0 %v1188
  %1234 = vmatprep.subr.mxu0 0.0
  %1235 = vmatpush1.msra.mxu0 %v1189
  %1236 = vmatprep.subr.mxu0 0.0
  %1237 = vmatpush1.msra.mxu0 %v1190
  %1238 = vmatprep.subr.mxu0 0.0
  %1239 = vmatpush1.msra.mxu0 %v1191
  %1240 = vmatprep.subr.mxu0 0.0
  %1241 = vmatpush1.msra.mxu0 %v1192
  %1242 = vmatprep.subr.mxu0 0.0
  %1243 = vmatpush1.msra.mxu0 %v1193
  %1244 = vmatprep.subr.mxu0 0.0
  %1245 = vmatpush1.msra.mxu0 0.0
  %1246 = vmatprep.subr.mxu0 0.0
  %1247 = vmatpush1.msra.mxu0 0.0
  %1248 = vmatprep.subr.mxu0 0.0
  %1249 = vmatpush1.msra.mxu0 0.0
  %1250 = vmatprep.subr.mxu0 0.0
  %1251 = vmatpush1.msra.mxu0 0.0
  %1252 = vmatprep.subr.mxu0 0.0
  %1253 = vmatpush1.msra.mxu0 0.0
  %1254 = vmatprep.subr.mxu0 0.0
  %1255 = vmatpush1.msra.mxu0 0.0
  %1256 = vmatprep.subr.mxu0 0.0
  %1257 = vmatpush1.msra.mxu0 0.0
  %1258 = vmatprep.subr.mxu0 0.0
  %1259 = vmatpush1.msra.mxu0 0.0
  %1260 = vmatprep.subr.mxu0 0.0
  %1261 = vmatpush1.msra.mxu0 0.0
  %1262 = vmatprep.subr.mxu0 0.0
  %1263 = vmatpush1.msra.mxu0 0.0
  %1264 = vmatprep.subr.mxu0 0.0
  %1265 = vmatpush1.msra.mxu0 0.0
  %1266 = vmatprep.subr.mxu0 0.0
  %1267 = vmatpush1.msra.mxu0 0.0
  %1268 = vmatprep.subr.mxu0 0.0
  %1269 = vmatpush1.msra.mxu0 0.0
  %1270 = vmatprep.subr.mxu0 0.0
  %1271 = vmatpush1.msra.mxu0 0.0
  %1272 = vmatprep.subr.mxu0 0.0
  %1273 = vmatpush1.msra.mxu0 0.0
  %1274 = vmatprep.subr.mxu0 0.0
  %1275 = vmatpush1.msra.mxu0 0.0
  %1276 = vmatprep.subr.mxu0 0.0
  %1277 = vmatpush1.msra.mxu0 0.0
  %1278 = vmatprep.subr.mxu0 0.0
  %1279 = vmatpush1.msra.mxu0 0.0
  %1280 = vmatprep.subr.mxu0 0.0
  %1281 = vmatpush1.msra.mxu0 0.0
  %1282 = vmatprep.subr.mxu0 0.0
  %1283 = vmatpush1.msra.mxu0 0.0
  %1284 = vmatprep.subr.mxu0 0.0
  %1285 = vmatpush1.msra.mxu0 0.0
  %1286 = vmatprep.subr.mxu0 0.0
  %1287 = vmatpush1.msra.mxu0 0.0
  %1288 = vmatprep.subr.mxu0 0.0
  %1289 = vmatpush1.msra.mxu0 0.0
  %1290 = vmatprep.subr.mxu0 0.0
  %1291 = vmatpush1.msra.mxu0 0.0
  %1292 = vmatprep.mubr.f32.mxu0 0.0
  %1293 = vmatmul.mubr.f32.gmra.mrb[0].mxu0 %v1205
  %v1294 = vpop.f32.mrb[0].mxu0
  %v1295 = vadd.f32 %v1201, %v1294
  %v1296 = vpop.f32.mrb[0].mxu0
  %1297 = vmatprep.mubr.f32.mxu0 0.0
  %1298 = vmatmul.mubr.f32.gmra.mrb[0].mxu0 %v1208
  %v1299 = vpop.f32.mrb[0].mxu0
  %v1300 = vadd.f32 %v1201, %v1299
  %v1301 = vpop.f32.mrb[0].mxu0
  %1302 = vmatprep.mubr.f32.mxu0 0.0
  %1303 = vmatmul.mubr.f32.gmra.mrb[0].mxu0 %v1211
  %v1304 = vpop.f32.mrb[0].mxu0
  %v1305 = vadd.f32 %v1201, %v1304
  %v1306 = vpop.f32.mrb[0].mxu0
  %1307 = vmatprep.mubr.f32.mxu0 0.0
  %1308 = vmatmul.mubr.f32.gmra.mrb[0].mxu0 %v1214
  %v1309 = vpop.f32.mrb[0].mxu0
  %v1310 = vadd.f32 %v1201, %v1309
  %v1311 = vpop.f32.mrb[0].mxu0
  %1312 = vmatprep.mubr.f32.mxu0 0.0
  %1313 = vmatmul.mubr.f32.gmra.mrb[0].mxu0 %v1217
  %v1314 = vpop.f32.mrb[0].mxu0
  %v1315 = vadd.f32 %v1201, %v1314
  %v1316 = vpop.f32.mrb[0].mxu0
  %1317 = vmatprep.mubr.f32.mxu0 0.0
  %1318 = vmatmul.mubr.f32.gmra.mrb[0].mxu0 %v1220
  %v1319 = vpop.f32.mrb[0].mxu0
  %v1320 = vadd.f32 %v1201, %v1319
  %v1321 = vpop.f32.mrb[0].mxu0
  %1322 = vmatprep.mubr.f32.mxu0 0.0
  %1323 = vmatmul.mubr.f32.gmra.mrb[0].mxu0 %v1223
  %v1324 = vpop.f32.mrb[0].mxu0
  %v1325 = vadd.f32 %v1201, %v1324
  %v1326 = vpop.f32.mrb[0].mxu0
  %1327 = vmatprep.mubr.f32.mxu0 0.0
  %1328 = vmatmul.mubr.f32.gmra.mrb[0].mxu0 %v1226
  %v1329 = vpop.f32.mrb[0].mxu0
  %v1330 = vadd.f32 %v1201, %v1329
  %v1331 = vpop.f32.mrb[0].mxu0
  %1332 = vdwg.mxu0
  %v1333 = vsel %vm90, 0.0, 0
  %1335 = vmatprep.subr.mxu0 0.0
  %1336 = vmatpush1.msra.mxu0 %v1194
  %1337 = vmatprep.subr.mxu0 0.0
  %1338 = vmatpush1.msra.mxu0 %v1195
  %1339 = vmatprep.subr.mxu0 0.0
  %1340 = vmatpush1.msra.mxu0 0.0
  %1341 = vmatprep.subr.mxu0 0.0
  %1342 = vmatpush1.msra.mxu0 0.0
  %1343 = vmatprep.subr.mxu0 0.0
  %1344 = vmatpush1.msra.mxu0 0.0
  %1345 = vmatprep.subr.mxu0 0.0
  %1346 = vmatpush1.msra.mxu0 0.0
  %1347 = vmatprep.subr.mxu0 0.0
  %1348 = vmatpush1.msra.mxu0 0.0
  %1349 = vmatprep.subr.mxu0 0.0
  %1350 = vmatpush1.msra.mxu0 0.0
  %1351 = vmatprep.subr.mxu0 0.0
  %1352 = vmatpush1.msra.mxu0 0.0
  %1353 = vmatprep.subr.mxu0 0.0
  %1354 = vmatpush1.msra.mxu0 0.0
  %1355 = vmatprep.subr.mxu0 0.0
  %1356 = vmatpush1.msra.mxu0 0.0
  %1357 = vmatprep.subr.mxu0 0.0
  %1358 = vmatpush1.msra.mxu0 0.0
  %1359 = vmatprep.subr.mxu0 0.0
  %1360 = vmatpush1.msra.mxu0 0.0
  %1361 = vmatprep.subr.mxu0 0.0
  %1362 = vmatpush1.msra.mxu0 0.0
  %1363 = vmatprep.subr.mxu0 0.0
  %1364 = vmatpush1.msra.mxu0 0.0
  %1365 = vmatprep.subr.mxu0 0.0
  %1366 = vmatpush1.msra.mxu0 0.0
  %1367 = vmatprep.subr.mxu0 0.0
  %1368 = vmatpush1.msra.mxu0 0.0
  %1369 = vmatprep.subr.mxu0 0.0
  %1370 = vmatpush1.msra.mxu0 0.0
  %1371 = vmatprep.subr.mxu0 0.0
  %1372 = vmatpush1.msra.mxu0 0.0
  %1373 = vmatprep.subr.mxu0 0.0
  %1374 = vmatpush1.msra.mxu0 0.0
  %1375 = vmatprep.subr.mxu0 0.0
  %1376 = vmatpush1.msra.mxu0 0.0
  %1377 = vmatprep.subr.mxu0 0.0
  %1378 = vmatpush1.msra.mxu0 0.0
  %1379 = vmatprep.subr.mxu0 0.0
  %1380 = vmatpush1.msra.mxu0 0.0
  %1381 = vmatprep.subr.mxu0 0.0
  %1382 = vmatpush1.msra.mxu0 0.0
  %1383 = vmatprep.subr.mxu0 0.0
  %1384 = vmatpush1.msra.mxu0 0.0
  %1385 = vmatprep.subr.mxu0 0.0
  %1386 = vmatpush1.msra.mxu0 0.0
  %1387 = vmatprep.subr.mxu0 0.0
  %1388 = vmatpush1.msra.mxu0 0.0
  %1389 = vmatprep.subr.mxu0 0.0
  %1390 = vmatpush1.msra.mxu0 0.0
  %1391 = vmatprep.subr.mxu0 0.0
  %1392 = vmatpush1.msra.mxu0 0.0
  %1393 = vmatprep.subr.mxu0 0.0
  %1394 = vmatpush1.msra.mxu0 0.0
  %1395 = vmatprep.subr.mxu0 0.0
  %1396 = vmatpush1.msra.mxu0 0.0
  %1397 = vmatprep.subr.mxu0 0.0
  %1398 = vmatpush1.msra.mxu0 0.0
  %1399 = vmatprep.mubr.f32.mxu0 0.0
  %1400 = vmatmul.mubr.f32.gmra.mrb[0].mxu0 %v1333
  %v1401 = vpop.f32.mrb[0].mxu0
  %v1402 = vadd.f32 0.0, %v1401
  %v1403 = vpop.f32.mrb[0].mxu0
  %1404 = vdwg.mxu0
  %v1405 = vadd.f32 %v1295, %v1402
  %v1406 = vxor.u32 %v1405, 2147483648
  %v1407 = vmul.f32 %v1406, 1.442695
  %v1408 = vpow.pop %v1407
  %v1409 = vadd.f32 %v1408, 1.0
  %v1410 = vrcp.pop %v1409
  %v1411 = vmul.f32 1.0, %v1410
  %v1412 = vtanh.pop %v1405
  %v1413 = vmul.f32 %v1411, 0.0
  %1415 = vrot.lane.b32.xlu0 %v1412, 80
  %v1416 = vpop.permute.xlu0 %1415
  %v1418 = vmul.f32 %v1411, %v1416
  %1420 = vrot.lane.b32.xlu0 %v1418, 16
  %v1421 = vpop.permute.xlu0 %1420
  %v1423 = vadd.f32 %v1413, %v1421
  %v1424 = vtanh.pop %v1423
  %1426 = vrot.lane.b32.xlu0 %v1424, 16
  %v1427 = vpop.permute.xlu0 %1426
  %v1429 = vmul.f32 %v1411, %v1427
  %1431 = vrot.lane.b32.xlu0 %v1429, 96
  %v1432 = vpop.permute.xlu0 %1431
  %1434 = vst.msk [vmem:[#allocation3] sm:$0xff] %vm90, %v1432
  %v1435 = vsel %vm90, %v1432, 0
  %1437 = vmatprep.subr.mxu0 0.0
  %1438 = vmatpush1.msra.mxu0 %v1194
  %1439 = vmatprep.subr.mxu0 0.0
  %1440 = vmatpush1.msra.mxu0 %v1195
  %1441 = vmatprep.subr.mxu0 0.0
  %1442 = vmatpush1.msra.mxu0 0.0
  %1443 = vmatprep.subr.mxu0 0.0
  %1444 = vmatpush1.msra.mxu0 0.0
  %1445 = vmatprep.subr.mxu0 0.0
  %1446 = vmatpush1.msra.mxu0 0.0
  %1447 = vmatprep.subr.mxu0 0.0
  %1448 = vmatpush1.msra.mxu0 0.0
  %1449 = vmatprep.subr.mxu0 0.0
  %1450 = vmatpush1.msra.mxu0 0.0
  %1451 = vmatprep.subr.mxu0 0.0
  %1452 = vmatpush1.msra.mxu0 0.0
  %1453 = vmatprep.subr.mxu0 0.0
  %1454 = vmatpush1.msra.mxu0 0.0
  %1455 = vmatprep.subr.mxu0 0.0
  %1456 = vmatpush1.msra.mxu0 0.0
  %1457 = vmatprep.subr.mxu0 0.0
  %1458 = vmatpush1.msra.mxu0 0.0
  %1459 = vmatprep.subr.mxu0 0.0
  %1460 = vmatpush1.msra.mxu0 0.0
  %1461 = vmatprep.subr.mxu0 0.0
  %1462 = vmatpush1.msra.mxu0 0.0
  %1463 = vmatprep.subr.mxu0 0.0
  %1464 = vmatpush1.msra.mxu0 0.0
  %1465 = vmatprep.subr.mxu0 0.0
  %1466 = vmatpush1.msra.mxu0 0.0
  %1467 = vmatprep.subr.mxu0 0.0
  %1468 = vmatpush1.msra.mxu0 0.0
  %1469 = vmatprep.subr.mxu0 0.0
  %1470 = vmatpush1.msra.mxu0 0.0
  %1471 = vmatprep.subr.mxu0 0.0
  %1472 = vmatpush1.msra.mxu0 0.0
  %1473 = vmatprep.subr.mxu0 0.0
  %1474 = vmatpush1.msra.mxu0 0.0
  %1475 = vmatprep.subr.mxu0 0.0
  %1476 = vmatpush1.msra.mxu0 0.0
  %1477 = vmatprep.subr.mxu0 0.0
  %1478 = vmatpush1.msra.mxu0 0.0
  %1479 = vmatprep.subr.mxu0 0.0
  %1480 = vmatpush1.msra.mxu0 0.0
  %1481 = vmatprep.subr.mxu0 0.0
  %1482 = vmatpush1.msra.mxu0 0.0
  %1483 = vmatprep.subr.mxu0 0.0
  %1484 = vmatpush1.msra.mxu0 0.0
  %1485 = vmatprep.subr.mxu0 0.0
  %1486 = vmatpush1.msra.mxu0 0.0
  %1487 = vmatprep.subr.mxu0 0.0
  %1488 = vmatpush1.msra.mxu0 0.0
  %1489 = vmatprep.subr.mxu0 0.0
  %1490 = vmatpush1.msra.mxu0 0.0
  %1491 = vmatprep.subr.mxu0 0.0
  %1492 = vmatpush1.msra.mxu0 0.0
  %1493 = vmatprep.subr.mxu0 0.0
  %1494 = vmatpush1.msra.mxu0 0.0
  %1495 = vmatprep.subr.mxu0 0.0
  %1496 = vmatpush1.msra.mxu0 0.0
  %1497 = vmatprep.subr.mxu0 0.0
  %1498 = vmatpush1.msra.mxu0 0.0
  %1499 = vmatprep.subr.mxu0 0.0
  %1500 = vmatpush1.msra.mxu0 0.0
  %1501 = vmatprep.mubr.f32.mxu0 0.0
  %1502 = vmatmul.mubr.f32.gmra.mrb[0].mxu0 %v1435
  %v1503 = vpop.f32.mrb[0].mxu0
  %v1504 = vadd.f32 0.0, %v1503
  %v1505 = vpop.f32.mrb[0].mxu0
  %1506 = vdwg.mxu0
  %v1507 = vadd.f32 %v1300, %v1504
  %v1508 = vxor.u32 %v1507, 2147483648
  %v1509 = vmul.f32 %v1508, 1.442695
  %v1510 = vpow.pop %v1509
  %v1511 = vadd.f32 %v1510, 1.0
  %v1512 = vrcp.pop %v1511
  %v1513 = vmul.f32 1.0, %v1512
  %v1514 = vtanh.pop %v1507
  %v1515 = vmul.f32 %v1513, %v1423
  %1517 = vrot.lane.b32.xlu0 %v1514, 80
  %v1518 = vpop.permute.xlu0 %1517
  %v1520 = vmul.f32 %v1513, %v1518
  %1522 = vrot.lane.b32.xlu0 %v1520, 16
  %v1523 = vpop.permute.xlu0 %1522
  %v1525 = vadd.f32 %v1515, %v1523
  %v1526 = vtanh.pop %v1525
  %1528 = vrot.lane.b32.xlu0 %v1526, 16
  %v1529 = vpop.permute.xlu0 %1528
  %v1531 = vmul.f32 %v1513, %v1529
  %1533 = vrot.lane.b32.xlu0 %v1531, 96
  %v1534 = vpop.permute.xlu0 %1533
  %1536 = vst.msk [vmem:[#allocation3 + $0x8] sm:$0xff] %vm90, %v1534
  %v1537 = vsel %vm90, %v1534, 0
  %1539 = vmatprep.subr.mxu0 0.0
  %1540 = vmatpush1.msra.mxu0 %v1194
  %1541 = vmatprep.subr.mxu0 0.0
  %1542 = vmatpush1.msra.mxu0 %v1195
  %1543 = vmatprep.subr.mxu0 0.0
  %1544 = vmatpush1.msra.mxu0 0.0
  %1545 = vmatprep.subr.mxu0 0.0
  %1546 = vmatpush1.msra.mxu0 0.0
  %1547 = vmatprep.subr.mxu0 0.0
  %1548 = vmatpush1.msra.mxu0 0.0
  %1549 = vmatprep.subr.mxu0 0.0
  %1550 = vmatpush1.msra.mxu0 0.0
  %1551 = vmatprep.subr.mxu0 0.0
  %1552 = vmatpush1.msra.mxu0 0.0
  %1553 = vmatprep.subr.mxu0 0.0
  %1554 = vmatpush1.msra.mxu0 0.0
  %1555 = vmatprep.subr.mxu0 0.0
  %1556 = vmatpush1.msra.mxu0 0.0
  %1557 = vmatprep.subr.mxu0 0.0
  %1558 = vmatpush1.msra.mxu0 0.0
  %1559 = vmatprep.subr.mxu0 0.0
  %1560 = vmatpush1.msra.mxu0 0.0
  %1561 = vmatprep.subr.mxu0 0.0
  %1562 = vmatpush1.msra.mxu0 0.0
  %1563 = vmatprep.subr.mxu0 0.0
  %1564 = vmatpush1.msra.mxu0 0.0
  %1565 = vmatprep.subr.mxu0 0.0
  %1566 = vmatpush1.msra.mxu0 0.0
  %1567 = vmatprep.subr.mxu0 0.0
  %1568 = vmatpush1.msra.mxu0 0.0
  %1569 = vmatprep.subr.mxu0 0.0
  %1570 = vmatpush1.msra.mxu0 0.0
  %1571 = vmatprep.subr.mxu0 0.0
  %1572 = vmatpush1.msra.mxu0 0.0
  %1573 = vmatprep.subr.mxu0 0.0
  %1574 = vmatpush1.msra.mxu0 0.0
  %1575 = vmatprep.subr.mxu0 0.0
  %1576 = vmatpush1.msra.mxu0 0.0
  %1577 = vmatprep.subr.mxu0 0.0
  %1578 = vmatpush1.msra.mxu0 0.0
  %1579 = vmatprep.subr.mxu0 0.0
  %1580 = vmatpush1.msra.mxu0 0.0
  %1581 = vmatprep.subr.mxu0 0.0
  %1582 = vmatpush1.msra.mxu0 0.0
  %1583 = vmatprep.subr.mxu0 0.0
  %1584 = vmatpush1.msra.mxu0 0.0
  %1585 = vmatprep.subr.mxu0 0.0
  %1586 = vmatpush1.msra.mxu0 0.0
  %1587 = vmatprep.subr.mxu0 0.0
  %1588 = vmatpush1.msra.mxu0 0.0
  %1589 = vmatprep.subr.mxu0 0.0
  %1590 = vmatpush1.msra.mxu0 0.0
  %1591 = vmatprep.subr.mxu0 0.0
  %1592 = vmatpush1.msra.mxu0 0.0
  %1593 = vmatprep.subr.mxu0 0.0
  %1594 = vmatpush1.msra.mxu0 0.0
  %1595 = vmatprep.subr.mxu0 0.0
  %1596 = vmatpush1.msra.mxu0 0.0
  %1597 = vmatprep.subr.mxu0 0.0
  %1598 = vmatpush1.msra.mxu0 0.0
  %1599 = vmatprep.subr.mxu0 0.0
  %1600 = vmatpush1.msra.mxu0 0.0
  %1601 = vmatprep.subr.mxu0 0.0
  %1602 = vmatpush1.msra.mxu0 0.0
  %1603 = vmatprep.mubr.f32.mxu0 0.0
  %1604 = vmatmul.mubr.f32.gmra.mrb[0].mxu0 %v1537
  %v1605 = vpop.f32.mrb[0].mxu0
  %v1606 = vadd.f32 0.0, %v1605
  %v1607 = vpop.f32.mrb[0].mxu0
  %1608 = vdwg.mxu0
  %v1609 = vadd.f32 %v1305, %v1606
  %v1610 = vxor.u32 %v1609, 2147483648
  %v1611 = vmul.f32 %v1610, 1.442695
  %v1612 = vpow.pop %v1611
  %v1613 = vadd.f32 %v1612, 1.0
  %v1614 = vrcp.pop %v1613
  %v1615 = vmul.f32 1.0, %v1614
  %v1616 = vtanh.pop %v1609
  %v1617 = vmul.f32 %v1615, %v1525
  %1619 = vrot.lane.b32.xlu0 %v1616, 80
  %v1620 = vpop.permute.xlu0 %1619
  %v1622 = vmul.f32 %v1615, %v1620
  %1624 = vrot.lane.b32.xlu0 %v1622, 16
  %v1625 = vpop.permute.xlu0 %1624
  %v1627 = vadd.f32 %v1617, %v1625
  %v1628 = vtanh.pop %v1627
  %1630 = vrot.lane.b32.xlu0 %v1628, 16
  %v1631 = vpop.permute.xlu0 %1630
  %v1633 = vmul.f32 %v1615, %v1631
  %1635 = vrot.lane.b32.xlu0 %v1633, 96
  %v1636 = vpop.permute.xlu0 %1635
  %1638 = vst.msk [vmem:[#allocation3 + $0x10] sm:$0xff] %vm90, %v1636
  %v1639 = vsel %vm90, %v1636, 0
  %1641 = vmatprep.subr.mxu0 0.0
  %1642 = vmatpush1.msra.mxu0 %v1194
  %1643 = vmatprep.subr.mxu0 0.0
  %1644 = vmatpush1.msra.mxu0 %v1195
  %1645 = vmatprep.subr.mxu0 0.0
  %1646 = vmatpush1.msra.mxu0 0.0
  %1647 = vmatprep.subr.mxu0 0.0
  %1648 = vmatpush1.msra.mxu0 0.0
  %1649 = vmatprep.subr.mxu0 0.0
  %1650 = vmatpush1.msra.mxu0 0.0
  %1651 = vmatprep.subr.mxu0 0.0
  %1652 = vmatpush1.msra.mxu0 0.0
  %1653 = vmatprep.subr.mxu0 0.0
  %1654 = vmatpush1.msra.mxu0 0.0
  %1655 = vmatprep.subr.mxu0 0.0
  %1656 = vmatpush1.msra.mxu0 0.0
  %1657 = vmatprep.subr.mxu0 0.0
  %1658 = vmatpush1.msra.mxu0 0.0
  %1659 = vmatprep.subr.mxu0 0.0
  %1660 = vmatpush1.msra.mxu0 0.0
  %1661 = vmatprep.subr.mxu0 0.0
  %1662 = vmatpush1.msra.mxu0 0.0
  %1663 = vmatprep.subr.mxu0 0.0
  %1664 = vmatpush1.msra.mxu0 0.0
  %1665 = vmatprep.subr.mxu0 0.0
  %1666 = vmatpush1.msra.mxu0 0.0
  %1667 = vmatprep.subr.mxu0 0.0
  %1668 = vmatpush1.msra.mxu0 0.0
  %1669 = vmatprep.subr.mxu0 0.0
  %1670 = vmatpush1.msra.mxu0 0.0
  %1671 = vmatprep.subr.mxu0 0.0
  %1672 = vmatpush1.msra.mxu0 0.0
  %1673 = vmatprep.subr.mxu0 0.0
  %1674 = vmatpush1.msra.mxu0 0.0
  %1675 = vmatprep.subr.mxu0 0.0
  %1676 = vmatpush1.msra.mxu0 0.0
  %1677 = vmatprep.subr.mxu0 0.0
  %1678 = vmatpush1.msra.mxu0 0.0
  %1679 = vmatprep.subr.mxu0 0.0
  %1680 = vmatpush1.msra.mxu0 0.0
  %1681 = vmatprep.subr.mxu0 0.0
  %1682 = vmatpush1.msra.mxu0 0.0
  %1683 = vmatprep.subr.mxu0 0.0
  %1684 = vmatpush1.msra.mxu0 0.0
  %1685 = vmatprep.subr.mxu0 0.0
  %1686 = vmatpush1.msra.mxu0 0.0
  %1687 = vmatprep.subr.mxu0 0.0
  %1688 = vmatpush1.msra.mxu0 0.0
  %1689 = vmatprep.subr.mxu0 0.0
  %1690 = vmatpush1.msra.mxu0 0.0
  %1691 = vmatprep.subr.mxu0 0.0
  %1692 = vmatpush1.msra.mxu0 0.0
  %1693 = vmatprep.subr.mxu0 0.0
  %1694 = vmatpush1.msra.mxu0 0.0
  %1695 = vmatprep.subr.mxu0 0.0
  %1696 = vmatpush1.msra.mxu0 0.0
  %1697 = vmatprep.subr.mxu0 0.0
  %1698 = vmatpush1.msra.mxu0 0.0
  %1699 = vmatprep.subr.mxu0 0.0
  %1700 = vmatpush1.msra.mxu0 0.0
  %1701 = vmatprep.subr.mxu0 0.0
  %1702 = vmatpush1.msra.mxu0 0.0
  %1703 = vmatprep.subr.mxu0 0.0
  %1704 = vmatpush1.msra.mxu0 0.0
  %1705 = vmatprep.mubr.f32.mxu0 0.0
  %1706 = vmatmul.mubr.f32.gmra.mrb[0].mxu0 %v1639
  %v1707 = vpop.f32.mrb[0].mxu0
  %v1708 = vadd.f32 0.0, %v1707
  %v1709 = vpop.f32.mrb[0].mxu0
  %1710 = vdwg.mxu0
  %v1711 = vadd.f32 %v1310, %v1708
  %v1712 = vxor.u32 %v1711, 2147483648
  %v1713 = vmul.f32 %v1712, 1.442695
  %v1714 = vpow.pop %v1713
  %v1715 = vadd.f32 %v1714, 1.0
  %v1716 = vrcp.pop %v1715
  %v1717 = vmul.f32 1.0, %v1716
  %v1718 = vtanh.pop %v1711
  %v1719 = vmul.f32 %v1717, %v1627
  %1721 = vrot.lane.b32.xlu0 %v1718, 80
  %v1722 = vpop.permute.xlu0 %1721
  %v1724 = vmul.f32 %v1717, %v1722
  %1726 = vrot.lane.b32.xlu0 %v1724, 16
  %v1727 = vpop.permute.xlu0 %1726
  %v1729 = vadd.f32 %v1719, %v1727
  %v1730 = vtanh.pop %v1729
  %1732 = vrot.lane.b32.xlu0 %v1730, 16
  %v1733 = vpop.permute.xlu0 %1732
  %v1735 = vmul.f32 %v1717, %v1733
  %1737 = vrot.lane.b32.xlu0 %v1735, 96
  %v1738 = vpop.permute.xlu0 %1737
  %1740 = vst.msk [vmem:[#allocation3 + $0x18] sm:$0xff] %vm90, %v1738
  %v1741 = vsel %vm90, %v1738, 0
  %1743 = vmatprep.subr.mxu0 0.0
  %1744 = vmatpush1.msra.mxu0 %v1194
  %1745 = vmatprep.subr.mxu0 0.0
  %1746 = vmatpush1.msra.mxu0 %v1195
  %1747 = vmatprep.subr.mxu0 0.0
  %1748 = vmatpush1.msra.mxu0 0.0
  %1749 = vmatprep.subr.mxu0 0.0
  %1750 = vmatpush1.msra.mxu0 0.0
  %1751 = vmatprep.subr.mxu0 0.0
  %1752 = vmatpush1.msra.mxu0 0.0
  %1753 = vmatprep.subr.mxu0 0.0
  %1754 = vmatpush1.msra.mxu0 0.0
  %1755 = vmatprep.subr.mxu0 0.0
  %1756 = vmatpush1.msra.mxu0 0.0
  %1757 = vmatprep.subr.mxu0 0.0
  %1758 = vmatpush1.msra.mxu0 0.0
  %1759 = vmatprep.subr.mxu0 0.0
  %1760 = vmatpush1.msra.mxu0 0.0
  %1761 = vmatprep.subr.mxu0 0.0
  %1762 = vmatpush1.msra.mxu0 0.0
  %1763 = vmatprep.subr.mxu0 0.0
  %1764 = vmatpush1.msra.mxu0 0.0
  %1765 = vmatprep.subr.mxu0 0.0
  %1766 = vmatpush1.msra.mxu0 0.0
  %1767 = vmatprep.subr.mxu0 0.0
  %1768 = vmatpush1.msra.mxu0 0.0
  %1769 = vmatprep.subr.mxu0 0.0
  %1770 = vmatpush1.msra.mxu0 0.0
  %1771 = vmatprep.subr.mxu0 0.0
  %1772 = vmatpush1.msra.mxu0 0.0
  %1773 = vmatprep.subr.mxu0 0.0
  %1774 = vmatpush1.msra.mxu0 0.0
  %1775 = vmatprep.subr.mxu0 0.0
  %1776 = vmatpush1.msra.mxu0 0.0
  %1777 = vmatprep.subr.mxu0 0.0
  %1778 = vmatpush1.msra.mxu0 0.0
  %1779 = vmatprep.subr.mxu0 0.0
  %1780 = vmatpush1.msra.mxu0 0.0
  %1781 = vmatprep.subr.mxu0 0.0
  %1782 = vmatpush1.msra.mxu0 0.0
  %1783 = vmatprep.subr.mxu0 0.0
  %1784 = vmatpush1.msra.mxu0 0.0
  %1785 = vmatprep.subr.mxu0 0.0
  %1786 = vmatpush1.msra.mxu0 0.0
  %1787 = vmatprep.subr.mxu0 0.0
  %1788 = vmatpush1.msra.mxu0 0.0
  %1789 = vmatprep.subr.mxu0 0.0
  %1790 = vmatpush1.msra.mxu0 0.0
  %1791 = vmatprep.subr.mxu0 0.0
  %1792 = vmatpush1.msra.mxu0 0.0
  %1793 = vmatprep.subr.mxu0 0.0
  %1794 = vmatpush1.msra.mxu0 0.0
  %1795 = vmatprep.subr.mxu0 0.0
  %1796 = vmatpush1.msra.mxu0 0.0
  %1797 = vmatprep.subr.mxu0 0.0
  %1798 = vmatpush1.msra.mxu0 0.0
  %1799 = vmatprep.subr.mxu0 0.0
  %1800 = vmatpush1.msra.mxu0 0.0
  %1801 = vmatprep.subr.mxu0 0.0
  %1802 = vmatpush1.msra.mxu0 0.0
  %1803 = vmatprep.subr.mxu0 0.0
  %1804 = vmatpush1.msra.mxu0 0.0
  %1805 = vmatprep.subr.mxu0 0.0
  %1806 = vmatpush1.msra.mxu0 0.0
  %1807 = vmatprep.mubr.f32.mxu0 0.0
  %1808 = vmatmul.mubr.f32.gmra.mrb[0].mxu0 %v1741
  %v1809 = vpop.f32.mrb[0].mxu0
  %v1810 = vadd.f32 0.0, %v1809
  %v1811 = vpop.f32.mrb[0].mxu0
  %1812 = vdwg.mxu0
  %v1813 = vadd.f32 %v1315, %v1810
  %v1814 = vxor.u32 %v1813, 2147483648
  %v1815 = vmul.f32 %v1814, 1.442695
  %v1816 = vpow.pop %v1815
  %v1817 = vadd.f32 %v1816, 1.0
  %v1818 = vrcp.pop %v1817
  %v1819 = vmul.f32 1.0, %v1818
  %v1820 = vtanh.pop %v1813
  %v1821 = vmul.f32 %v1819, %v1729
  %1823 = vrot.lane.b32.xlu0 %v1820, 80
  %v1824 = vpop.permute.xlu0 %1823
  %v1826 = vmul.f32 %v1819, %v1824
  %1828 = vrot.lane.b32.xlu0 %v1826, 16
  %v1829 = vpop.permute.xlu0 %1828
  %v1831 = vadd.f32 %v1821, %v1829
  %v1832 = vtanh.pop %v1831
  %1834 = vrot.lane.b32.xlu0 %v1832, 16
  %v1835 = vpop.permute.xlu0 %1834
  %v1837 = vmul.f32 %v1819, %v1835
  %1839 = vrot.lane.b32.xlu0 %v1837, 96
  %v1840 = vpop.permute.xlu0 %1839
  %1842 = vst.msk [vmem:[#allocation3 + $0x20] sm:$0xff] %vm90, %v1840
  %v1843 = vsel %vm90, %v1840, 0
  %1845 = vmatprep.subr.mxu0 0.0
  %1846 = vmatpush1.msra.mxu0 %v1194
  %1847 = vmatprep.subr.mxu0 0.0
  %1848 = vmatpush1.msra.mxu0 %v1195
  %1849 = vmatprep.subr.mxu0 0.0
  %1850 = vmatpush1.msra.mxu0 0.0
  %1851 = vmatprep.subr.mxu0 0.0
  %1852 = vmatpush1.msra.mxu0 0.0
  %1853 = vmatprep.subr.mxu0 0.0
  %1854 = vmatpush1.msra.mxu0 0.0
  %1855 = vmatprep.subr.mxu0 0.0
  %1856 = vmatpush1.msra.mxu0 0.0
  %1857 = vmatprep.subr.mxu0 0.0
  %1858 = vmatpush1.msra.mxu0 0.0
  %1859 = vmatprep.subr.mxu0 0.0
  %1860 = vmatpush1.msra.mxu0 0.0
  %1861 = vmatprep.subr.mxu0 0.0
  %1862 = vmatpush1.msra.mxu0 0.0
  %1863 = vmatprep.subr.mxu0 0.0
  %1864 = vmatpush1.msra.mxu0 0.0
  %1865 = vmatprep.subr.mxu0 0.0
  %1866 = vmatpush1.msra.mxu0 0.0
  %1867 = vmatprep.subr.mxu0 0.0
  %1868 = vmatpush1.msra.mxu0 0.0
  %1869 = vmatprep.subr.mxu0 0.0
  %1870 = vmatpush1.msra.mxu0 0.0
  %1871 = vmatprep.subr.mxu0 0.0
  %1872 = vmatpush1.msra.mxu0 0.0
  %1873 = vmatprep.subr.mxu0 0.0
  %1874 = vmatpush1.msra.mxu0 0.0
  %1875 = vmatprep.subr.mxu0 0.0
  %1876 = vmatpush1.msra.mxu0 0.0
  %1877 = vmatprep.subr.mxu0 0.0
  %1878 = vmatpush1.msra.mxu0 0.0
  %1879 = vmatprep.subr.mxu0 0.0
  %1880 = vmatpush1.msra.mxu0 0.0
  %1881 = vmatprep.subr.mxu0 0.0
  %1882 = vmatpush1.msra.mxu0 0.0
  %1883 = vmatprep.subr.mxu0 0.0
  %1884 = vmatpush1.msra.mxu0 0.0
  %1885 = vmatprep.subr.mxu0 0.0
  %1886 = vmatpush1.msra.mxu0 0.0
  %1887 = vmatprep.subr.mxu0 0.0
  %1888 = vmatpush1.msra.mxu0 0.0
  %1889 = vmatprep.subr.mxu0 0.0
  %1890 = vmatpush1.msra.mxu0 0.0
  %1891 = vmatprep.subr.mxu0 0.0
  %1892 = vmatpush1.msra.mxu0 0.0
  %1893 = vmatprep.subr.mxu0 0.0
  %1894 = vmatpush1.msra.mxu0 0.0
  %1895 = vmatprep.subr.mxu0 0.0
  %1896 = vmatpush1.msra.mxu0 0.0
  %1897 = vmatprep.subr.mxu0 0.0
  %1898 = vmatpush1.msra.mxu0 0.0
  %1899 = vmatprep.subr.mxu0 0.0
  %1900 = vmatpush1.msra.mxu0 0.0
  %1901 = vmatprep.subr.mxu0 0.0
  %1902 = vmatpush1.msra.mxu0 0.0
  %1903 = vmatprep.subr.mxu0 0.0
  %1904 = vmatpush1.msra.mxu0 0.0
  %1905 = vmatprep.subr.mxu0 0.0
  %1906 = vmatpush1.msra.mxu0 0.0
  %1907 = vmatprep.subr.mxu0 0.0
  %1908 = vmatpush1.msra.mxu0 0.0
  %1909 = vmatprep.mubr.f32.mxu0 0.0
  %1910 = vmatmul.mubr.f32.gmra.mrb[0].mxu0 %v1843
  %v1911 = vpop.f32.mrb[0].mxu0
  %v1912 = vadd.f32 0.0, %v1911
  %v1913 = vpop.f32.mrb[0].mxu0
  %1914 = vdwg.mxu0
  %v1915 = vadd.f32 %v1320, %v1912
  %v1916 = vxor.u32 %v1915, 2147483648
  %v1917 = vmul.f32 %v1916, 1.442695
  %v1918 = vpow.pop %v1917
  %v1919 = vadd.f32 %v1918, 1.0
  %v1920 = vrcp.pop %v1919
  %v1921 = vmul.f32 1.0, %v1920
  %v1922 = vtanh.pop %v1915
  %v1923 = vmul.f32 %v1921, %v1831
  %1925 = vrot.lane.b32.xlu0 %v1922, 80
  %v1926 = vpop.permute.xlu0 %1925
  %v1928 = vmul.f32 %v1921, %v1926
  %1930 = vrot.lane.b32.xlu0 %v1928, 16
  %v1931 = vpop.permute.xlu0 %1930
  %v1933 = vadd.f32 %v1923, %v1931
  %v1934 = vtanh.pop %v1933
  %1936 = vrot.lane.b32.xlu0 %v1934, 16
  %v1937 = vpop.permute.xlu0 %1936
  %v1939 = vmul.f32 %v1921, %v1937
  %1941 = vrot.lane.b32.xlu0 %v1939, 96
  %v1942 = vpop.permute.xlu0 %1941
  %1944 = vst.msk [vmem:[#allocation3 + $0x28] sm:$0xff] %vm90, %v1942
  %v1945 = vsel %vm90, %v1942, 0
  %1947 = vmatprep.subr.mxu0 0.0
  %1948 = vmatpush1.msra.mxu0 %v1194
  %1949 = vmatprep.subr.mxu0 0.0
  %1950 = vmatpush1.msra.mxu0 %v1195
  %1951 = vmatprep.subr.mxu0 0.0
  %1952 = vmatpush1.msra.mxu0 0.0
  %1953 = vmatprep.subr.mxu0 0.0
  %1954 = vmatpush1.msra.mxu0 0.0
  %1955 = vmatprep.subr.mxu0 0.0
  %1956 = vmatpush1.msra.mxu0 0.0
  %1957 = vmatprep.subr.mxu0 0.0
  %1958 = vmatpush1.msra.mxu0 0.0
  %1959 = vmatprep.subr.mxu0 0.0
  %1960 = vmatpush1.msra.mxu0 0.0
  %1961 = vmatprep.subr.mxu0 0.0
  %1962 = vmatpush1.msra.mxu0 0.0
  %1963 = vmatprep.subr.mxu0 0.0
  %1964 = vmatpush1.msra.mxu0 0.0
  %1965 = vmatprep.subr.mxu0 0.0
  %1966 = vmatpush1.msra.mxu0 0.0
  %1967 = vmatprep.subr.mxu0 0.0
  %1968 = vmatpush1.msra.mxu0 0.0
  %1969 = vmatprep.subr.mxu0 0.0
  %1970 = vmatpush1.msra.mxu0 0.0
  %1971 = vmatprep.subr.mxu0 0.0
  %1972 = vmatpush1.msra.mxu0 0.0
  %1973 = vmatprep.subr.mxu0 0.0
  %1974 = vmatpush1.msra.mxu0 0.0
  %1975 = vmatprep.subr.mxu0 0.0
  %1976 = vmatpush1.msra.mxu0 0.0
  %1977 = vmatprep.subr.mxu0 0.0
  %1978 = vmatpush1.msra.mxu0 0.0
  %1979 = vmatprep.subr.mxu0 0.0
  %1980 = vmatpush1.msra.mxu0 0.0
  %1981 = vmatprep.subr.mxu0 0.0
  %1982 = vmatpush1.msra.mxu0 0.0
  %1983 = vmatprep.subr.mxu0 0.0
  %1984 = vmatpush1.msra.mxu0 0.0
  %1985 = vmatprep.subr.mxu0 0.0
  %1986 = vmatpush1.msra.mxu0 0.0
  %1987 = vmatprep.subr.mxu0 0.0
  %1988 = vmatpush1.msra.mxu0 0.0
  %1989 = vmatprep.subr.mxu0 0.0
  %1990 = vmatpush1.msra.mxu0 0.0
  %1991 = vmatprep.subr.mxu0 0.0
  %1992 = vmatpush1.msra.mxu0 0.0
  %1993 = vmatprep.subr.mxu0 0.0
  %1994 = vmatpush1.msra.mxu0 0.0
  %1995 = vmatprep.subr.mxu0 0.0
  %1996 = vmatpush1.msra.mxu0 0.0
  %1997 = vmatprep.subr.mxu0 0.0
  %1998 = vmatpush1.msra.mxu0 0.0
  %1999 = vmatprep.subr.mxu0 0.0
  %2000 = vmatpush1.msra.mxu0 0.0
  %2001 = vmatprep.subr.mxu0 0.0
  %2002 = vmatpush1.msra.mxu0 0.0
  %2003 = vmatprep.subr.mxu0 0.0
  %2004 = vmatpush1.msra.mxu0 0.0
  %2005 = vmatprep.subr.mxu0 0.0
  %2006 = vmatpush1.msra.mxu0 0.0
  %2007 = vmatprep.subr.mxu0 0.0
  %2008 = vmatpush1.msra.mxu0 0.0
  %2009 = vmatprep.subr.mxu0 0.0
  %2010 = vmatpush1.msra.mxu0 0.0
  %2011 = vmatprep.mubr.f32.mxu0 0.0
  %2012 = vmatmul.mubr.f32.gmra.mrb[0].mxu0 %v1945
  %v2013 = vpop.f32.mrb[0].mxu0
  %v2014 = vadd.f32 0.0, %v2013
  %v2015 = vpop.f32.mrb[0].mxu0
  %2016 = vdwg.mxu0
  %v2017 = vadd.f32 %v1325, %v2014
  %v2018 = vxor.u32 %v2017, 2147483648
  %v2019 = vmul.f32 %v2018, 1.442695
  %v2020 = vpow.pop %v2019
  %v2021 = vadd.f32 %v2020, 1.0
  %v2022 = vrcp.pop %v2021
  %v2023 = vmul.f32 1.0, %v2022
  %v2024 = vtanh.pop %v2017
  %v2025 = vmul.f32 %v2023, %v1933
  %2027 = vrot.lane.b32.xlu0 %v2024, 80
  %v2028 = vpop.permute.xlu0 %2027
  %v2030 = vmul.f32 %v2023, %v2028
  %2032 = vrot.lane.b32.xlu0 %v2030, 16
  %v2033 = vpop.permute.xlu0 %2032
  %v2035 = vadd.f32 %v2025, %v2033
  %v2036 = vtanh.pop %v2035
  %2038 = vrot.lane.b32.xlu0 %v2036, 16
  %v2039 = vpop.permute.xlu0 %2038
  %v2041 = vmul.f32 %v2023, %v2039
  %2043 = vrot.lane.b32.xlu0 %v2041, 96
  %v2044 = vpop.permute.xlu0 %2043
  %2046 = vst.msk [vmem:[#allocation3 + $0x30] sm:$0xff] %vm90, %v2044
  %v2047 = vsel %vm90, %v2044, 0
  %2049 = vmatprep.subr.mxu0 0.0
  %2050 = vmatpush1.msra.mxu0 %v1194
  %2051 = vmatprep.subr.mxu0 0.0
  %2052 = vmatpush1.msra.mxu0 %v1195
  %2053 = vmatprep.subr.mxu0 0.0
  %2054 = vmatpush1.msra.mxu0 0.0
  %2055 = vmatprep.subr.mxu0 0.0
  %2056 = vmatpush1.msra.mxu0 0.0
  %2057 = vmatprep.subr.mxu0 0.0
  %2058 = vmatpush1.msra.mxu0 0.0
  %2059 = vmatprep.subr.mxu0 0.0
  %2060 = vmatpush1.msra.mxu0 0.0
  %2061 = vmatprep.subr.mxu0 0.0
  %2062 = vmatpush1.msra.mxu0 0.0
  %2063 = vmatprep.subr.mxu0 0.0
  %2064 = vmatpush1.msra.mxu0 0.0
  %2065 = vmatprep.subr.mxu0 0.0
  %2066 = vmatpush1.msra.mxu0 0.0
  %2067 = vmatprep.subr.mxu0 0.0
  %2068 = vmatpush1.msra.mxu0 0.0
  %2069 = vmatprep.subr.mxu0 0.0
  %2070 = vmatpush1.msra.mxu0 0.0
  %2071 = vmatprep.subr.mxu0 0.0
  %2072 = vmatpush1.msra.mxu0 0.0
  %2073 = vmatprep.subr.mxu0 0.0
  %2074 = vmatpush1.msra.mxu0 0.0
  %2075 = vmatprep.subr.mxu0 0.0
  %2076 = vmatpush1.msra.mxu0 0.0
  %2077 = vmatprep.subr.mxu0 0.0
  %2078 = vmatpush1.msra.mxu0 0.0
  %2079 = vmatprep.subr.mxu0 0.0
  %2080 = vmatpush1.msra.mxu0 0.0
  %2081 = vmatprep.subr.mxu0 0.0
  %2082 = vmatpush1.msra.mxu0 0.0
  %2083 = vmatprep.subr.mxu0 0.0
  %2084 = vmatpush1.msra.mxu0 0.0
  %2085 = vmatprep.subr.mxu0 0.0
  %2086 = vmatpush1.msra.mxu0 0.0
  %2087 = vmatprep.subr.mxu0 0.0
  %2088 = vmatpush1.msra.mxu0 0.0
  %2089 = vmatprep.subr.mxu0 0.0
  %2090 = vmatpush1.msra.mxu0 0.0
  %2091 = vmatprep.subr.mxu0 0.0
  %2092 = vmatpush1.msra.mxu0 0.0
  %2093 = vmatprep.subr.mxu0 0.0
  %2094 = vmatpush1.msra.mxu0 0.0
  %2095 = vmatprep.subr.mxu0 0.0
  %2096 = vmatpush1.msra.mxu0 0.0
  %2097 = vmatprep.subr.mxu0 0.0
  %2098 = vmatpush1.msra.mxu0 0.0
  %2099 = vmatprep.subr.mxu0 0.0
  %2100 = vmatpush1.msra.mxu0 0.0
  %2101 = vmatprep.subr.mxu0 0.0
  %2102 = vmatpush1.msra.mxu0 0.0
  %2103 = vmatprep.subr.mxu0 0.0
  %2104 = vmatpush1.msra.mxu0 0.0
  %2105 = vmatprep.subr.mxu0 0.0
  %2106 = vmatpush1.msra.mxu0 0.0
  %2107 = vmatprep.subr.mxu0 0.0
  %2108 = vmatpush1.msra.mxu0 0.0
  %2109 = vmatprep.subr.mxu0 0.0
  %2110 = vmatpush1.msra.mxu0 0.0
  %2111 = vmatprep.subr.mxu0 0.0
  %2112 = vmatpush1.msra.mxu0 0.0
  %2113 = vmatprep.mubr.f32.mxu0 0.0
  %2114 = vmatmul.mubr.f32.gmra.mrb[0].mxu0 %v2047
  %v2115 = vpop.f32.mrb[0].mxu0
  %v2116 = vadd.f32 0.0, %v2115
  %v2117 = vpop.f32.mrb[0].mxu0
  %2118 = vdwg.mxu0
  %v2119 = vadd.f32 %v1330, %v2116
  %v2120 = vxor.u32 %v2119, 2147483648
  %v2121 = vmul.f32 %v2120, 1.442695
  %v2122 = vpow.pop %v2121
  %v2123 = vadd.f32 %v2122, 1.0
  %v2124 = vrcp.pop %v2123
  %v2125 = vmul.f32 1.0, %v2124
  %v2126 = vtanh.pop %v2119
  %v2127 = vmul.f32 %v2125, %v2035
  %2129 = vrot.lane.b32.xlu0 %v2126, 80
  %v2130 = vpop.permute.xlu0 %2129
  %v2132 = vmul.f32 %v2125, %v2130
  %2134 = vrot.lane.b32.xlu0 %v2132, 16
  %v2135 = vpop.permute.xlu0 %2134
  %v2137 = vadd.f32 %v2127, %v2135
  %v2138 = vtanh.pop %v2137
  %2140 = vrot.lane.b32.xlu0 %v2138, 16
  %v2141 = vpop.permute.xlu0 %2140
  %v2143 = vmul.f32 %v2125, %v2141
  %2145 = vrot.lane.b32.xlu0 %v2143, 96
  %v2146 = vpop.permute.xlu0 %2145
  %2148 = vst.msk [vmem:[#allocation3 + $0x38] sm:$0xff] %vm90, %v2146
  %v2149 = vld [vmem:[#allocation3] sm:$0xff]
  %v2150 = vld [vmem:[#allocation3 + $0x8] sm:$0xff]
  %v2151 = vld [vmem:[#allocation3 + $0x10] sm:$0xff]
  %v2152 = vld [vmem:[#allocation3 + $0x18] sm:$0xff]
  %v2153 = vld [vmem:[#allocation3 + $0x20] sm:$0xff]
  %v2154 = vld [vmem:[#allocation3 + $0x28] sm:$0xff]
  %v2155 = vld [vmem:[#allocation3 + $0x30] sm:$0xff]
  %v2156 = vld [vmem:[#allocation3 + $0x38] sm:$0xff]
  %v2157 = vmul.f32 %v2149, 0.5
  %v2158 = vmul.f32 %v2150, 0.5
  %v2159 = vmul.f32 %v2151, 0.5
  %v2160 = vmul.f32 %v2152, 0.5
  %v2161 = vmul.f32 %v2153, 0.5
  %v2162 = vmul.f32 %v2154, 0.5
  %v2163 = vmul.f32 %v2155, 0.5
  %v2164 = vmul.f32 %v2156, 0.5
  %v2165 = vmul.f32 %v2157, 1.442695
  %v2166 = vpow.pop %v2165
  %v2167 = vmul.f32 %v2158, 1.442695
  %v2168 = vpow.pop %v2167
  %v2169 = vmul.f32 %v2159, 1.442695
  %v2170 = vpow.pop %v2169
  %v2171 = vmul.f32 %v2160, 1.442695
  %v2172 = vpow.pop %v2171
  %v2173 = vmul.f32 %v2161, 1.442695
  %v2174 = vpow.pop %v2173
  %v2175 = vmul.f32 %v2162, 1.442695
  %v2176 = vpow.pop %v2175
  %v2177 = vmul.f32 %v2163, 1.442695
  %v2178 = vpow.pop %v2177
  %v2179 = vmul.f32 %v2164, 1.442695
  %v2180 = vpow.pop %v2179
  %v2181 = vld [vmem:[%s2] sm:$0xff]
  %v2182 = vld [vmem:[%s2 + $0x8] sm:$0xff]
  %v2183 = vld [vmem:[%s2 + $0x10] sm:$0xff]
  %v2184 = vld [vmem:[%s2 + $0x18] sm:$0xff]
  %v2185 = vld [vmem:[%s2 + $0x20] sm:$0xff]
  %v2186 = vld [vmem:[%s2 + $0x28] sm:$0xff]
  %v2187 = vld [vmem:[%s2 + $0x30] sm:$0xff]
  %v2188 = vld [vmem:[%s2 + $0x38] sm:$0xff]
  %2197 = vrot.lane.b32.xlu0 %v2166, 120
  %v2198 = vpop.permute.xlu0 %2197
  %2199 = vrot.lane.b32.xlu0 %v2168, 120
  %v2200 = vpop.permute.xlu0 %2199
  %2201 = vrot.lane.b32.xlu0 %v2170, 120
  %v2202 = vpop.permute.xlu0 %2201
  %2203 = vrot.lane.b32.xlu0 %v2172, 120
  %v2204 = vpop.permute.xlu0 %2203
  %2205 = vrot.lane.b32.xlu0 %v2174, 120
  %v2206 = vpop.permute.xlu0 %2205
  %2207 = vrot.lane.b32.xlu0 %v2176, 120
  %v2208 = vpop.permute.xlu0 %2207
  %2209 = vrot.lane.b32.xlu0 %v2178, 120
  %v2210 = vpop.permute.xlu0 %2209
  %2211 = vrot.lane.b32.xlu0 %v2180, 120
  %v2212 = vpop.permute.xlu0 %2211
  %v2221 = vmul.f32 %v2181, %v2198
  %v2222 = vmul.f32 %v2182, %v2200
  %v2223 = vmul.f32 %v2183, %v2202
  %v2224 = vmul.f32 %v2184, %v2204
  %v2225 = vmul.f32 %v2185, %v2206
  %v2226 = vmul.f32 %v2186, %v2208
  %v2227 = vmul.f32 %v2187, %v2210
  %v2228 = vmul.f32 %v2188, %v2212
  %v2229 = vadd.f32 %v2221, %v2149
  %v2230 = vadd.f32 %v2222, %v2150
  %v2231 = vadd.f32 %v2223, %v2151
  %v2232 = vadd.f32 %v2224, %v2152
  %v2233 = vadd.f32 %v2225, %v2153
  %v2234 = vadd.f32 %v2226, %v2154
  %v2235 = vadd.f32 %v2227, %v2155
  %v2236 = vadd.f32 %v2228, %v2156
  %v2237 = vsub.f32 -1.0, %v2149
  %v2238 = vsub.f32 -1.0, %v2150
  %v2239 = vsub.f32 -1.0, %v2151
  %v2240 = vsub.f32 -1.0, %v2152
  %v2241 = vsub.f32 -1.0, %v2153
  %v2242 = vsub.f32 -1.0, %v2154
  %v2243 = vsub.f32 -1.0, %v2155
  %v2244 = vsub.f32 -1.0, %v2156
  %v2245 = vmul.f32 %v2149, %v2149
  %v2246 = vmul.f32 %v2150, %v2150
  %v2247 = vmul.f32 %v2151, %v2151
  %v2248 = vmul.f32 %v2152, %v2152
  %v2249 = vmul.f32 %v2153, %v2153
  %v2250 = vmul.f32 %v2154, %v2154
  %v2251 = vmul.f32 %v2155, %v2155
  %v2252 = vmul.f32 %v2156, %v2156
  %2261 = vrot.lane.b32.xlu0 %v2245, 8
  %v2262 = vpop.permute.xlu0 %2261
  %2263 = vrot.lane.b32.xlu0 %v2246, 8
  %v2264 = vpop.permute.xlu0 %2263
  %2265 = vrot.lane.b32.xlu0 %v2247, 8
  %v2266 = vpop.permute.xlu0 %2265
  %2267 = vrot.lane.b32.xlu0 %v2248, 8
  %v2268 = vpop.permute.xlu0 %2267
  %2269 = vrot.lane.b32.xlu0 %v2249, 8
  %v2270 = vpop.permute.xlu0 %2269
  %2271 = vrot.lane.b32.xlu0 %v2250, 8
  %v2272 = vpop.permute.xlu0 %2271
  %2273 = vrot.lane.b32.xlu0 %v2251, 8
  %v2274 = vpop.permute.xlu0 %2273
  %2275 = vrot.lane.b32.xlu0 %v2252, 8
  %v2276 = vpop.permute.xlu0 %2275
  %v2285 = vadd.f32 %v2237, %v2262
  %v2286 = vadd.f32 %v2238, %v2264
  %v2287 = vadd.f32 %v2239, %v2266
  %v2288 = vadd.f32 %v2240, %v2268
  %v2289 = vadd.f32 %v2241, %v2270
  %v2290 = vadd.f32 %v2242, %v2272
  %v2291 = vadd.f32 %v2243, %v2274
  %v2292 = vadd.f32 %v2244, %v2276
  %v2293 = vmul.f32 %v2166, %v2166
  %v2294 = vmul.f32 %v2168, %v2168
  %v2295 = vmul.f32 %v2170, %v2170
  %v2296 = vmul.f32 %v2172, %v2172
  %v2297 = vmul.f32 %v2174, %v2174
  %v2298 = vmul.f32 %v2176, %v2176
  %v2299 = vmul.f32 %v2178, %v2178
  %v2300 = vmul.f32 %v2180, %v2180
  %v2301 = vadd.f32 %v2285, %v2293
  %v2302 = vadd.f32 %v2286, %v2294
  %v2303 = vadd.f32 %v2287, %v2295
  %v2304 = vadd.f32 %v2288, %v2296
  %v2305 = vadd.f32 %v2289, %v2297
  %v2306 = vadd.f32 %v2290, %v2298
  %v2307 = vadd.f32 %v2291, %v2299
  %v2308 = vadd.f32 %v2292, %v2300
  %2310 = vset.pattern.permute.xlu0 0
  %2311 = vperm.xlu0 %2310, %v69
  %v2312 = vpop.permute.xlu0 %2311
  %2315 = vset.pattern.permute.xlu0 0
  %2316 = vperm.xlu0 %2315, %v70
  %v2317 = vpop.permute.xlu0 %2316
  %2320 = vset.pattern.permute.xlu0 0
  %2321 = vperm.xlu0 %2320, %v71
  %v2322 = vpop.permute.xlu0 %2321
  %2325 = vset.pattern.permute.xlu0 0
  %2326 = vperm.xlu0 %2325, %v72
  %v2327 = vpop.permute.xlu0 %2326
  %2330 = vset.pattern.permute.xlu0 0
  %2331 = vperm.xlu0 %2330, %v73
  %v2332 = vpop.permute.xlu0 %2331
  %2335 = vset.pattern.permute.xlu0 0
  %2336 = vperm.xlu0 %2335, %v74
  %v2337 = vpop.permute.xlu0 %2336
  %2340 = vset.pattern.permute.xlu0 0
  %2341 = vperm.xlu0 %2340, %v75
  %v2342 = vpop.permute.xlu0 %2341
  %2345 = vset.pattern.permute.xlu0 0
  %2346 = vperm.xlu0 %2345, %v76
  %v2347 = vpop.permute.xlu0 %2346
  %v2349 = vmul.f32 %v2312, %v2301
  %v2350 = vmul.f32 %v2317, %v2302
  %v2351 = vmul.f32 %v2322, %v2303
  %v2352 = vmul.f32 %v2327, %v2304
  %v2353 = vmul.f32 %v2332, %v2305
  %v2354 = vmul.f32 %v2337, %v2306
  %v2355 = vmul.f32 %v2342, %v2307
  %v2356 = vmul.f32 %v2347, %v2308
  %2365 = vrot.lane.b32.xlu0 %v2349, 120
  %v2366 = vpop.permute.xlu0 %2365
  %2367 = vrot.lane.b32.xlu0 %v2350, 120
  %v2368 = vpop.permute.xlu0 %2367
  %2369 = vrot.lane.b32.xlu0 %v2351, 120
  %v2370 = vpop.permute.xlu0 %2369
  %2371 = vrot.lane.b32.xlu0 %v2352, 120
  %v2372 = vpop.permute.xlu0 %2371
  %2373 = vrot.lane.b32.xlu0 %v2353, 120
  %v2374 = vpop.permute.xlu0 %2373
  %2375 = vrot.lane.b32.xlu0 %v2354, 120
  %v2376 = vpop.permute.xlu0 %2375
  %2377 = vrot.lane.b32.xlu0 %v2355, 120
  %v2378 = vpop.permute.xlu0 %2377
  %2379 = vrot.lane.b32.xlu0 %v2356, 120
  %v2380 = vpop.permute.xlu0 %2379
  %vm2389 = vcmask 64512
  %v2390 = vsel %vm2389, %v2366, 0.0
  %v2391 = vsel %vm2389, %v2368, 0.0
  %v2392 = vadd.f32 %v2390, %v2391
  %v2393 = vsel %vm2389, %v2370, 0.0
  %v2394 = vadd.f32 %v2392, %v2393
  %v2395 = vsel %vm2389, %v2372, 0.0
  %v2396 = vadd.f32 %v2394, %v2395
  %v2397 = vsel %vm2389, %v2374, 0.0
  %v2398 = vadd.f32 %v2396, %v2397
  %v2399 = vsel %vm2389, %v2376, 0.0
  %v2400 = vadd.f32 %v2398, %v2399
  %v2401 = vsel %vm2389, %v2378, 0.0
  %v2402 = vadd.f32 %v2400, %v2401
  %v2403 = vsel %vm2389, %v2380, 0.0
  %v2404 = vadd.f32 %v2402, %v2403
  %2405 = vadd.xlane.f32.xlu0 %v2404
  %v2406 = vpop.xlane.xlu0 %2405
  %v2407 = vrot.slane %v2406, 4
  %v2408 = vadd.f32 %v2406, %v2407
  %v2409 = vrot.slane %v2408, 2
  %v2410 = vadd.f32 %v2408, %v2409
  %v2411 = vrot.slane %v2410, 1
  %v2412 = vadd.f32 %v2410, %v2411
  %s2413 = vtos %v2412
  %s2414 = smul.f32 %s2413, 0.5
  %v2415 = vrcp.pop 2.0
  %s2416 = vtos %v2415
  %s2417 = smul.f32 %s2414, %s2416
  %v2418 = vld [vmem:[%s13] sm:$0xff]
  %v2419 = vld [vmem:[%s13 + $0x8] sm:$0xff]
  %v2420 = vld [vmem:[%s14] sm:$0xff]
  %v2421 = vld [vmem:[%s14 + $0x8] sm:$0xff]
  %v2422 = vld [vmem:[%s14 + $0x10] sm:$0xff]
  %v2423 = vld [vmem:[%s14 + $0x18] sm:$0xff]
  %v2424 = vld [vmem:[%s14 + $0x20] sm:$0xff]
  %v2425 = vld [vmem:[%s14 + $0x28] sm:$0xff]
  %v2426 = vld [vmem:[%s14 + $0x30] sm:$0xff]
  %v2427 = vld [vmem:[%s14 + $0x38] sm:$0xff]
  %v2428 = vld [vmem:[%s14 + $0x40] sm:$0xff]
  %v2429 = vld [vmem:[%s14 + $0x48] sm:$0xff]
  %v2430 = vld [vmem:[%s14 + $0x50] sm:$0xff]
  %v2431 = vld [vmem:[%s14 + $0x58] sm:$0xff]
  %v2432 = vld [vmem:[%s14 + $0x60] sm:$0xff]
  %v2433 = vld [vmem:[%s14 + $0x68] sm:$0xff]
  %v2434 = vld [vmem:[%s14 + $0x70] sm:$0xff]
  %v2435 = vld [vmem:[%s14 + $0x78] sm:$0xff]
  %v2436 = vld [vmem:[%s15] sm:$0x3]
  %v2438 = vlaneseq
  %v2439 = vshrl.u32 %v2438, 7
  %v2440 = vsub.s32 0, %v2439
  %v2441 = vrot.slane %v2436, %v2440
  %v2442 = vlaneseq
  %v2443 = vshrl.u32 %v2442, 7
  %v2444 = vsub.s32 1, %v2443
  %v2445 = vrot.slane %v2436, %v2444
  %v2449 = vsel %vm2389, %v2229, 0
  %v2452 = vsel %vm2389, %v2230, 0
  %v2455 = vsel %vm2389, %v2231, 0
  %v2458 = vsel %vm2389, %v2232, 0
  %v2461 = vsel %vm2389, %v2233, 0
  %v2464 = vsel %vm2389, %v2234, 0
  %v2467 = vsel %vm2389, %v2235, 0
  %v2470 = vsel %vm2389, %v2236, 0
  %2472 = vmatprep.subr.mxu0 %v2419
  %2473 = vmatpush1.msra.mxu0 %v2418
  %2474 = vmatprep.subr.mxu0 0.0
  %2475 = vmatpush1.msra.mxu0 0.0
  %2476 = vmatprep.subr.mxu0 0.0
  %2477 = vmatpush1.msra.mxu0 0.0
  %2478 = vmatprep.subr.mxu0 0.0
  %2479 = vmatpush1.msra.mxu0 0.0
  %2480 = vmatprep.subr.mxu0 0.0
  %2481 = vmatpush1.msra.mxu0 0.0
  %2482 = vmatprep.subr.mxu0 0.0
  %2483 = vmatpush1.msra.mxu0 0.0
  %2484 = vmatprep.subr.mxu0 0.0
  %2485 = vmatpush1.msra.mxu0 0.0
  %2486 = vmatprep.subr.mxu0 0.0
  %2487 = vmatpush1.msra.mxu0 0.0
  %2488 = vmatprep.subr.mxu0 0.0
  %2489 = vmatpush1.msra.mxu0 0.0
  %2490 = vmatprep.subr.mxu0 0.0
  %2491 = vmatpush1.msra.mxu0 0.0
  %2492 = vmatprep.subr.mxu0 0.0
  %2493 = vmatpush1.msra.mxu0 0.0
  %2494 = vmatprep.subr.mxu0 0.0
  %2495 = vmatpush1.msra.mxu0 0.0
  %2496 = vmatprep.subr.mxu0 0.0
  %2497 = vmatpush1.msra.mxu0 0.0
  %2498 = vmatprep.subr.mxu0 0.0
  %2499 = vmatpush1.msra.mxu0 0.0
  %2500 = vmatprep.subr.mxu0 0.0
  %2501 = vmatpush1.msra.mxu0 0.0
  %2502 = vmatprep.subr.mxu0 0.0
  %2503 = vmatpush1.msra.mxu0 0.0
  %2504 = vmatprep.subr.mxu0 0.0
  %2505 = vmatpush1.msra.mxu0 0.0
  %2506 = vmatprep.subr.mxu0 0.0
  %2507 = vmatpush1.msra.mxu0 0.0
  %2508 = vmatprep.subr.mxu0 0.0
  %2509 = vmatpush1.msra.mxu0 0.0
  %2510 = vmatprep.subr.mxu0 0.0
  %2511 = vmatpush1.msra.mxu0 0.0
  %2512 = vmatprep.subr.mxu0 0.0
  %2513 = vmatpush1.msra.mxu0 0.0
  %2514 = vmatprep.subr.mxu0 0.0
  %2515 = vmatpush1.msra.mxu0 0.0
  %2516 = vmatprep.subr.mxu0 0.0
  %2517 = vmatpush1.msra.mxu0 0.0
  %2518 = vmatprep.subr.mxu0 0.0
  %2519 = vmatpush1.msra.mxu0 0.0
  %2520 = vmatprep.subr.mxu0 0.0
  %2521 = vmatpush1.msra.mxu0 0.0
  %2522 = vmatprep.subr.mxu0 0.0
  %2523 = vmatpush1.msra.mxu0 0.0
  %2524 = vmatprep.subr.mxu0 0.0
  %2525 = vmatpush1.msra.mxu0 0.0
  %2526 = vmatprep.subr.mxu0 0.0
  %2527 = vmatpush1.msra.mxu0 0.0
  %2528 = vmatprep.subr.mxu0 0.0
  %2529 = vmatpush1.msra.mxu0 0.0
  %2530 = vmatprep.subr.mxu0 0.0
  %2531 = vmatpush1.msra.mxu0 0.0
  %2532 = vmatprep.subr.mxu0 0.0
  %2533 = vmatpush1.msra.mxu0 0.0
  %2534 = vmatprep.subr.mxu0 0.0
  %2535 = vmatpush1.msra.mxu0 0.0
  %2536 = vmatprep.mubr.f32.mxu0 0.0
  %2537 = vmatmul.mubr.f32.gmra.mrb[0].mxu0 %v2449
  %v2538 = vpop.f32.mrb[0].mxu0
  %v2539 = vadd.f32 %v2441, %v2538
  %v2540 = vpop.f32.mrb[0].mxu0
  %v2541 = vadd.f32 %v2445, %v2540
  %2542 = vmatprep.mubr.f32.mxu0 0.0
  %2543 = vmatmul.mubr.f32.gmra.mrb[0].mxu0 %v2452
  %v2544 = vpop.f32.mrb[0].mxu0
  %v2545 = vadd.f32 %v2441, %v2544
  %v2546 = vpop.f32.mrb[0].mxu0
  %v2547 = vadd.f32 %v2445, %v2546
  %2548 = vmatprep.mubr.f32.mxu0 0.0
  %2549 = vmatmul.mubr.f32.gmra.mrb[0].mxu0 %v2455
  %v2550 = vpop.f32.mrb[0].mxu0
  %v2551 = vadd.f32 %v2441, %v2550
  %v2552 = vpop.f32.mrb[0].mxu0
  %v2553 = vadd.f32 %v2445, %v2552
  %2554 = vmatprep.mubr.f32.mxu0 0.0
  %2555 = vmatmul.mubr.f32.gmra.mrb[0].mxu0 %v2458
  %v2556 = vpop.f32.mrb[0].mxu0
  %v2557 = vadd.f32 %v2441, %v2556
  %v2558 = vpop.f32.mrb[0].mxu0
  %v2559 = vadd.f32 %v2445, %v2558
  %2560 = vmatprep.mubr.f32.mxu0 0.0
  %2561 = vmatmul.mubr.f32.gmra.mrb[0].mxu0 %v2461
  %v2562 = vpop.f32.mrb[0].mxu0
  %v2563 = vadd.f32 %v2441, %v2562
  %v2564 = vpop.f32.mrb[0].mxu0
  %v2565 = vadd.f32 %v2445, %v2564
  %2566 = vmatprep.mubr.f32.mxu0 0.0
  %2567 = vmatmul.mubr.f32.gmra.mrb[0].mxu0 %v2464
  %v2568 = vpop.f32.mrb[0].mxu0
  %v2569 = vadd.f32 %v2441, %v2568
  %v2570 = vpop.f32.mrb[0].mxu0
  %v2571 = vadd.f32 %v2445, %v2570
  %2572 = vmatprep.mubr.f32.mxu0 0.0
  %2573 = vmatmul.mubr.f32.gmra.mrb[0].mxu0 %v2467
  %v2574 = vpop.f32.mrb[0].mxu0
  %v2575 = vadd.f32 %v2441, %v2574
  %v2576 = vpop.f32.mrb[0].mxu0
  %v2577 = vadd.f32 %v2445, %v2576
  %2578 = vmatprep.mubr.f32.mxu0 0.0
  %2579 = vmatmul.mubr.f32.gmra.mrb[0].mxu0 %v2470
  %v2580 = vpop.f32.mrb[0].mxu0
  %v2581 = vadd.f32 %v2441, %v2580
  %v2582 = vpop.f32.mrb[0].mxu0
  %v2583 = vadd.f32 %v2445, %v2582
  %2584 = vdwg.mxu0
  %v2585 = vsel %vm1203, 0.0, 0
  %2587 = vmatprep.subr.mxu0 %v2421
  %2588 = vmatpush1.msra.mxu0 %v2420
  %2589 = vmatprep.subr.mxu0 %v2423
  %2590 = vmatpush1.msra.mxu0 %v2422
  %2591 = vmatprep.subr.mxu0 %v2425
  %2592 = vmatpush1.msra.mxu0 %v2424
  %2593 = vmatprep.subr.mxu0 %v2427
  %2594 = vmatpush1.msra.mxu0 %v2426
  %2595 = vmatprep.subr.mxu0 %v2429
  %2596 = vmatpush1.msra.mxu0 %v2428
  %2597 = vmatprep.subr.mxu0 %v2431
  %2598 = vmatpush1.msra.mxu0 %v2430
  %2599 = vmatprep.subr.mxu0 %v2433
  %2600 = vmatpush1.msra.mxu0 %v2432
  %2601 = vmatprep.subr.mxu0 %v2435
  %2602 = vmatpush1.msra.mxu0 %v2434
  %2603 = vmatprep.subr.mxu0 0.0
  %2604 = vmatpush1.msra.mxu0 0.0
  %2605 = vmatprep.subr.mxu0 0.0
  %2606 = vmatpush1.msra.mxu0 0.0
  %2607 = vmatprep.subr.mxu0 0.0
  %2608 = vmatpush1.msra.mxu0 0.0
  %2609 = vmatprep.subr.mxu0 0.0
  %2610 = vmatpush1.msra.mxu0 0.0
  %2611 = vmatprep.subr.mxu0 0.0
  %2612 = vmatpush1.msra.mxu0 0.0
  %2613 = vmatprep.subr.mxu0 0.0
  %2614 = vmatpush1.msra.mxu0 0.0
  %2615 = vmatprep.subr.mxu0 0.0
  %2616 = vmatpush1.msra.mxu0 0.0
  %2617 = vmatprep.subr.mxu0 0.0
  %2618 = vmatpush1.msra.mxu0 0.0
  %2619 = vmatprep.subr.mxu0 0.0
  %2620 = vmatpush1.msra.mxu0 0.0
  %2621 = vmatprep.subr.mxu0 0.0
  %2622 = vmatpush1.msra.mxu0 0.0
  %2623 = vmatprep.subr.mxu0 0.0
  %2624 = vmatpush1.msra.mxu0 0.0
  %2625 = vmatprep.subr.mxu0 0.0
  %2626 = vmatpush1.msra.mxu0 0.0
  %2627 = vmatprep.subr.mxu0 0.0
  %2628 = vmatpush1.msra.mxu0 0.0
  %2629 = vmatprep.subr.mxu0 0.0
  %2630 = vmatpush1.msra.mxu0 0.0
  %2631 = vmatprep.subr.mxu0 0.0
  %2632 = vmatpush1.msra.mxu0 0.0
  %2633 = vmatprep.subr.mxu0 0.0
  %2634 = vmatpush1.msra.mxu0 0.0
  %2635 = vmatprep.subr.mxu0 0.0
  %2636 = vmatpush1.msra.mxu0 0.0
  %2637 = vmatprep.subr.mxu0 0.0
  %2638 = vmatpush1.msra.mxu0 0.0
  %2639 = vmatprep.subr.mxu0 0.0
  %2640 = vmatpush1.msra.mxu0 0.0
  %2641 = vmatprep.subr.mxu0 0.0
  %2642 = vmatpush1.msra.mxu0 0.0
  %2643 = vmatprep.subr.mxu0 0.0
  %2644 = vmatpush1.msra.mxu0 0.0
  %2645 = vmatprep.subr.mxu0 0.0
  %2646 = vmatpush1.msra.mxu0 0.0
  %2647 = vmatprep.subr.mxu0 0.0
  %2648 = vmatpush1.msra.mxu0 0.0
  %2649 = vmatprep.subr.mxu0 0.0
  %2650 = vmatpush1.msra.mxu0 0.0
  %2651 = vmatprep.mubr.f32.mxu0 0.0
  %2652 = vmatmul.mubr.f32.gmra.mrb[0].mxu0 %v2585
  %v2653 = vpop.f32.mrb[0].mxu0
  %v2654 = vadd.f32 0.0, %v2653
  %v2655 = vpop.f32.mrb[0].mxu0
  %v2656 = vadd.f32 0.0, %v2655
  %2657 = vdwg.mxu0
  %v2658 = vadd.f32 %v2539, %v2654
  %v2659 = vadd.f32 %v2541, %v2656
  %v2660 = vxor.u32 %v2658, 2147483648
  %v2661 = vxor.u32 %v2659, 2147483648
  %v2662 = vmul.f32 %v2660, 1.442695
  %v2663 = vpow.pop %v2662
  %v2664 = vmul.f32 %v2661, 1.442695
  %v2665 = vpow.pop %v2664
  %v2666 = vadd.f32 %v2663, 1.0
  %v2667 = vadd.f32 %v2665, 1.0
  %v2668 = vrcp.pop %v2666
  %v2669 = vmul.f32 1.0, %v2668
  %v2670 = vrcp.pop %v2667
  %v2671 = vmul.f32 1.0, %v2670
  %v2672 = vtanh.pop %v2659
  %v2673 = vmul.f32 %v2669, 0.0
  %2675 = vrot.lane.b32.xlu0 %v2672, 64
  %v2676 = vpop.permute.xlu0 %2675
  %v2678 = vmul.f32 %v2669, %v2676
  %2680 = vrot.lane.b32.xlu0 %v2678, 64
  %v2681 = vpop.permute.xlu0 %2680
  %v2683 = vadd.f32 %v2673, %v2681
  %v2684 = vtanh.pop %v2683
  %2686 = vrot.lane.b32.xlu0 %v2684, 64
  %v2687 = vpop.permute.xlu0 %2686
  %v2689 = vmul.f32 %v2671, %v2687
  %2690 = vst.msk [vmem:[#allocation4] sm:$0xff] %vm1203, %v2689
  %v2692 = vsel %vm1203, %v2689, 0
  %2694 = vmatprep.subr.mxu0 %v2421
  %2695 = vmatpush1.msra.mxu0 %v2420
  %2696 = vmatprep.subr.mxu0 %v2423
  %2697 = vmatpush1.msra.mxu0 %v2422
  %2698 = vmatprep.subr.mxu0 %v2425
  %2699 = vmatpush1.msra.mxu0 %v2424
  %2700 = vmatprep.subr.mxu0 %v2427
  %2701 = vmatpush1.msra.mxu0 %v2426
  %2702 = vmatprep.subr.mxu0 %v2429
  %2703 = vmatpush1.msra.mxu0 %v2428
  %2704 = vmatprep.subr.mxu0 %v2431
  %2705 = vmatpush1.msra.mxu0 %v2430
  %2706 = vmatprep.subr.mxu0 %v2433
  %2707 = vmatpush1.msra.mxu0 %v2432
  %2708 = vmatprep.subr.mxu0 %v2435
  %2709 = vmatpush1.msra.mxu0 %v2434
  %2710 = vmatprep.subr.mxu0 0.0
  %2711 = vmatpush1.msra.mxu0 0.0
  %2712 = vmatprep.subr.mxu0 0.0
  %2713 = vmatpush1.msra.mxu0 0.0
  %2714 = vmatprep.subr.mxu0 0.0
  %2715 = vmatpush1.msra.mxu0 0.0
  %2716 = vmatprep.subr.mxu0 0.0
  %2717 = vmatpush1.msra.mxu0 0.0
  %2718 = vmatprep.subr.mxu0 0.0
  %2719 = vmatpush1.msra.mxu0 0.0
  %2720 = vmatprep.subr.mxu0 0.0
  %2721 = vmatpush1.msra.mxu0 0.0
  %2722 = vmatprep.subr.mxu0 0.0
  %2723 = vmatpush1.msra.mxu0 0.0
  %2724 = vmatprep.subr.mxu0 0.0
  %2725 = vmatpush1.msra.mxu0 0.0
  %2726 = vmatprep.subr.mxu0 0.0
  %2727 = vmatpush1.msra.mxu0 0.0
  %2728 = vmatprep.subr.mxu0 0.0
  %2729 = vmatpush1.msra.mxu0 0.0
  %2730 = vmatprep.subr.mxu0 0.0
  %2731 = vmatpush1.msra.mxu0 0.0
  %2732 = vmatprep.subr.mxu0 0.0
  %2733 = vmatpush1.msra.mxu0 0.0
  %2734 = vmatprep.subr.mxu0 0.0
  %2735 = vmatpush1.msra.mxu0 0.0
  %2736 = vmatprep.subr.mxu0 0.0
  %2737 = vmatpush1.msra.mxu0 0.0
  %2738 = vmatprep.subr.mxu0 0.0
  %2739 = vmatpush1.msra.mxu0 0.0
  %2740 = vmatprep.subr.mxu0 0.0
  %2741 = vmatpush1.msra.mxu0 0.0
  %2742 = vmatprep.subr.mxu0 0.0
  %2743 = vmatpush1.msra.mxu0 0.0
  %2744 = vmatprep.subr.mxu0 0.0
  %2745 = vmatpush1.msra.mxu0 0.0
  %2746 = vmatprep.subr.mxu0 0.0
  %2747 = vmatpush1.msra.mxu0 0.0
  %2748 = vmatprep.subr.mxu0 0.0
  %2749 = vmatpush1.msra.mxu0 0.0
  %2750 = vmatprep.subr.mxu0 0.0
  %2751 = vmatpush1.msra.mxu0 0.0
  %2752 = vmatprep.subr.mxu0 0.0
  %2753 = vmatpush1.msra.mxu0 0.0
  %2754 = vmatprep.subr.mxu0 0.0
  %2755 = vmatpush1.msra.mxu0 0.0
  %2756 = vmatprep.subr.mxu0 0.0
  %2757 = vmatpush1.msra.mxu0 0.0
  %2758 = vmatprep.mubr.f32.mxu0 0.0
  %2759 = vmatmul.mubr.f32.gmra.mrb[0].mxu0 %v2692
  %v2760 = vpop.f32.mrb[0].mxu0
  %v2761 = vadd.f32 0.0, %v2760
  %v2762 = vpop.f32.mrb[0].mxu0
  %v2763 = vadd.f32 0.0, %v2762
  %2764 = vdwg.mxu0
  %v2765 = vadd.f32 %v2545, %v2761
  %v2766 = vadd.f32 %v2547, %v2763
  %v2767 = vxor.u32 %v2765, 2147483648
  %v2768 = vxor.u32 %v2766, 2147483648
  %v2769 = vmul.f32 %v2767, 1.442695
  %v2770 = vpow.pop %v2769
  %v2771 = vmul.f32 %v2768, 1.442695
  %v2772 = vpow.pop %v2771
  %v2773 = vadd.f32 %v2770, 1.0
  %v2774 = vadd.f32 %v2772, 1.0
  %v2775 = vrcp.pop %v2773
  %v2776 = vmul.f32 1.0, %v2775
  %v2777 = vrcp.pop %v2774
  %v2778 = vmul.f32 1.0, %v2777
  %v2779 = vtanh.pop %v2766
  %v2780 = vmul.f32 %v2776, %v2683
  %2782 = vrot.lane.b32.xlu0 %v2779, 64
  %v2783 = vpop.permute.xlu0 %2782
  %v2785 = vmul.f32 %v2776, %v2783
  %2787 = vrot.lane.b32.xlu0 %v2785, 64
  %v2788 = vpop.permute.xlu0 %2787
  %v2790 = vadd.f32 %v2780, %v2788
  %v2791 = vtanh.pop %v2790
  %2793 = vrot.lane.b32.xlu0 %v2791, 64
  %v2794 = vpop.permute.xlu0 %2793
  %v2796 = vmul.f32 %v2778, %v2794
  %2797 = vst.msk [vmem:[#allocation4 + $0x8] sm:$0xff] %vm1203, %v2796
  %v2799 = vsel %vm1203, %v2796, 0
  %2801 = vmatprep.subr.mxu0 %v2421
  %2802 = vmatpush1.msra.mxu0 %v2420
  %2803 = vmatprep.subr.mxu0 %v2423
  %2804 = vmatpush1.msra.mxu0 %v2422
  %2805 = vmatprep.subr.mxu0 %v2425
  %2806 = vmatpush1.msra.mxu0 %v2424
  %2807 = vmatprep.subr.mxu0 %v2427
  %2808 = vmatpush1.msra.mxu0 %v2426
  %2809 = vmatprep.subr.mxu0 %v2429
  %2810 = vmatpush1.msra.mxu0 %v2428
  %2811 = vmatprep.subr.mxu0 %v2431
  %2812 = vmatpush1.msra.mxu0 %v2430
  %2813 = vmatprep.subr.mxu0 %v2433
  %2814 = vmatpush1.msra.mxu0 %v2432
  %2815 = vmatprep.subr.mxu0 %v2435
  %2816 = vmatpush1.msra.mxu0 %v2434
  %2817 = vmatprep.subr.mxu0 0.0
  %2818 = vmatpush1.msra.mxu0 0.0
  %2819 = vmatprep.subr.mxu0 0.0
  %2820 = vmatpush1.msra.mxu0 0.0
  %2821 = vmatprep.subr.mxu0 0.0
  %2822 = vmatpush1.msra.mxu0 0.0
  %2823 = vmatprep.subr.mxu0 0.0
  %2824 = vmatpush1.msra.mxu0 0.0
  %2825 = vmatprep.subr.mxu0 0.0
  %2826 = vmatpush1.msra.mxu0 0.0
  %2827 = vmatprep.subr.mxu0 0.0
  %2828 = vmatpush1.msra.mxu0 0.0
  %2829 = vmatprep.subr.mxu0 0.0
  %2830 = vmatpush1.msra.mxu0 0.0
  %2831 = vmatprep.subr.mxu0 0.0
  %2832 = vmatpush1.msra.mxu0 0.0
  %2833 = vmatprep.subr.mxu0 0.0
  %2834 = vmatpush1.msra.mxu0 0.0
  %2835 = vmatprep.subr.mxu0 0.0
  %2836 = vmatpush1.msra.mxu0 0.0
  %2837 = vmatprep.subr.mxu0 0.0
  %2838 = vmatpush1.msra.mxu0 0.0
  %2839 = vmatprep.subr.mxu0 0.0
  %2840 = vmatpush1.msra.mxu0 0.0
  %2841 = vmatprep.subr.mxu0 0.0
  %2842 = vmatpush1.msra.mxu0 0.0
  %2843 = vmatprep.subr.mxu0 0.0
  %2844 = vmatpush1.msra.mxu0 0.0
  %2845 = vmatprep.subr.mxu0 0.0
  %2846 = vmatpush1.msra.mxu0 0.0
  %2847 = vmatprep.subr.mxu0 0.0
  %2848 = vmatpush1.msra.mxu0 0.0
  %2849 = vmatprep.subr.mxu0 0.0
  %2850 = vmatpush1.msra.mxu0 0.0
  %2851 = vmatprep.subr.mxu0 0.0
  %2852 = vmatpush1.msra.mxu0 0.0
  %2853 = vmatprep.subr.mxu0 0.0
  %2854 = vmatpush1.msra.mxu0 0.0
  %2855 = vmatprep.subr.mxu0 0.0
  %2856 = vmatpush1.msra.mxu0 0.0
  %2857 = vmatprep.subr.mxu0 0.0
  %2858 = vmatpush1.msra.mxu0 0.0
  %2859 = vmatprep.subr.mxu0 0.0
  %2860 = vmatpush1.msra.mxu0 0.0
  %2861 = vmatprep.subr.mxu0 0.0
  %2862 = vmatpush1.msra.mxu0 0.0
  %2863 = vmatprep.subr.mxu0 0.0
  %2864 = vmatpush1.msra.mxu0 0.0
  %2865 = vmatprep.mubr.f32.mxu0 0.0
  %2866 = vmatmul.mubr.f32.gmra.mrb[0].mxu0 %v2799
  %v2867 = vpop.f32.mrb[0].mxu0
  %v2868 = vadd.f32 0.0, %v2867
  %v2869 = vpop.f32.mrb[0].mxu0
  %v2870 = vadd.f32 0.0, %v2869
  %2871 = vdwg.mxu0
  %v2872 = vadd.f32 %v2551, %v2868
  %v2873 = vadd.f32 %v2553, %v2870
  %v2874 = vxor.u32 %v2872, 2147483648
  %v2875 = vxor.u32 %v2873, 2147483648
  %v2876 = vmul.f32 %v2874, 1.442695
  %v2877 = vpow.pop %v2876
  %v2878 = vmul.f32 %v2875, 1.442695
  %v2879 = vpow.pop %v2878
  %v2880 = vadd.f32 %v2877, 1.0
  %v2881 = vadd.f32 %v2879, 1.0
  %v2882 = vrcp.pop %v2880
  %v2883 = vmul.f32 1.0, %v2882
  %v2884 = vrcp.pop %v2881
  %v2885 = vmul.f32 1.0, %v2884
  %v2886 = vtanh.pop %v2873
  %v2887 = vmul.f32 %v2883, %v2790
  %2889 = vrot.lane.b32.xlu0 %v2886, 64
  %v2890 = vpop.permute.xlu0 %2889
  %v2892 = vmul.f32 %v2883, %v2890
  %2894 = vrot.lane.b32.xlu0 %v2892, 64
  %v2895 = vpop.permute.xlu0 %2894
  %v2897 = vadd.f32 %v2887, %v2895
  %v2898 = vtanh.pop %v2897
  %2900 = vrot.lane.b32.xlu0 %v2898, 64
  %v2901 = vpop.permute.xlu0 %2900
  %v2903 = vmul.f32 %v2885, %v2901
  %2904 = vst.msk [vmem:[#allocation4 + $0x10] sm:$0xff] %vm1203, %v2903
  %v2906 = vsel %vm1203, %v2903, 0
  %2908 = vmatprep.subr.mxu0 %v2421
  %2909 = vmatpush1.msra.mxu0 %v2420
  %2910 = vmatprep.subr.mxu0 %v2423
  %2911 = vmatpush1.msra.mxu0 %v2422
  %2912 = vmatprep.subr.mxu0 %v2425
  %2913 = vmatpush1.msra.mxu0 %v2424
  %2914 = vmatprep.subr.mxu0 %v2427
  %2915 = vmatpush1.msra.mxu0 %v2426
  %2916 = vmatprep.subr.mxu0 %v2429
  %2917 = vmatpush1.msra.mxu0 %v2428
  %2918 = vmatprep.subr.mxu0 %v2431
  %2919 = vmatpush1.msra.mxu0 %v2430
  %2920 = vmatprep.subr.mxu0 %v2433
  %2921 = vmatpush1.msra.mxu0 %v2432
  %2922 = vmatprep.subr.mxu0 %v2435
  %2923 = vmatpush1.msra.mxu0 %v2434
  %2924 = vmatprep.subr.mxu0 0.0
  %2925 = vmatpush1.msra.mxu0 0.0
  %2926 = vmatprep.subr.mxu0 0.0
  %2927 = vmatpush1.msra.mxu0 0.0
  %2928 = vmatprep.subr.mxu0 0.0
  %2929 = vmatpush1.msra.mxu0 0.0
  %2930 = vmatprep.subr.mxu0 0.0
  %2931 = vmatpush1.msra.mxu0 0.0
  %2932 = vmatprep.subr.mxu0 0.0
  %2933 = vmatpush1.msra.mxu0 0.0
  %2934 = vmatprep.subr.mxu0 0.0
  %2935 = vmatpush1.msra.mxu0 0.0
  %2936 = vmatprep.subr.mxu0 0.0
  %2937 = vmatpush1.msra.mxu0 0.0
  %2938 = vmatprep.subr.mxu0 0.0
  %2939 = vmatpush1.msra.mxu0 0.0
  %2940 = vmatprep.subr.mxu0 0.0
  %2941 = vmatpush1.msra.mxu0 0.0
  %2942 = vmatprep.subr.mxu0 0.0
  %2943 = vmatpush1.msra.mxu0 0.0
  %2944 = vmatprep.subr.mxu0 0.0
  %2945 = vmatpush1.msra.mxu0 0.0
  %2946 = vmatprep.subr.mxu0 0.0
  %2947 = vmatpush1.msra.mxu0 0.0
  %2948 = vmatprep.subr.mxu0 0.0
  %2949 = vmatpush1.msra.mxu0 0.0
  %2950 = vmatprep.subr.mxu0 0.0
  %2951 = vmatpush1.msra.mxu0 0.0
  %2952 = vmatprep.subr.mxu0 0.0
  %2953 = vmatpush1.msra.mxu0 0.0
  %2954 = vmatprep.subr.mxu0 0.0
  %2955 = vmatpush1.msra.mxu0 0.0
  %2956 = vmatprep.subr.mxu0 0.0
  %2957 = vmatpush1.msra.mxu0 0.0
  %2958 = vmatprep.subr.mxu0 0.0
  %2959 = vmatpush1.msra.mxu0 0.0
  %2960 = vmatprep.subr.mxu0 0.0
  %2961 = vmatpush1.msra.mxu0 0.0
  %2962 = vmatprep.subr.mxu0 0.0
  %2963 = vmatpush1.msra.mxu0 0.0
  %2964 = vmatprep.subr.mxu0 0.0
  %2965 = vmatpush1.msra.mxu0 0.0
  %2966 = vmatprep.subr.mxu0 0.0
  %2967 = vmatpush1.msra.mxu0 0.0
  %2968 = vmatprep.subr.mxu0 0.0
  %2969 = vmatpush1.msra.mxu0 0.0
  %2970 = vmatprep.subr.mxu0 0.0
  %2971 = vmatpush1.msra.mxu0 0.0
  %2972 = vmatprep.mubr.f32.mxu0 0.0
  %2973 = vmatmul.mubr.f32.gmra.mrb[0].mxu0 %v2906
  %v2974 = vpop.f32.mrb[0].mxu0
  %v2975 = vadd.f32 0.0, %v2974
  %v2976 = vpop.f32.mrb[0].mxu0
  %v2977 = vadd.f32 0.0, %v2976
  %2978 = vdwg.mxu0
  %v2979 = vadd.f32 %v2557, %v2975
  %v2980 = vadd.f32 %v2559, %v2977
  %v2981 = vxor.u32 %v2979, 2147483648
  %v2982 = vxor.u32 %v2980, 2147483648
  %v2983 = vmul.f32 %v2981, 1.442695
  %v2984 = vpow.pop %v2983
  %v2985 = vmul.f32 %v2982, 1.442695
  %v2986 = vpow.pop %v2985
  %v2987 = vadd.f32 %v2984, 1.0
  %v2988 = vadd.f32 %v2986, 1.0
  %v2989 = vrcp.pop %v2987
  %v2990 = vmul.f32 1.0, %v2989
  %v2991 = vrcp.pop %v2988
  %v2992 = vmul.f32 1.0, %v2991
  %v2993 = vtanh.pop %v2980
  %v2994 = vmul.f32 %v2990, %v2897
  %2996 = vrot.lane.b32.xlu0 %v2993, 64
  %v2997 = vpop.permute.xlu0 %2996
  %v2999 = vmul.f32 %v2990, %v2997
  %3001 = vrot.lane.b32.xlu0 %v2999, 64
  %v3002 = vpop.permute.xlu0 %3001
  %v3004 = vadd.f32 %v2994, %v3002
  %v3005 = vtanh.pop %v3004
  %3007 = vrot.lane.b32.xlu0 %v3005, 64
  %v3008 = vpop.permute.xlu0 %3007
  %v3010 = vmul.f32 %v2992, %v3008
  %3011 = vst.msk [vmem:[#allocation4 + $0x18] sm:$0xff] %vm1203, %v3010
  %v3013 = vsel %vm1203, %v3010, 0
  %3015 = vmatprep.subr.mxu0 %v2421
  %3016 = vmatpush1.msra.mxu0 %v2420
  %3017 = vmatprep.subr.mxu0 %v2423
  %3018 = vmatpush1.msra.mxu0 %v2422
  %3019 = vmatprep.subr.mxu0 %v2425
  %3020 = vmatpush1.msra.mxu0 %v2424
  %3021 = vmatprep.subr.mxu0 %v2427
  %3022 = vmatpush1.msra.mxu0 %v2426
  %3023 = vmatprep.subr.mxu0 %v2429
  %3024 = vmatpush1.msra.mxu0 %v2428
  %3025 = vmatprep.subr.mxu0 %v2431
  %3026 = vmatpush1.msra.mxu0 %v2430
  %3027 = vmatprep.subr.mxu0 %v2433
  %3028 = vmatpush1.msra.mxu0 %v2432
  %3029 = vmatprep.subr.mxu0 %v2435
  %3030 = vmatpush1.msra.mxu0 %v2434
  %3031 = vmatprep.subr.mxu0 0.0
  %3032 = vmatpush1.msra.mxu0 0.0
  %3033 = vmatprep.subr.mxu0 0.0
  %3034 = vmatpush1.msra.mxu0 0.0
  %3035 = vmatprep.subr.mxu0 0.0
  %3036 = vmatpush1.msra.mxu0 0.0
  %3037 = vmatprep.subr.mxu0 0.0
  %3038 = vmatpush1.msra.mxu0 0.0
  %3039 = vmatprep.subr.mxu0 0.0
  %3040 = vmatpush1.msra.mxu0 0.0
  %3041 = vmatprep.subr.mxu0 0.0
  %3042 = vmatpush1.msra.mxu0 0.0
  %3043 = vmatprep.subr.mxu0 0.0
  %3044 = vmatpush1.msra.mxu0 0.0
  %3045 = vmatprep.subr.mxu0 0.0
  %3046 = vmatpush1.msra.mxu0 0.0
  %3047 = vmatprep.subr.mxu0 0.0
  %3048 = vmatpush1.msra.mxu0 0.0
  %3049 = vmatprep.subr.mxu0 0.0
  %3050 = vmatpush1.msra.mxu0 0.0
  %3051 = vmatprep.subr.mxu0 0.0
  %3052 = vmatpush1.msra.mxu0 0.0
  %3053 = vmatprep.subr.mxu0 0.0
  %3054 = vmatpush1.msra.mxu0 0.0
  %3055 = vmatprep.subr.mxu0 0.0
  %3056 = vmatpush1.msra.mxu0 0.0
  %3057 = vmatprep.subr.mxu0 0.0
  %3058 = vmatpush1.msra.mxu0 0.0
  %3059 = vmatprep.subr.mxu0 0.0
  %3060 = vmatpush1.msra.mxu0 0.0
  %3061 = vmatprep.subr.mxu0 0.0
  %3062 = vmatpush1.msra.mxu0 0.0
  %3063 = vmatprep.subr.mxu0 0.0
  %3064 = vmatpush1.msra.mxu0 0.0
  %3065 = vmatprep.subr.mxu0 0.0
  %3066 = vmatpush1.msra.mxu0 0.0
  %3067 = vmatprep.subr.mxu0 0.0
  %3068 = vmatpush1.msra.mxu0 0.0
  %3069 = vmatprep.subr.mxu0 0.0
  %3070 = vmatpush1.msra.mxu0 0.0
  %3071 = vmatprep.subr.mxu0 0.0
  %3072 = vmatpush1.msra.mxu0 0.0
  %3073 = vmatprep.subr.mxu0 0.0
  %3074 = vmatpush1.msra.mxu0 0.0
  %3075 = vmatprep.subr.mxu0 0.0
  %3076 = vmatpush1.msra.mxu0 0.0
  %3077 = vmatprep.subr.mxu0 0.0
  %3078 = vmatpush1.msra.mxu0 0.0
  %3079 = vmatprep.mubr.f32.mxu0 0.0
  %3080 = vmatmul.mubr.f32.gmra.mrb[0].mxu0 %v3013
  %v3081 = vpop.f32.mrb[0].mxu0
  %v3082 = vadd.f32 0.0, %v3081
  %v3083 = vpop.f32.mrb[0].mxu0
  %v3084 = vadd.f32 0.0, %v3083
  %3085 = vdwg.mxu0
  %v3086 = vadd.f32 %v2563, %v3082
  %v3087 = vadd.f32 %v2565, %v3084
  %v3088 = vxor.u32 %v3086, 2147483648
  %v3089 = vxor.u32 %v3087, 2147483648
  %v3090 = vmul.f32 %v3088, 1.442695
  %v3091 = vpow.pop %v3090
  %v3092 = vmul.f32 %v3089, 1.442695
  %v3093 = vpow.pop %v3092
  %v3094 = vadd.f32 %v3091, 1.0
  %v3095 = vadd.f32 %v3093, 1.0
  %v3096 = vrcp.pop %v3094
  %v3097 = vmul.f32 1.0, %v3096
  %v3098 = vrcp.pop %v3095
  %v3099 = vmul.f32 1.0, %v3098
  %v3100 = vtanh.pop %v3087
  %v3101 = vmul.f32 %v3097, %v3004
  %3103 = vrot.lane.b32.xlu0 %v3100, 64
  %v3104 = vpop.permute.xlu0 %3103
  %v3106 = vmul.f32 %v3097, %v3104
  %3108 = vrot.lane.b32.xlu0 %v3106, 64
  %v3109 = vpop.permute.xlu0 %3108
  %v3111 = vadd.f32 %v3101, %v3109
  %v3112 = vtanh.pop %v3111
  %3114 = vrot.lane.b32.xlu0 %v3112, 64
  %v3115 = vpop.permute.xlu0 %3114
  %v3117 = vmul.f32 %v3099, %v3115
  %3118 = vst.msk [vmem:[#allocation4 + $0x20] sm:$0xff] %vm1203, %v3117
  %v3120 = vsel %vm1203, %v3117, 0
  %3122 = vmatprep.subr.mxu0 %v2421
  %3123 = vmatpush1.msra.mxu0 %v2420
  %3124 = vmatprep.subr.mxu0 %v2423
  %3125 = vmatpush1.msra.mxu0 %v2422
  %3126 = vmatprep.subr.mxu0 %v2425
  %3127 = vmatpush1.msra.mxu0 %v2424
  %3128 = vmatprep.subr.mxu0 %v2427
  %3129 = vmatpush1.msra.mxu0 %v2426
  %3130 = vmatprep.subr.mxu0 %v2429
  %3131 = vmatpush1.msra.mxu0 %v2428
  %3132 = vmatprep.subr.mxu0 %v2431
  %3133 = vmatpush1.msra.mxu0 %v2430
  %3134 = vmatprep.subr.mxu0 %v2433
  %3135 = vmatpush1.msra.mxu0 %v2432
  %3136 = vmatprep.subr.mxu0 %v2435
  %3137 = vmatpush1.msra.mxu0 %v2434
  %3138 = vmatprep.subr.mxu0 0.0
  %3139 = vmatpush1.msra.mxu0 0.0
  %3140 = vmatprep.subr.mxu0 0.0
  %3141 = vmatpush1.msra.mxu0 0.0
  %3142 = vmatprep.subr.mxu0 0.0
  %3143 = vmatpush1.msra.mxu0 0.0
  %3144 = vmatprep.subr.mxu0 0.0
  %3145 = vmatpush1.msra.mxu0 0.0
  %3146 = vmatprep.subr.mxu0 0.0
  %3147 = vmatpush1.msra.mxu0 0.0
  %3148 = vmatprep.subr.mxu0 0.0
  %3149 = vmatpush1.msra.mxu0 0.0
  %3150 = vmatprep.subr.mxu0 0.0
  %3151 = vmatpush1.msra.mxu0 0.0
  %3152 = vmatprep.subr.mxu0 0.0
  %3153 = vmatpush1.msra.mxu0 0.0
  %3154 = vmatprep.subr.mxu0 0.0
  %3155 = vmatpush1.msra.mxu0 0.0
  %3156 = vmatprep.subr.mxu0 0.0
  %3157 = vmatpush1.msra.mxu0 0.0
  %3158 = vmatprep.subr.mxu0 0.0
  %3159 = vmatpush1.msra.mxu0 0.0
  %3160 = vmatprep.subr.mxu0 0.0
  %3161 = vmatpush1.msra.mxu0 0.0
  %3162 = vmatprep.subr.mxu0 0.0
  %3163 = vmatpush1.msra.mxu0 0.0
  %3164 = vmatprep.subr.mxu0 0.0
  %3165 = vmatpush1.msra.mxu0 0.0
  %3166 = vmatprep.subr.mxu0 0.0
  %3167 = vmatpush1.msra.mxu0 0.0
  %3168 = vmatprep.subr.mxu0 0.0
  %3169 = vmatpush1.msra.mxu0 0.0
  %3170 = vmatprep.subr.mxu0 0.0
  %3171 = vmatpush1.msra.mxu0 0.0
  %3172 = vmatprep.subr.mxu0 0.0
  %3173 = vmatpush1.msra.mxu0 0.0
  %3174 = vmatprep.subr.mxu0 0.0
  %3175 = vmatpush1.msra.mxu0 0.0
  %3176 = vmatprep.subr.mxu0 0.0
  %3177 = vmatpush1.msra.mxu0 0.0
  %3178 = vmatprep.subr.mxu0 0.0
  %3179 = vmatpush1.msra.mxu0 0.0
  %3180 = vmatprep.subr.mxu0 0.0
  %3181 = vmatpush1.msra.mxu0 0.0
  %3182 = vmatprep.subr.mxu0 0.0
  %3183 = vmatpush1.msra.mxu0 0.0
  %3184 = vmatprep.subr.mxu0 0.0
  %3185 = vmatpush1.msra.mxu0 0.0
  %3186 = vmatprep.mubr.f32.mxu0 0.0
  %3187 = vmatmul.mubr.f32.gmra.mrb[0].mxu0 %v3120
  %v3188 = vpop.f32.mrb[0].mxu0
  %v3189 = vadd.f32 0.0, %v3188
  %v3190 = vpop.f32.mrb[0].mxu0
  %v3191 = vadd.f32 0.0, %v3190
  %3192 = vdwg.mxu0
  %v3193 = vadd.f32 %v2569, %v3189
  %v3194 = vadd.f32 %v2571, %v3191
  %v3195 = vxor.u32 %v3193, 2147483648
  %v3196 = vxor.u32 %v3194, 2147483648
  %v3197 = vmul.f32 %v3195, 1.442695
  %v3198 = vpow.pop %v3197
  %v3199 = vmul.f32 %v3196, 1.442695
  %v3200 = vpow.pop %v3199
  %v3201 = vadd.f32 %v3198, 1.0
  %v3202 = vadd.f32 %v3200, 1.0
  %v3203 = vrcp.pop %v3201
  %v3204 = vmul.f32 1.0, %v3203
  %v3205 = vrcp.pop %v3202
  %v3206 = vmul.f32 1.0, %v3205
  %v3207 = vtanh.pop %v3194
  %v3208 = vmul.f32 %v3204, %v3111
  %3210 = vrot.lane.b32.xlu0 %v3207, 64
  %v3211 = vpop.permute.xlu0 %3210
  %v3213 = vmul.f32 %v3204, %v3211
  %3215 = vrot.lane.b32.xlu0 %v3213, 64
  %v3216 = vpop.permute.xlu0 %3215
  %v3218 = vadd.f32 %v3208, %v3216
  %v3219 = vtanh.pop %v3218
  %3221 = vrot.lane.b32.xlu0 %v3219, 64
  %v3222 = vpop.permute.xlu0 %3221
  %v3224 = vmul.f32 %v3206, %v3222
  %3225 = vst.msk [vmem:[#allocation4 + $0x28] sm:$0xff] %vm1203, %v3224
  %v3227 = vsel %vm1203, %v3224, 0
  %3229 = vmatprep.subr.mxu0 %v2421
  %3230 = vmatpush1.msra.mxu0 %v2420
  %3231 = vmatprep.subr.mxu0 %v2423
  %3232 = vmatpush1.msra.mxu0 %v2422
  %3233 = vmatprep.subr.mxu0 %v2425
  %3234 = vmatpush1.msra.mxu0 %v2424
  %3235 = vmatprep.subr.mxu0 %v2427
  %3236 = vmatpush1.msra.mxu0 %v2426
  %3237 = vmatprep.subr.mxu0 %v2429
  %3238 = vmatpush1.msra.mxu0 %v2428
  %3239 = vmatprep.subr.mxu0 %v2431
  %3240 = vmatpush1.msra.mxu0 %v2430
  %3241 = vmatprep.subr.mxu0 %v2433
  %3242 = vmatpush1.msra.mxu0 %v2432
  %3243 = vmatprep.subr.mxu0 %v2435
  %3244 = vmatpush1.msra.mxu0 %v2434
  %3245 = vmatprep.subr.mxu0 0.0
  %3246 = vmatpush1.msra.mxu0 0.0
  %3247 = vmatprep.subr.mxu0 0.0
  %3248 = vmatpush1.msra.mxu0 0.0
  %3249 = vmatprep.subr.mxu0 0.0
  %3250 = vmatpush1.msra.mxu0 0.0
  %3251 = vmatprep.subr.mxu0 0.0
  %3252 = vmatpush1.msra.mxu0 0.0
  %3253 = vmatprep.subr.mxu0 0.0
  %3254 = vmatpush1.msra.mxu0 0.0
  %3255 = vmatprep.subr.mxu0 0.0
  %3256 = vmatpush1.msra.mxu0 0.0
  %3257 = vmatprep.subr.mxu0 0.0
  %3258 = vmatpush1.msra.mxu0 0.0
  %3259 = vmatprep.subr.mxu0 0.0
  %3260 = vmatpush1.msra.mxu0 0.0
  %3261 = vmatprep.subr.mxu0 0.0
  %3262 = vmatpush1.msra.mxu0 0.0
  %3263 = vmatprep.subr.mxu0 0.0
  %3264 = vmatpush1.msra.mxu0 0.0
  %3265 = vmatprep.subr.mxu0 0.0
  %3266 = vmatpush1.msra.mxu0 0.0
  %3267 = vmatprep.subr.mxu0 0.0
  %3268 = vmatpush1.msra.mxu0 0.0
  %3269 = vmatprep.subr.mxu0 0.0
  %3270 = vmatpush1.msra.mxu0 0.0
  %3271 = vmatprep.subr.mxu0 0.0
  %3272 = vmatpush1.msra.mxu0 0.0
  %3273 = vmatprep.subr.mxu0 0.0
  %3274 = vmatpush1.msra.mxu0 0.0
  %3275 = vmatprep.subr.mxu0 0.0
  %3276 = vmatpush1.msra.mxu0 0.0
  %3277 = vmatprep.subr.mxu0 0.0
  %3278 = vmatpush1.msra.mxu0 0.0
  %3279 = vmatprep.subr.mxu0 0.0
  %3280 = vmatpush1.msra.mxu0 0.0
  %3281 = vmatprep.subr.mxu0 0.0
  %3282 = vmatpush1.msra.mxu0 0.0
  %3283 = vmatprep.subr.mxu0 0.0
  %3284 = vmatpush1.msra.mxu0 0.0
  %3285 = vmatprep.subr.mxu0 0.0
  %3286 = vmatpush1.msra.mxu0 0.0
  %3287 = vmatprep.subr.mxu0 0.0
  %3288 = vmatpush1.msra.mxu0 0.0
  %3289 = vmatprep.subr.mxu0 0.0
  %3290 = vmatpush1.msra.mxu0 0.0
  %3291 = vmatprep.subr.mxu0 0.0
  %3292 = vmatpush1.msra.mxu0 0.0
  %3293 = vmatprep.mubr.f32.mxu0 0.0
  %3294 = vmatmul.mubr.f32.gmra.mrb[0].mxu0 %v3227
  %v3295 = vpop.f32.mrb[0].mxu0
  %v3296 = vadd.f32 0.0, %v3295
  %v3297 = vpop.f32.mrb[0].mxu0
  %v3298 = vadd.f32 0.0, %v3297
  %3299 = vdwg.mxu0
  %v3300 = vadd.f32 %v2575, %v3296
  %v3301 = vadd.f32 %v2577, %v3298
  %v3302 = vxor.u32 %v3300, 2147483648
  %v3303 = vxor.u32 %v3301, 2147483648
  %v3304 = vmul.f32 %v3302, 1.442695
  %v3305 = vpow.pop %v3304
  %v3306 = vmul.f32 %v3303, 1.442695
  %v3307 = vpow.pop %v3306
  %v3308 = vadd.f32 %v3305, 1.0
  %v3309 = vadd.f32 %v3307, 1.0
  %v3310 = vrcp.pop %v3308
  %v3311 = vmul.f32 1.0, %v3310
  %v3312 = vrcp.pop %v3309
  %v3313 = vmul.f32 1.0, %v3312
  %v3314 = vtanh.pop %v3301
  %v3315 = vmul.f32 %v3311, %v3218
  %3317 = vrot.lane.b32.xlu0 %v3314, 64
  %v3318 = vpop.permute.xlu0 %3317
  %v3320 = vmul.f32 %v3311, %v3318
  %3322 = vrot.lane.b32.xlu0 %v3320, 64
  %v3323 = vpop.permute.xlu0 %3322
  %v3325 = vadd.f32 %v3315, %v3323
  %v3326 = vtanh.pop %v3325
  %3328 = vrot.lane.b32.xlu0 %v3326, 64
  %v3329 = vpop.permute.xlu0 %3328
  %v3331 = vmul.f32 %v3313, %v3329
  %3332 = vst.msk [vmem:[#allocation4 + $0x30] sm:$0xff] %vm1203, %v3331
  %v3334 = vsel %vm1203, %v3331, 0
  %3336 = vmatprep.subr.mxu0 %v2421
  %3337 = vmatpush1.msra.mxu0 %v2420
  %3338 = vmatprep.subr.mxu0 %v2423
  %3339 = vmatpush1.msra.mxu0 %v2422
  %3340 = vmatprep.subr.mxu0 %v2425
  %3341 = vmatpush1.msra.mxu0 %v2424
  %3342 = vmatprep.subr.mxu0 %v2427
  %3343 = vmatpush1.msra.mxu0 %v2426
  %3344 = vmatprep.subr.mxu0 %v2429
  %3345 = vmatpush1.msra.mxu0 %v2428
  %3346 = vmatprep.subr.mxu0 %v2431
  %3347 = vmatpush1.msra.mxu0 %v2430
  %3348 = vmatprep.subr.mxu0 %v2433
  %3349 = vmatpush1.msra.mxu0 %v2432
  %3350 = vmatprep.subr.mxu0 %v2435
  %3351 = vmatpush1.msra.mxu0 %v2434
  %3352 = vmatprep.subr.mxu0 0.0
  %3353 = vmatpush1.msra.mxu0 0.0
  %3354 = vmatprep.subr.mxu0 0.0
  %3355 = vmatpush1.msra.mxu0 0.0
  %3356 = vmatprep.subr.mxu0 0.0
  %3357 = vmatpush1.msra.mxu0 0.0
  %3358 = vmatprep.subr.mxu0 0.0
  %3359 = vmatpush1.msra.mxu0 0.0
  %3360 = vmatprep.subr.mxu0 0.0
  %3361 = vmatpush1.msra.mxu0 0.0
  %3362 = vmatprep.subr.mxu0 0.0
  %3363 = vmatpush1.msra.mxu0 0.0
  %3364 = vmatprep.subr.mxu0 0.0
  %3365 = vmatpush1.msra.mxu0 0.0
  %3366 = vmatprep.subr.mxu0 0.0
  %3367 = vmatpush1.msra.mxu0 0.0
  %3368 = vmatprep.subr.mxu0 0.0
  %3369 = vmatpush1.msra.mxu0 0.0
  %3370 = vmatprep.subr.mxu0 0.0
  %3371 = vmatpush1.msra.mxu0 0.0
  %3372 = vmatprep.subr.mxu0 0.0
  %3373 = vmatpush1.msra.mxu0 0.0
  %3374 = vmatprep.subr.mxu0 0.0
  %3375 = vmatpush1.msra.mxu0 0.0
  %3376 = vmatprep.subr.mxu0 0.0
  %3377 = vmatpush1.msra.mxu0 0.0
  %3378 = vmatprep.subr.mxu0 0.0
  %3379 = vmatpush1.msra.mxu0 0.0
  %3380 = vmatprep.subr.mxu0 0.0
  %3381 = vmatpush1.msra.mxu0 0.0
  %3382 = vmatprep.subr.mxu0 0.0
  %3383 = vmatpush1.msra.mxu0 0.0
  %3384 = vmatprep.subr.mxu0 0.0
  %3385 = vmatpush1.msra.mxu0 0.0
  %3386 = vmatprep.subr.mxu0 0.0
  %3387 = vmatpush1.msra.mxu0 0.0
  %3388 = vmatprep.subr.mxu0 0.0
  %3389 = vmatpush1.msra.mxu0 0.0
  %3390 = vmatprep.subr.mxu0 0.0
  %3391 = vmatpush1.msra.mxu0 0.0
  %3392 = vmatprep.subr.mxu0 0.0
  %3393 = vmatpush1.msra.mxu0 0.0
  %3394 = vmatprep.subr.mxu0 0.0
  %3395 = vmatpush1.msra.mxu0 0.0
  %3396 = vmatprep.subr.mxu0 0.0
  %3397 = vmatpush1.msra.mxu0 0.0
  %3398 = vmatprep.subr.mxu0 0.0
  %3399 = vmatpush1.msra.mxu0 0.0
  %3400 = vmatprep.mubr.f32.mxu0 0.0
  %3401 = vmatmul.mubr.f32.gmra.mrb[0].mxu0 %v3334
  %v3402 = vpop.f32.mrb[0].mxu0
  %v3403 = vadd.f32 0.0, %v3402
  %v3404 = vpop.f32.mrb[0].mxu0
  %v3405 = vadd.f32 0.0, %v3404
  %3406 = vdwg.mxu0
  %v3407 = vadd.f32 %v2581, %v3403
  %v3408 = vadd.f32 %v2583, %v3405
  %v3409 = vxor.u32 %v3407, 2147483648
  %v3410 = vxor.u32 %v3408, 2147483648
  %v3411 = vmul.f32 %v3409, 1.442695
  %v3412 = vpow.pop %v3411
  %v3413 = vmul.f32 %v3410, 1.442695
  %v3414 = vpow.pop %v3413
  %v3415 = vadd.f32 %v3412, 1.0
  %v3416 = vadd.f32 %v3414, 1.0
  %v3417 = vrcp.pop %v3415
  %v3418 = vmul.f32 1.0, %v3417
  %v3419 = vrcp.pop %v3416
  %v3420 = vmul.f32 1.0, %v3419
  %v3421 = vtanh.pop %v3408
  %v3422 = vmul.f32 %v3418, %v3325
  %3424 = vrot.lane.b32.xlu0 %v3421, 64
  %v3425 = vpop.permute.xlu0 %3424
  %v3427 = vmul.f32 %v3418, %v3425
  %3429 = vrot.lane.b32.xlu0 %v3427, 64
  %v3430 = vpop.permute.xlu0 %3429
  %v3432 = vadd.f32 %v3422, %v3430
  %v3433 = vtanh.pop %v3432
  %3435 = vrot.lane.b32.xlu0 %v3433, 64
  %v3436 = vpop.permute.xlu0 %3435
  %v3438 = vmul.f32 %v3420, %v3436
  %3439 = vst.msk [vmem:[#allocation4 + $0x38] sm:$0xff] %vm1203, %v3438
  %v3440 = vld [vmem:[#allocation4] sm:$0xff]
  %v3441 = vld [vmem:[#allocation4 + $0x8] sm:$0xff]
  %v3442 = vld [vmem:[#allocation4 + $0x10] sm:$0xff]
  %v3443 = vld [vmem:[#allocation4 + $0x18] sm:$0xff]
  %v3444 = vld [vmem:[#allocation4 + $0x20] sm:$0xff]
  %v3445 = vld [vmem:[#allocation4 + $0x28] sm:$0xff]
  %v3446 = vld [vmem:[#allocation4 + $0x30] sm:$0xff]
  %v3447 = vld [vmem:[#allocation4 + $0x38] sm:$0xff]
  %v3448 = vld [vmem:[%s16] sm:$0xff]
  %v3449 = vld [vmem:[%s16 + $0x8] sm:$0xff]
  %v3450 = vld [vmem:[%s16 + $0x10] sm:$0xff]
  %v3451 = vld [vmem:[%s16 + $0x18] sm:$0xff]
  %v3452 = vld [vmem:[%s16 + $0x20] sm:$0xff]
  %v3453 = vld [vmem:[%s16 + $0x28] sm:$0xff]
  %v3454 = vld [vmem:[%s16 + $0x30] sm:$0xff]
  %v3455 = vld [vmem:[%s16 + $0x38] sm:$0xff]
  %v3456 = vld [vmem:[%s17] sm:$0x1]
  %v3458 = vlaneseq
  %v3459 = vshrl.u32 %v3458, 7
  %v3460 = vsub.s32 0, %v3459
  %v3461 = vrot.slane %v3456, %v3460
  %v3464 = vsel %vm1203, %v3440, 0
  %v3467 = vsel %vm1203, %v3441, 0
  %v3470 = vsel %vm1203, %v3442, 0
  %v3473 = vsel %vm1203, %v3443, 0
  %v3476 = vsel %vm1203, %v3444, 0
  %v3479 = vsel %vm1203, %v3445, 0
  %v3482 = vsel %vm1203, %v3446, 0
  %v3485 = vsel %vm1203, %v3447, 0
  %3487 = vmatprep.subr.mxu0 0.0
  %3488 = vmatpush1.msra.mxu0 %v3448
  %3489 = vmatprep.subr.mxu0 0.0
  %3490 = vmatpush1.msra.mxu0 %v3449
  %3491 = vmatprep.subr.mxu0 0.0
  %3492 = vmatpush1.msra.mxu0 %v3450
  %3493 = vmatprep.subr.mxu0 0.0
  %3494 = vmatpush1.msra.mxu0 %v3451
  %3495 = vmatprep.subr.mxu0 0.0
  %3496 = vmatpush1.msra.mxu0 %v3452
  %3497 = vmatprep.subr.mxu0 0.0
  %3498 = vmatpush1.msra.mxu0 %v3453
  %3499 = vmatprep.subr.mxu0 0.0
  %3500 = vmatpush1.msra.mxu0 %v3454
  %3501 = vmatprep.subr.mxu0 0.0
  %3502 = vmatpush1.msra.mxu0 %v3455
  %3503 = vmatprep.subr.mxu0 0.0
  %3504 = vmatpush1.msra.mxu0 0.0
  %3505 = vmatprep.subr.mxu0 0.0
  %3506 = vmatpush1.msra.mxu0 0.0
  %3507 = vmatprep.subr.mxu0 0.0
  %3508 = vmatpush1.msra.mxu0 0.0
  %3509 = vmatprep.subr.mxu0 0.0
  %3510 = vmatpush1.msra.mxu0 0.0
  %3511 = vmatprep.subr.mxu0 0.0
  %3512 = vmatpush1.msra.mxu0 0.0
  %3513 = vmatprep.subr.mxu0 0.0
  %3514 = vmatpush1.msra.mxu0 0.0
  %3515 = vmatprep.subr.mxu0 0.0
  %3516 = vmatpush1.msra.mxu0 0.0
  %3517 = vmatprep.subr.mxu0 0.0
  %3518 = vmatpush1.msra.mxu0 0.0
  %3519 = vmatprep.subr.mxu0 0.0
  %3520 = vmatpush1.msra.mxu0 0.0
  %3521 = vmatprep.subr.mxu0 0.0
  %3522 = vmatpush1.msra.mxu0 0.0
  %3523 = vmatprep.subr.mxu0 0.0
  %3524 = vmatpush1.msra.mxu0 0.0
  %3525 = vmatprep.subr.mxu0 0.0
  %3526 = vmatpush1.msra.mxu0 0.0
  %3527 = vmatprep.subr.mxu0 0.0
  %3528 = vmatpush1.msra.mxu0 0.0
  %3529 = vmatprep.subr.mxu0 0.0
  %3530 = vmatpush1.msra.mxu0 0.0
  %3531 = vmatprep.subr.mxu0 0.0
  %3532 = vmatpush1.msra.mxu0 0.0
  %3533 = vmatprep.subr.mxu0 0.0
  %3534 = vmatpush1.msra.mxu0 0.0
  %3535 = vmatprep.subr.mxu0 0.0
  %3536 = vmatpush1.msra.mxu0 0.0
  %3537 = vmatprep.subr.mxu0 0.0
  %3538 = vmatpush1.msra.mxu0 0.0
  %3539 = vmatprep.subr.mxu0 0.0
  %3540 = vmatpush1.msra.mxu0 0.0
  %3541 = vmatprep.subr.mxu0 0.0
  %3542 = vmatpush1.msra.mxu0 0.0
  %3543 = vmatprep.subr.mxu0 0.0
  %3544 = vmatpush1.msra.mxu0 0.0
  %3545 = vmatprep.subr.mxu0 0.0
  %3546 = vmatpush1.msra.mxu0 0.0
  %3547 = vmatprep.subr.mxu0 0.0
  %3548 = vmatpush1.msra.mxu0 0.0
  %3549 = vmatprep.subr.mxu0 0.0
  %3550 = vmatpush1.msra.mxu0 0.0
  %3551 = vmatprep.mubr.f32.mxu0 0.0
  %3552 = vmatmul.mubr.f32.gmra.mrb[0].mxu0 %v3464
  %v3553 = vpop.f32.mrb[0].mxu0
  %v3554 = vadd.f32 %v3461, %v3553
  %v3555 = vpop.f32.mrb[0].mxu0
  %3556 = vmatprep.mubr.f32.mxu0 0.0
  %3557 = vmatmul.mubr.f32.gmra.mrb[0].mxu0 %v3467
  %v3558 = vpop.f32.mrb[0].mxu0
  %v3559 = vadd.f32 %v3461, %v3558
  %v3560 = vpop.f32.mrb[0].mxu0
  %3561 = vmatprep.mubr.f32.mxu0 0.0
  %3562 = vmatmul.mubr.f32.gmra.mrb[0].mxu0 %v3470
  %v3563 = vpop.f32.mrb[0].mxu0
  %v3564 = vadd.f32 %v3461, %v3563
  %v3565 = vpop.f32.mrb[0].mxu0
  %3566 = vmatprep.mubr.f32.mxu0 0.0
  %3567 = vmatmul.mubr.f32.gmra.mrb[0].mxu0 %v3473
  %v3568 = vpop.f32.mrb[0].mxu0
  %v3569 = vadd.f32 %v3461, %v3568
  %v3570 = vpop.f32.mrb[0].mxu0
  %3571 = vmatprep.mubr.f32.mxu0 0.0
  %3572 = vmatmul.mubr.f32.gmra.mrb[0].mxu0 %v3476
  %v3573 = vpop.f32.mrb[0].mxu0
  %v3574 = vadd.f32 %v3461, %v3573
  %v3575 = vpop.f32.mrb[0].mxu0
  %3576 = vmatprep.mubr.f32.mxu0 0.0
  %3577 = vmatmul.mubr.f32.gmra.mrb[0].mxu0 %v3479
  %v3578 = vpop.f32.mrb[0].mxu0
  %v3579 = vadd.f32 %v3461, %v3578
  %v3580 = vpop.f32.mrb[0].mxu0
  %3581 = vmatprep.mubr.f32.mxu0 0.0
  %3582 = vmatmul.mubr.f32.gmra.mrb[0].mxu0 %v3482
  %v3583 = vpop.f32.mrb[0].mxu0
  %v3584 = vadd.f32 %v3461, %v3583
  %v3585 = vpop.f32.mrb[0].mxu0
  %3586 = vmatprep.mubr.f32.mxu0 0.0
  %3587 = vmatmul.mubr.f32.gmra.mrb[0].mxu0 %v3485
  %v3588 = vpop.f32.mrb[0].mxu0
  %v3589 = vadd.f32 %v3461, %v3588
  %v3590 = vpop.f32.mrb[0].mxu0
  %3591 = vdwg.mxu0
  %v3592 = vmul.f32 %v3554, 0.5
  %v3593 = vmul.f32 %v3559, 0.5
  %v3594 = vmul.f32 %v3564, 0.5
  %v3595 = vmul.f32 %v3569, 0.5
  %v3596 = vmul.f32 %v3574, 0.5
  %v3597 = vmul.f32 %v3579, 0.5
  %v3598 = vmul.f32 %v3584, 0.5
  %v3599 = vmul.f32 %v3589, 0.5
  %v3600 = vmul.f32 %v3592, 1.442695
  %v3601 = vpow.pop %v3600
  %v3602 = vmul.f32 %v3593, 1.442695
  %v3603 = vpow.pop %v3602
  %v3604 = vmul.f32 %v3594, 1.442695
  %v3605 = vpow.pop %v3604
  %v3606 = vmul.f32 %v3595, 1.442695
  %v3607 = vpow.pop %v3606
  %v3608 = vmul.f32 %v3596, 1.442695
  %v3609 = vpow.pop %v3608
  %v3610 = vmul.f32 %v3597, 1.442695
  %v3611 = vpow.pop %v3610
  %v3612 = vmul.f32 %v3598, 1.442695
  %v3613 = vpow.pop %v3612
  %v3614 = vmul.f32 %v3599, 1.442695
  %v3615 = vpow.pop %v3614
  %v3616 = vmul.f32 %v3554, -0.5
  %v3617 = vmul.f32 %v3559, -0.5
  %v3618 = vmul.f32 %v3564, -0.5
  %v3619 = vmul.f32 %v3569, -0.5
  %v3620 = vmul.f32 %v3574, -0.5
  %v3621 = vmul.f32 %v3579, -0.5
  %v3622 = vmul.f32 %v3584, -0.5
  %v3623 = vmul.f32 %v3589, -0.5
  %v3624 = vmul.f32 %v3616, 1.442695
  %v3625 = vpow.pop %v3624
  %v3626 = vmul.f32 %v3617, 1.442695
  %v3627 = vpow.pop %v3626
  %v3628 = vmul.f32 %v3618, 1.442695
  %v3629 = vpow.pop %v3628
  %v3630 = vmul.f32 %v3619, 1.442695
  %v3631 = vpow.pop %v3630
  %v3632 = vmul.f32 %v3620, 1.442695
  %v3633 = vpow.pop %v3632
  %v3634 = vmul.f32 %v3621, 1.442695
  %v3635 = vpow.pop %v3634
  %v3636 = vmul.f32 %v3622, 1.442695
  %v3637 = vpow.pop %v3636
  %v3638 = vmul.f32 %v3623, 1.442695
  %v3639 = vpow.pop %v3638
  %v3640 = vld [vmem:[%s3] sm:$0xff]
  %v3641 = vld [vmem:[%s3 + $0x8] sm:$0xff]
  %v3642 = vld [vmem:[%s3 + $0x10] sm:$0xff]
  %v3643 = vld [vmem:[%s3 + $0x18] sm:$0xff]
  %v3644 = vld [vmem:[%s3 + $0x20] sm:$0xff]
  %v3645 = vld [vmem:[%s3 + $0x28] sm:$0xff]
  %v3646 = vld [vmem:[%s3 + $0x30] sm:$0xff]
  %v3647 = vld [vmem:[%s3 + $0x38] sm:$0xff]
  %3656 = vrot.lane.b32.xlu0 %v3601, 112
  %v3657 = vpop.permute.xlu0 %3656
  %3658 = vrot.lane.b32.xlu0 %v3603, 112
  %v3659 = vpop.permute.xlu0 %3658
  %3660 = vrot.lane.b32.xlu0 %v3605, 112
  %v3661 = vpop.permute.xlu0 %3660
  %3662 = vrot.lane.b32.xlu0 %v3607, 112
  %v3663 = vpop.permute.xlu0 %3662
  %3664 = vrot.lane.b32.xlu0 %v3609, 112
  %v3665 = vpop.permute.xlu0 %3664
  %3666 = vrot.lane.b32.xlu0 %v3611, 112
  %v3667 = vpop.permute.xlu0 %3666
  %3668 = vrot.lane.b32.xlu0 %v3613, 112
  %v3669 = vpop.permute.xlu0 %3668
  %3670 = vrot.lane.b32.xlu0 %v3615, 112
  %v3671 = vpop.permute.xlu0 %3670
  %v3680 = vmul.f32 %v3640, %v3657
  %v3681 = vmul.f32 %v3641, %v3659
  %v3682 = vmul.f32 %v3642, %v3661
  %v3683 = vmul.f32 %v3643, %v3663
  %v3684 = vmul.f32 %v3644, %v3665
  %v3685 = vmul.f32 %v3645, %v3667
  %v3686 = vmul.f32 %v3646, %v3669
  %v3687 = vmul.f32 %v3647, %v3671
  %v3688 = vadd.f32 %v3680, %v3554
  %v3689 = vadd.f32 %v3681, %v3559
  %v3690 = vadd.f32 %v3682, %v3564
  %v3691 = vadd.f32 %v3683, %v3569
  %v3692 = vadd.f32 %v3684, %v3574
  %v3693 = vadd.f32 %v3685, %v3579
  %v3694 = vadd.f32 %v3686, %v3584
  %v3695 = vadd.f32 %v3687, %v3589
  %3696 = vst.msk [vmem:[%s18] sm:$0xff] %vm90, %v3688
  %3697 = vst.msk [vmem:[%s18 + $0x8] sm:$0xff] %vm90, %v3689
  %3698 = vst.msk [vmem:[%s18 + $0x10] sm:$0xff] %vm90, %v3690
  %3699 = vst.msk [vmem:[%s18 + $0x18] sm:$0xff] %vm90, %v3691
  %3700 = vst.msk [vmem:[%s18 + $0x20] sm:$0xff] %vm90, %v3692
  %3701 = vst.msk [vmem:[%s18 + $0x28] sm:$0xff] %vm90, %v3693
  %3702 = vst.msk [vmem:[%s18 + $0x30] sm:$0xff] %vm90, %v3694
  %3703 = vst.msk [vmem:[%s18 + $0x38] sm:$0xff] %vm90, %v3695
  %v3704 = vld [vmem:[%s1] sm:$0xff]
  %v3705 = vld [vmem:[%s1 + $0x8] sm:$0xff]
  %v3706 = vld [vmem:[%s1 + $0x10] sm:$0xff]
  %v3707 = vld [vmem:[%s1 + $0x18] sm:$0xff]
  %v3708 = vld [vmem:[%s1 + $0x20] sm:$0xff]
  %v3709 = vld [vmem:[%s1 + $0x28] sm:$0xff]
  %v3710 = vld [vmem:[%s1 + $0x30] sm:$0xff]
  %v3711 = vld [vmem:[%s1 + $0x38] sm:$0xff]
  %v3712 = vsub.f32 %v3554, %v3704
  %v3713 = vsub.f32 %v3559, %v3705
  %v3714 = vsub.f32 %v3564, %v3706
  %v3715 = vsub.f32 %v3569, %v3707
  %v3716 = vsub.f32 %v3574, %v3708
  %v3717 = vsub.f32 %v3579, %v3709
  %v3718 = vsub.f32 %v3584, %v3710
  %v3719 = vsub.f32 %v3589, %v3711
  %3728 = vrot.lane.b32.xlu0 %v3625, 112
  %v3729 = vpop.permute.xlu0 %3728
  %3730 = vrot.lane.b32.xlu0 %v3627, 112
  %v3731 = vpop.permute.xlu0 %3730
  %3732 = vrot.lane.b32.xlu0 %v3629, 112
  %v3733 = vpop.permute.xlu0 %3732
  %3734 = vrot.lane.b32.xlu0 %v3631, 112
  %v3735 = vpop.permute.xlu0 %3734
  %3736 = vrot.lane.b32.xlu0 %v3633, 112
  %v3737 = vpop.permute.xlu0 %3736
  %3738 = vrot.lane.b32.xlu0 %v3635, 112
  %v3739 = vpop.permute.xlu0 %3738
  %3740 = vrot.lane.b32.xlu0 %v3637, 112
  %v3741 = vpop.permute.xlu0 %3740
  %3742 = vrot.lane.b32.xlu0 %v3639, 112
  %v3743 = vpop.permute.xlu0 %3742
  %v3752 = vmul.f32 %v3712, %v3729
  %v3753 = vmul.f32 %v3713, %v3731
  %v3754 = vmul.f32 %v3714, %v3733
  %v3755 = vmul.f32 %v3715, %v3735
  %v3756 = vmul.f32 %v3716, %v3737
  %v3757 = vmul.f32 %v3717, %v3739
  %v3758 = vmul.f32 %v3718, %v3741
  %v3759 = vmul.f32 %v3719, %v3743
  %v3760 = vmul.f32 %v3752, %v3752
  %v3761 = vmul.f32 %v3753, %v3753
  %v3762 = vmul.f32 %v3754, %v3754
  %v3763 = vmul.f32 %v3755, %v3755
  %v3764 = vmul.f32 %v3756, %v3756
  %v3765 = vmul.f32 %v3757, %v3757
  %v3766 = vmul.f32 %v3758, %v3758
  %v3767 = vmul.f32 %v3759, %v3759
  %3776 = vrot.lane.b32.xlu0 %v3554, 112
  %v3777 = vpop.permute.xlu0 %3776
  %3778 = vrot.lane.b32.xlu0 %v3559, 112
  %v3779 = vpop.permute.xlu0 %3778
  %3780 = vrot.lane.b32.xlu0 %v3564, 112
  %v3781 = vpop.permute.xlu0 %3780
  %3782 = vrot.lane.b32.xlu0 %v3569, 112
  %v3783 = vpop.permute.xlu0 %3782
  %3784 = vrot.lane.b32.xlu0 %v3574, 112
  %v3785 = vpop.permute.xlu0 %3784
  %3786 = vrot.lane.b32.xlu0 %v3579, 112
  %v3787 = vpop.permute.xlu0 %3786
  %3788 = vrot.lane.b32.xlu0 %v3584, 112
  %v3789 = vpop.permute.xlu0 %3788
  %3790 = vrot.lane.b32.xlu0 %v3589, 112
  %v3791 = vpop.permute.xlu0 %3790
  %v3800 = vadd.f32 %v3760, %v3777
  %v3801 = vadd.f32 %v3761, %v3779
  %v3802 = vadd.f32 %v3762, %v3781
  %v3803 = vadd.f32 %v3763, %v3783
  %v3804 = vadd.f32 %v3764, %v3785
  %v3805 = vadd.f32 %v3765, %v3787
  %v3806 = vadd.f32 %v3766, %v3789
  %v3807 = vadd.f32 %v3767, %v3791
  %v3808 = vmul.f32 %v2312, %v3800
  %v3809 = vmul.f32 %v2317, %v3801
  %v3810 = vmul.f32 %v2322, %v3802
  %v3811 = vmul.f32 %v2327, %v3803
  %v3812 = vmul.f32 %v2332, %v3804
  %v3813 = vmul.f32 %v2337, %v3805
  %v3814 = vmul.f32 %v2342, %v3806
  %v3815 = vmul.f32 %v2347, %v3807
  %v3816 = vsel %vm90, %v3808, 0.0
  %v3817 = vsel %vm90, %v3809, 0.0
  %v3818 = vadd.f32 %v3816, %v3817
  %v3819 = vsel %vm90, %v3810, 0.0
  %v3820 = vadd.f32 %v3818, %v3819
  %v3821 = vsel %vm90, %v3811, 0.0
  %v3822 = vadd.f32 %v3820, %v3821
  %v3823 = vsel %vm90, %v3812, 0.0
  %v3824 = vadd.f32 %v3822, %v3823
  %v3825 = vsel %vm90, %v3813, 0.0
  %v3826 = vadd.f32 %v3824, %v3825
  %v3827 = vsel %vm90, %v3814, 0.0
  %v3828 = vadd.f32 %v3826, %v3827
  %v3829 = vsel %vm90, %v3815, 0.0
  %v3830 = vadd.f32 %v3828, %v3829
  %3831 = vadd.xlane.f32.xlu0 %v3830
  %v3832 = vpop.xlane.xlu0 %3831
  %v3833 = vrot.slane %v3832, 4
  %v3834 = vadd.f32 %v3832, %v3833
  %v3835 = vrot.slane %v3834, 2
  %v3836 = vadd.f32 %v3834, %v3835
  %v3837 = vrot.slane %v3836, 1
  %v3838 = vadd.f32 %v3836, %v3837
  %s3839 = vtos %v3838
  %s3840 = smul.f32 %s3839, 0.5
  %v3841 = vrcp.pop 2.0
  %s3842 = vtos %v3841
  %s3843 = smul.f32 %s3840, %s3842
  %v3844 = vstv %s2417
  %v3845 = vstv %s3843
  %vm3846 = vcmask 7168
  %v3847 = vsel %vm3846, %v3844, %v3845
  %vm3848 = vcmask 8192
  %3849 = vst.msk [vmem:[%s19] sm:$0x1] %vm3848, %v3847
  // Predicated region
  $region74: #{vae_forward.1} parent=0 // pred_check
    _
  $region75: #{vae_forward.1} parent=0 // pred_check_branch
    %3851 = sbr.rel (0) target = $region77
  $region76: #{vae_forward.1} parent=0 // pred_region
    _
  $region77: #{vae_forward.1} parent=0 // pred_fallthru
    _
  // Predicated region
  $region78: #{vae_forward.1} parent=0 // pred_check
    _
  $region79: #{vae_forward.1} parent=0 // pred_check_branch
    %3853 = sbr.rel (0) target = $region81
  $region80: #{vae_forward.1} parent=0 // pred_region
    _
  $region81: #{vae_forward.1} parent=0 // pred_fallthru
    _
  // Predicated region
  $region82: #{vae_forward.1} parent=0 // pred_check
    _
  $region83: #{vae_forward.1} parent=0 // pred_check_branch
    %3855 = sbr.rel (0) target = $region85
  $region84: #{vae_forward.1} parent=0 // pred_region
    _
  $region85: #{vae_forward.1} parent=0 // pred_fallthru
    _
  // Predicated region
  $region86: #{vae_forward.1} parent=0 // pred_check
    _
  $region87: #{vae_forward.1} parent=0 // pred_check_branch
    %3857 = sbr.rel (0) target = $region89
  $region88: #{vae_forward.1} parent=0 // pred_region
    _
  $region89: #{vae_forward.1} parent=0 // pred_fallthru
    _

</llo_original>
